<compile_context>
chip_gen: v6e
topology: v6e:2x2x1
jax: 0.10.0
libtpu: 0.0.40
codegen_flags: <defaults>
</compile_context>

<pallas_src>
import functools

import jax
import jax.numpy as jnp
import numpy as np
from jax.experimental import pallas as pl
from jax.experimental.pallas import tpu as pltpu


# --------------------------------------------------------------------------
# Pallas kernel: one batch item per grid step.  Pure compute, no relayouts.
# --------------------------------------------------------------------------
def _fuse_kernel(xcol_ref, cur_ref, deep_ref, wconv_ref, bconv_ref, mt_ref,
                 out_ref, *, c0, c1, c2):
    # xcol_ref : (1, 9*c0, N)   host-built im2col of stride-2 3x3 conv (lane-dense)
    # cur_ref  : (1, c1, N)     pass-through feature (pre-flattened)
    # deep_ref : (1, c2, Nd)    deep feature (pre-flattened)
    # wconv_ref: (c0, 9*c0)     conv weights with eval-mode BN scale folded in
    # bconv_ref: (c0, 1)        folded BN bias
    # mt_ref   : (Nd, N)        bilinear align_corners=True interpolation matrix
    # out_ref  : (1, c0+c1+c2, N)

    # ---- conv_downsample (conv + folded BN): ONE MXU matmul, f32 accumulate ----
    conv = jnp.dot(wconv_ref[...], xcol_ref[0],
                   preferred_element_type=jnp.float32) + bconv_ref[...]     # (c0, N)

    # Mish(x) = x * tanh(softplus(x)); numerically-stable softplus (VPU + EUP).
    sp = jnp.maximum(conv, 0.0) + jnp.log1p(jnp.exp(-jnp.abs(conv)))
    act = conv * jnp.tanh(sp)                                               # (c0, N)
    out_ref[0, 0:c0, :] = act.astype(out_ref.dtype)

    # ---- current feature: straight lane-dense copy (sublane offset c0) ----
    out_ref[0, c0:c0 + c1, :] = cur_ref[0]

    # ---- F.interpolate(deep, bilinear, align_corners=True): ONE MXU matmul ----
    up = jnp.dot(deep_ref[0], mt_ref[...],
                 preferred_element_type=jnp.float32)                        # (c2, N)
    out_ref[0, c0 + c1:, :] = up.astype(out_ref.dtype)


# --------------------------------------------------------------------------
# Host helpers.
# --------------------------------------------------------------------------
def _interp_matrix(out_size, in_size):
    """1-D bilinear interpolation matrix, PyTorch align_corners=True semantics."""
    A = np.zeros((out_size, in_size), dtype=np.float32)
    for i in range(out_size):
        if out_size == 1 or in_size == 1:
            src = 0.0
        else:
            src = i * (in_size - 1) / (out_size - 1)
        i0 = min(int(np.floor(src)), in_size - 1)
        i1 = min(i0 + 1, in_size - 1)
        f = src - i0
        A[i, i0] += 1.0 - f
        A[i, i1] += f
    return A


def fuse_forward(shallow, current, deep, conv_w, bn_gamma, bn_beta, bn_mean,
                 bn_var, *, eps=1e-5):
    """Pallas TPU implementation of Fuse.forward.

    shallow: (B, c0, 2H, 2W)   current: (B, c1, H, W)   deep: (B, c2, Hd, Wd)
    conv_w : (c0, c0, 3, 3)    BN params: (c0,) each (eval-mode running stats).
    Returns (B, c0+c1+c2, H, W).
    """
    B, c0, Hs, Ws = shallow.shape
    _, c1, H, W = current.shape
    _, c2, Hd, Wd = deep.shape
    assert Hs == 2 * H and Ws == 2 * W, "shallow must be 2x current spatial size"
    N = H * W
    Nd = Hd * Wd
    c_total = c0 + c1 + c2
    out_dtype = current.dtype

    # ---- host-side parameter folding: BatchNorm (eval mode) -> conv scale/bias
    # TODO(synk): training-mode BatchNorm (batch statistics) is not implemented;
    # eval-mode running stats are folded into the conv weights/bias.
    scale = bn_gamma / jnp.sqrt(bn_var + eps)                               # (c0,)
    w_flat = (conv_w * scale[:, None, None, None]).transpose(0, 2, 3, 1)    # (c0,3,3,c0)
    w_flat = w_flat.reshape(c0, 9 * c0)                                     # tap-major
    b_flat = (bn_beta - bn_mean * scale).reshape(c0, 1)

    # ---- host-side im2col of the stride-2, pad-1, 3x3 conv (pure layout work,
    # one XLA pass; lane-dense so the kernel sees a single (9c0, N) operand).
    xp = jnp.pad(shallow, ((0, 0), (0, 0), (1, 1), (1, 1)))                 # (B,c0,2H+2,2W+2)
    slabs = []
    for ky in range(3):
        for kx in range(3):
            slabs.append(xp[:, :, ky:ky + 2 * H:2, kx:kx + 2 * W:2])        # (B,c0,H,W)
    x_col = jnp.concatenate(slabs, axis=1).reshape(B, 9 * c0, N)            # (B,9c0,N)

    # ---- pre-flatten the pass-through and deep features (free metadata reshape)
    cur_flat = current.reshape(B, c1, N)
    deep_flat = deep.reshape(B, c2, Nd)

    # ---- bilinear (align_corners=True) interpolation matrix, built once on host
    m = np.kron(_interp_matrix(H, Hd), _interp_matrix(W, Wd))               # (N, Nd)
    m_t = jnp.asarray(m.T)                                                  # (Nd, N)

    kernel = functools.partial(_fuse_kernel, c0=c0, c1=c1, c2=c2)
    out = pl.pallas_call(
        kernel,
        out_shape=jax.ShapeDtypeStruct((B, c_total, N), out_dtype),
        grid_spec=pltpu.PrefetchScalarGridSpec(
            num_scalar_prefetch=0,
            grid=(B,),
            in_specs=[
                pl.BlockSpec((1, 9 * c0, N), lambda b: (b, 0, 0)),
                pl.BlockSpec((1, c1, N), lambda b: (b, 0, 0)),
                pl.BlockSpec((1, c2, Nd), lambda b: (b, 0, 0)),
                pl.BlockSpec((c0, 9 * c0), lambda b: (0, 0)),
                pl.BlockSpec((c0, 1), lambda b: (0, 0)),
                pl.BlockSpec((Nd, N), lambda b: (0, 0)),
            ],
            out_specs=pl.BlockSpec((1, c_total, N), lambda b: (b, 0, 0)),
        ),
        compiler_params=pltpu.CompilerParams(
            dimension_semantics=("parallel",)),   # batch items -> separate TCs on v7x
    )(x_col, cur_flat, deep_flat, w_flat, b_flat, m_t)

    return out.reshape(B, c_total, H, W)          # free metadata reshape back to NCHW


# --------------------------------------------------------------------------
# Plain-JAX reference (independent formulation) for the correctness check.
# --------------------------------------------------------------------------
def _bilinear_align_corners_ref(x, out_h, out_w):
    _, _, in_h, in_w = x.shape

    def coords(out_size, in_size):
        if out_size == 1 or in_size == 1:
            src = jnp.zeros((out_size,), jnp.float32)
        else:
            src = jnp.arange(out_size, dtype=jnp.float32) * ((in_size - 1) / (out_size - 1))
        i0 = jnp.clip(jnp.floor(src).astype(jnp.int32), 0, in_size - 1)
        i1 = jnp.clip(i0 + 1, 0, in_size - 1)
        return i0, i1, src - i0.astype(jnp.float32)

    y0, y1, fy = coords(out_h, in_h)
    x0, x1, fx = coords(out_w, in_w)
    fy = fy[:, None]
    fx = fx[None, :]

    def g(yi, xi):
        return x[:, :, yi[:, None], xi[None, :]]

    return ((1 - fy) * (1 - fx) * g(y0, x0) + (1 - fy) * fx * g(y0, x1)
            + fy * (1 - fx) * g(y1, x0) + fy * fx * g(y1, x1))


def _reference(shallow, current, deep, conv_w, gamma, beta, mean, var, eps=1e-5):
    conv = jax.lax.conv_general_dilated(
        shallow, conv_w, window_strides=(2, 2), padding=((1, 1), (1, 1)),
        dimension_numbers=("NCHW", "OIHW", "NCHW"))
    scale = gamma / jnp.sqrt(var + eps)
    y = conv * scale[None, :, None, None] + (beta - mean * scale)[None, :, None, None]
    softplus = jnp.maximum(y, 0.0) + jnp.log1p(jnp.exp(-jnp.abs(y)))
    y = y * jnp.tanh(softplus)
    up = _bilinear_align_corners_ref(deep, current.shape[2], current.shape[3])
    return jnp.concatenate([y, current, up], axis=1)


if __name__ == "__main__":
    jax.config.update("jax_default_matmul_precision", "highest")

    B = 2
    c0, c1, c2 = 32, 32, 32          # in_channels = [32, 32, 32]
    H, W = 16, 16                    # current_feature spatial size (N = 256 lanes)
    Hs, Ws = 2 * H, 2 * W            # shallow_feature (downsampled by the conv)
    Hd, Wd = 8, 8                    # deep_feature (bilinearly upsampled)

    key = jax.random.PRNGKey(0)
    ks, kc, kd, kw, kg, kb, km, kv = jax.random.split(key, 8)
    shallow = jax.random.normal(ks, (B, c0, Hs, Ws), dtype=jnp.float32)
    current = jax.random.normal(kc, (B, c1, H, W), dtype=jnp.float32)
    deep = jax.random.normal(kd, (B, c2, Hd, Wd), dtype=jnp.float32)

    conv_w = jax.random.normal(kw, (c0, c0, 3, 3), dtype=jnp.float32) * 0.1
    bn_gamma = 1.0 + 0.1 * jax.random.normal(kg, (c0,), dtype=jnp.float32)
    bn_beta = 0.1 * jax.random.normal(kb, (c0,), dtype=jnp.float32)
    bn_mean = 0.1 * jax.random.normal(km, (c0,), dtype=jnp.float32)
    bn_var = 1.0 + 0.5 * jnp.abs(jax.random.normal(kv, (c0,), dtype=jnp.float32))

    out = fuse_forward(shallow, current, deep, conv_w,
                       bn_gamma, bn_beta, bn_mean, bn_var)
    out = jax.block_until_ready(out)

    ref = _reference(shallow, current, deep, conv_w,
                     bn_gamma, bn_beta, bn_mean, bn_var)
    assert out.shape == (B, c0 + c1 + c2, H, W)
    assert jnp.allclose(out, ref, atol=1e-3, rtol=1e-3), \
        float(jnp.max(jnp.abs(out - ref)))

    print("KERNEL_OK")
</pallas_src>

<mosaic_0001>
module attributes {stable_mosaic.version = 11 : i64} {
  func.func @_fuse_kernel(%arg0: i32, %arg1: memref<1x288x256xf32, #tpu.memory_space<vmem>>, %arg2: memref<1x32x256xf32, #tpu.memory_space<vmem>>, %arg3: memref<1x32x64xf32, #tpu.memory_space<vmem>>, %arg4: memref<32x288xf32, #tpu.memory_space<vmem>>, %arg5: memref<32x1xf32, #tpu.memory_space<vmem>>, %arg6: memref<64x256xf32, #tpu.memory_space<vmem>>, %arg7: memref<1x96x256xf32, #tpu.memory_space<vmem>>) attributes {dimension_semantics = [#tpu.dimension_semantics<parallel>], iteration_bounds = array<i64: 2>, scalar_prefetch = 0 : i64, scratch_operands = 0 : i64, tpu.core_type = #tpu.core_type<tc>, window_params = [{transform_indices = @transform_0, window_bounds = array<i64: 1, 288, 256>}, {transform_indices = @transform_1, window_bounds = array<i64: 1, 32, 256>}, {transform_indices = @transform_2, window_bounds = array<i64: 1, 32, 64>}, {pipeline_mode = #tpu.pipeline_mode<synchronous>, transform_indices = @transform_3, window_bounds = array<i64: 32, 288>}, {pipeline_mode = #tpu.pipeline_mode<synchronous>, transform_indices = @transform_4, window_bounds = array<i64: 32, 1>}, {pipeline_mode = #tpu.pipeline_mode<synchronous>, transform_indices = @transform_5, window_bounds = array<i64: 64, 256>}, {transform_indices = @transform_6, window_bounds = array<i64: 1, 96, 256>}]} {
    %c0 = arith.constant 0 : index
    %c0_0 = arith.constant 0 : index
    %0 = vector.load %arg4[%c0, %c0_0] : memref<32x288xf32, #tpu.memory_space<vmem>>, vector<32x288xf32>
    %c0_1 = arith.constant 0 : index
    %c0_2 = arith.constant 0 : index
    %c0_3 = arith.constant 0 : index
    %1 = vector.load %arg1[%c0_1, %c0_2, %c0_3] : memref<1x288x256xf32, #tpu.memory_space<vmem>>, vector<1x288x256xf32>
    %2 = vector.shape_cast %1 : vector<1x288x256xf32> to vector<288x256xf32>
    %cst = arith.constant dense<0.000000e+00> : vector<32x256xf32>
    %3 = tpu.matmul %0, %2, %cst {dimension_numbers = #tpu.dot_dimension_numbers<[1], [0], [0], [1], [0, 0, 1, 1], [], []>, precision = #tpu.contract_precision<fp32>} : vector<32x288xf32>, vector<288x256xf32>, vector<32x256xf32> -> vector<32x256xf32>
    %c0_4 = arith.constant 0 : index
    %c0_5 = arith.constant 0 : index
    %4 = vector.load %arg5[%c0_4, %c0_5] : memref<32x1xf32, #tpu.memory_space<vmem>>, vector<32x1xf32>
    %5 = vector.broadcast %4 : vector<32x1xf32> to vector<32x256xf32>
    %6 = arith.addf %3, %5 : vector<32x256xf32>
    %cst_6 = arith.constant 0.000000e+00 : f32
    %7 = vector.broadcast %cst_6 : f32 to vector<32x256xf32>
    %8 = arith.maximumf %6, %7 : vector<32x256xf32>
    %9 = math.absf %6 : vector<32x256xf32>
    %cst_7 = arith.constant 0.000000e+00 : f32
    %10 = vector.broadcast %cst_7 : f32 to vector<32x256xf32>
    %11 = arith.subf %10, %9 : vector<32x256xf32>
    %12 = math.exp %11 : vector<32x256xf32>
    %13 = math.log1p %12 : vector<32x256xf32>
    %14 = arith.addf %8, %13 : vector<32x256xf32>
    %15 = math.tanh %14 : vector<32x256xf32>
    %16 = arith.mulf %6, %15 : vector<32x256xf32>
    %c0_8 = arith.constant 0 : index
    %c0_9 = arith.constant 0 : index
    %c0_10 = arith.constant 0 : index
    %17 = vector.load %arg7[%c0_8, %c0_9, %c0_10] : memref<1x96x256xf32, #tpu.memory_space<vmem>>, vector<1x32x256xf32>
    %18 = vector.shape_cast %17 : vector<1x32x256xf32> to vector<32x256xf32>
    %19 = vector.shape_cast %16 : vector<32x256xf32> to vector<1x32x256xf32>
    tpu.vector_store %arg7[%c0_8, %c0_9, %c0_10], %19 {strides = array<i32>} : memref<1x96x256xf32, #tpu.memory_space<vmem>>, vector<1x32x256xf32>,
    %c0_11 = arith.constant 0 : index
    %c0_12 = arith.constant 0 : index
    %c0_13 = arith.constant 0 : index
    %20 = vector.load %arg2[%c0_11, %c0_12, %c0_13] : memref<1x32x256xf32, #tpu.memory_space<vmem>>, vector<1x32x256xf32>
    %21 = vector.shape_cast %20 : vector<1x32x256xf32> to vector<32x256xf32>
    %c0_14 = arith.constant 0 : index
    %c32 = arith.constant 32 : index
    %c0_15 = arith.constant 0 : index
    %22 = vector.load %arg7[%c0_14, %c32, %c0_15] : memref<1x96x256xf32, #tpu.memory_space<vmem>>, vector<1x32x256xf32>
    %23 = vector.shape_cast %22 : vector<1x32x256xf32> to vector<32x256xf32>
    %24 = vector.shape_cast %21 : vector<32x256xf32> to vector<1x32x256xf32>
    tpu.vector_store %arg7[%c0_14, %c32, %c0_15], %24 {strides = array<i32>} : memref<1x96x256xf32, #tpu.memory_space<vmem>>, vector<1x32x256xf32>,
    %c0_16 = arith.constant 0 : index
    %c0_17 = arith.constant 0 : index
    %c0_18 = arith.constant 0 : index
    %25 = vector.load %arg3[%c0_16, %c0_17, %c0_18] : memref<1x32x64xf32, #tpu.memory_space<vmem>>, vector<1x32x64xf32>
    %26 = vector.shape_cast %25 : vector<1x32x64xf32> to vector<32x64xf32>
    %c0_19 = arith.constant 0 : index
    %c0_20 = arith.constant 0 : index
    %27 = vector.load %arg6[%c0_19, %c0_20] : memref<64x256xf32, #tpu.memory_space<vmem>>, vector<64x256xf32>
    %cst_21 = arith.constant dense<0.000000e+00> : vector<32x256xf32>
    %28 = tpu.matmul %26, %27, %cst_21 {dimension_numbers = #tpu.dot_dimension_numbers<[1], [0], [0], [1], [0, 0, 1, 1], [], []>, precision = #tpu.contract_precision<fp32>} : vector<32x64xf32>, vector<64x256xf32>, vector<32x256xf32> -> vector<32x256xf32>
    %c0_22 = arith.constant 0 : index
    %c64 = arith.constant 64 : index
    %c0_23 = arith.constant 0 : index
    %29 = vector.load %arg7[%c0_22, %c64, %c0_23] : memref<1x96x256xf32, #tpu.memory_space<vmem>>, vector<1x32x256xf32>
    %30 = vector.shape_cast %29 : vector<1x32x256xf32> to vector<32x256xf32>
    %31 = vector.shape_cast %28 : vector<32x256xf32> to vector<1x32x256xf32>
    tpu.vector_store %arg7[%c0_22, %c64, %c0_23], %31 {strides = array<i32>} : memref<1x96x256xf32, #tpu.memory_space<vmem>>, vector<1x32x256xf32>,
    return
  }
  func.func @transform_0(%arg0: i32) -> (i32, i32, i32) {
    %c0_i32 = arith.constant 0 : i32
    %c0_i32_0 = arith.constant 0 : i32
    %c0_i32_1 = arith.constant 0 : i32
    return %arg0, %c0_i32, %c0_i32_0 : i32, i32, i32
  }
  func.func @transform_1(%arg0: i32) -> (i32, i32, i32) {
    %c0_i32 = arith.constant 0 : i32
    %c0_i32_0 = arith.constant 0 : i32
    %c0_i32_1 = arith.constant 0 : i32
    return %arg0, %c0_i32, %c0_i32_0 : i32, i32, i32
  }
  func.func @transform_2(%arg0: i32) -> (i32, i32, i32) {
    %c0_i32 = arith.constant 0 : i32
    %c0_i32_0 = arith.constant 0 : i32
    %c0_i32_1 = arith.constant 0 : i32
    return %arg0, %c0_i32, %c0_i32_0 : i32, i32, i32
  }
  func.func @transform_3(%arg0: i32) -> (i32, i32) {
    %c0_i32 = arith.constant 0 : i32
    %c0_i32_0 = arith.constant 0 : i32
    %c0_i32_1 = arith.constant 0 : i32
    return %c0_i32, %c0_i32_0 : i32, i32
  }
  func.func @transform_4(%arg0: i32) -> (i32, i32) {
    %c0_i32 = arith.constant 0 : i32
    %c0_i32_0 = arith.constant 0 : i32
    %c0_i32_1 = arith.constant 0 : i32
    return %c0_i32, %c0_i32_0 : i32, i32
  }
  func.func @transform_5(%arg0: i32) -> (i32, i32) {
    %c0_i32 = arith.constant 0 : i32
    %c0_i32_0 = arith.constant 0 : i32
    %c0_i32_1 = arith.constant 0 : i32
    return %c0_i32, %c0_i32_0 : i32, i32
  }
  func.func @transform_6(%arg0: i32) -> (i32, i32, i32) {
    %c0_i32 = arith.constant 0 : i32
    %c0_i32_0 = arith.constant 0 : i32
    %c0_i32_1 = arith.constant 0 : i32
    return %arg0, %c0_i32, %c0_i32_0 : i32, i32, i32
  }
}

</mosaic_0001>

<llo_original>
// kernel: tpu_custom_call.1
$region0: #{tpu_custom_call.1}
  #allocation0 [shape = 'u32[]', space=smem, size = 0x4, offset = 0x4, fixed_abs, tag = 'smem constant byte address 0x4 - core index']
  #allocation1 [shape = 'u32[144,128]{1,0:T(1,128)}', space=vmem, size = 0x12000, scoped, tag = 'internal scratch']
  %s0 = inlined_call_operand.hbm [shape: f32[2,288,256], index: 0, kind: input, shape index: {}]
  %s1 = inlined_call_operand.hbm [shape: f32[2,32,256], index: 1, kind: input, shape index: {}]
  %s2 = inlined_call_operand.hbm [shape: f32[2,32,64], index: 2, kind: input, shape index: {}]
  %s3 = inlined_call_operand.hbm [shape: f32[32,288], index: 3, kind: input, shape index: {}]
  %s4 = inlined_call_operand.vmem [shape: f32[32,1], index: 4, kind: input, shape index: {}]
  %s5 = inlined_call_operand.hbm [shape: f32[64,256], index: 5, kind: input, shape index: {}]
  %s6 = inlined_call_operand.hbm [shape: f32[2,96,256], index: 6, kind: output, shape index: {}]
  %s7 = sld [smem:[#allocation0]]
  $region77: #{tpu_custom_call.1} parent=0
    _
  %s9 = ssub.s32 1, %s7
  %s10 = scalar_select 0, %s9, %s7
  $region1: #{tpu_custom_call.1} parent=0
    #allocation2 [shape = 'u8[589824]{0}', space=vmem, size = 0x90000, scoped, tag = 'input window, operand 0']
    #allocation3 [shape = 's32[2]{0}', space=sflag, size = 0x8, scoped, tag = 'scoped memory for tpu_custom_call.1']
    #allocation4 [shape = 's32[2]{0}', space=sflag, size = 0x8, scoped, tag = 'scoped memory for tpu_custom_call.1']
    #allocation5 [shape = 'u8[65536]{0}', space=vmem, size = 0x10000, scoped, tag = 'input window, operand 1']
    #allocation6 [shape = 's32[2]{0}', space=sflag, size = 0x8, scoped, tag = 'scoped memory for tpu_custom_call.1']
    #allocation7 [shape = 'u8[32768]{0}', space=vmem, size = 0x8000, scoped, tag = 'input window, operand 2']
    #allocation8 [shape = 'u8[49152]{0}', space=vmem, size = 0xc000, scoped, tag = 'input window, operand 3, single buffered']
    #allocation9 [shape = 's32[1]{0}', space=sflag, size = 0x4, scoped, tag = 'scoped memory for tpu_custom_call.1']
    #allocation10 [shape = 'u8[65536]{0}', space=vmem, size = 0x10000, scoped, tag = 'input window, operand 5, single buffered']
    #allocation11 [shape = 'u8[196608]{0}', space=vmem, size = 0x30000, scoped, tag = 'output window, operand 0']
    %11 = vsyncpa [#allocation3], 0
    %s12 = scalar_lea.sflag [#allocation3], 1
    %13 = vsyncpa %s12, 0
    %14 = vsyncpa [#allocation6], 0
    %s15 = scalar_lea.sflag [#allocation6], 1
    %16 = vsyncpa %s15, 0
    %17 = vsyncpa [#allocation9], 0
    %18 = vsyncpa [#allocation4], 0
    %s19 = scalar_lea.sflag [#allocation4], 1
    %20 = vsyncpa %s19, 0
    loop: start=0, step=1, limit=4
    $region2: #{tpu_custom_call.1} parent=1 // loop_pre_header
      _
    $region3: #{tpu_custom_call.1} parent=1 // loop_header
      %s22 = sphi 0, %s26
      %p23 = scmp.ge.s32.totalorder %s22, 4
      %s32 = sphi 0, %s34
      %s35 = sphi 0, %s32
      %s36 = sphi 0, %s35
      %s52 = sphi 0, %s36
      %s58 = sphi 0, %s60
      %s61 = sphi 0, %s58
      %s62 = sphi 0, %s61
      %s78 = sphi 0, %s62
      %s84 = sphi 0, %s86
      %s87 = sphi 0, %s84
      %s88 = sphi 0, %s87
      %s104 = sphi 0, %s88
      %s108 = sphi 0, %s108
      %s110 = sphi 0, %s108
      %s111 = sphi 0, %s110
      %s125 = sphi 0, %s111
      %s129 = sphi 0, %s129
      %s131 = sphi 0, %s129
      %s132 = sphi 0, %s131
      %s146 = sphi 0, %s132
      %s150 = sphi 0, %s150
      %s152 = sphi 0, %s150
      %s153 = sphi 0, %s152
      %s167 = sphi 0, %s153
      %s173 = sphi 0, %s175
      %s176 = sphi 0, %s173
      %s177 = sphi 0, %s176
      %s193 = sphi 0, %s177
    $region4: #{tpu_custom_call.1} parent=1 // loop_header_branch
      %25 = sbr.rel (%p23) target = $region8
    $region5: #{tpu_custom_call.1} parent=1 // loop_body
      %s27 = ssub.s32 %s22, 1
      %s28 = ssub.s32 %s22, 2
      %s29 = sadd.s32 %s22, 1
      %s30 = ssub.s32 %s22, %s29
      %p31 = scmp.eq.s32.totalorder %s30, 0
      %s33 = sadd.s32 %s32, 1
      %s34 = scalar_select %p31, %s32, %s33
      %p37 = pneg %p31
      %p38 = scmp.eq.s32.totalorder %s22, 1
      %p39 = por %p37, %p38
      %p40 = scmp.ne.s32.totalorder %s32, %s35
      %p41 = scmp.eq.s32.totalorder %s22, 0
      %p42 = por %p40, %p41
      %p43 = scmp.ne.s32.totalorder %s32, %s35
      %p44 = scmp.eq.s32.totalorder %s27, 1
      %p45 = por %p43, %p44
      %p46 = scmp.ne.s32.totalorder %s35, %s36
      %p47 = scmp.eq.s32.totalorder %s27, 0
      %p48 = por %p46, %p47
      %p49 = scmp.ne.s32.totalorder %s35, %s36
      %p50 = scmp.eq.s32.totalorder %s28, 1
      %p51 = por %p49, %p50
      %p53 = scmp.ne.s32.totalorder %s36, %s52
      %p54 = scmp.eq.s32.totalorder %s28, 0
      %p55 = por %p53, %p54
      %s56 = ssub.s32 %s22, %s29
      %p57 = scmp.eq.s32.totalorder %s56, 0
      %s59 = sadd.s32 %s58, 1
      %s60 = scalar_select %p57, %s58, %s59
      %p63 = pneg %p57
      %p64 = scmp.eq.s32.totalorder %s22, 1
      %p65 = por %p63, %p64
      %p66 = scmp.ne.s32.totalorder %s58, %s61
      %p67 = scmp.eq.s32.totalorder %s22, 0
      %p68 = por %p66, %p67
      %p69 = scmp.ne.s32.totalorder %s58, %s61
      %p70 = scmp.eq.s32.totalorder %s27, 1
      %p71 = por %p69, %p70
      %p72 = scmp.ne.s32.totalorder %s61, %s62
      %p73 = scmp.eq.s32.totalorder %s27, 0
      %p74 = por %p72, %p73
      %p75 = scmp.ne.s32.totalorder %s61, %s62
      %p76 = scmp.eq.s32.totalorder %s28, 1
      %p77 = por %p75, %p76
      %p79 = scmp.ne.s32.totalorder %s62, %s78
      %p80 = scmp.eq.s32.totalorder %s28, 0
      %p81 = por %p79, %p80
      %s82 = ssub.s32 %s22, %s29
      %p83 = scmp.eq.s32.totalorder %s82, 0
      %s85 = sadd.s32 %s84, 1
      %s86 = scalar_select %p83, %s84, %s85
      %p89 = pneg %p83
      %p90 = scmp.eq.s32.totalorder %s22, 1
      %p91 = por %p89, %p90
      %p92 = scmp.ne.s32.totalorder %s84, %s87
      %p93 = scmp.eq.s32.totalorder %s22, 0
      %p94 = por %p92, %p93
      %p95 = scmp.ne.s32.totalorder %s84, %s87
      %p96 = scmp.eq.s32.totalorder %s27, 1
      %p97 = por %p95, %p96
      %p98 = scmp.ne.s32.totalorder %s87, %s88
      %p99 = scmp.eq.s32.totalorder %s27, 0
      %p100 = por %p98, %p99
      %p101 = scmp.ne.s32.totalorder %s87, %s88
      %p102 = scmp.eq.s32.totalorder %s28, 1
      %p103 = por %p101, %p102
      %p105 = scmp.ne.s32.totalorder %s88, %s104
      %p106 = scmp.eq.s32.totalorder %s28, 0
      %p107 = por %p105, %p106
      %s109 = sadd.s32 %s108, 1
      %p112 = scmp.eq.s32.totalorder %s22, 1
      %p113 = scmp.ne.s32.totalorder %s108, %s110
      %p114 = scmp.eq.s32.totalorder %s22, 0
      %p115 = por %p113, %p114
      %p116 = scmp.ne.s32.totalorder %s108, %s110
      %p117 = scmp.eq.s32.totalorder %s27, 1
      %p118 = por %p116, %p117
      %p119 = scmp.ne.s32.totalorder %s110, %s111
      %p120 = scmp.eq.s32.totalorder %s27, 0
      %p121 = por %p119, %p120
      %p122 = scmp.ne.s32.totalorder %s110, %s111
      %p123 = scmp.eq.s32.totalorder %s28, 1
      %p124 = por %p122, %p123
      %p126 = scmp.ne.s32.totalorder %s111, %s125
      %p127 = scmp.eq.s32.totalorder %s28, 0
      %p128 = por %p126, %p127
      %s130 = sadd.s32 %s129, 1
      %p133 = scmp.eq.s32.totalorder %s22, 1
      %p134 = scmp.ne.s32.totalorder %s129, %s131
      %p135 = scmp.eq.s32.totalorder %s22, 0
      %p136 = por %p134, %p135
      %p137 = scmp.ne.s32.totalorder %s129, %s131
      %p138 = scmp.eq.s32.totalorder %s27, 1
      %p139 = por %p137, %p138
      %p140 = scmp.ne.s32.totalorder %s131, %s132
      %p141 = scmp.eq.s32.totalorder %s27, 0
      %p142 = por %p140, %p141
      %p143 = scmp.ne.s32.totalorder %s131, %s132
      %p144 = scmp.eq.s32.totalorder %s28, 1
      %p145 = por %p143, %p144
      %p147 = scmp.ne.s32.totalorder %s132, %s146
      %p148 = scmp.eq.s32.totalorder %s28, 0
      %p149 = por %p147, %p148
      %s151 = sadd.s32 %s150, 1
      %p154 = scmp.eq.s32.totalorder %s22, 1
      %p155 = scmp.ne.s32.totalorder %s150, %s152
      %p156 = scmp.eq.s32.totalorder %s22, 0
      %p157 = por %p155, %p156
      %p158 = scmp.ne.s32.totalorder %s150, %s152
      %p159 = scmp.eq.s32.totalorder %s27, 1
      %p160 = por %p158, %p159
      %p161 = scmp.ne.s32.totalorder %s152, %s153
      %p162 = scmp.eq.s32.totalorder %s27, 0
      %p163 = por %p161, %p162
      %p164 = scmp.ne.s32.totalorder %s152, %s153
      %p165 = scmp.eq.s32.totalorder %s28, 1
      %p166 = por %p164, %p165
      %p168 = scmp.ne.s32.totalorder %s153, %s167
      %p169 = scmp.eq.s32.totalorder %s28, 0
      %p170 = por %p168, %p169
      %s171 = ssub.s32 %s22, %s29
      %p172 = scmp.eq.s32.totalorder %s171, 0
      %s174 = sadd.s32 %s173, 1
      %s175 = scalar_select %p172, %s173, %s174
      %p178 = pneg %p172
      %p179 = scmp.eq.s32.totalorder %s22, 1
      %p180 = por %p178, %p179
      %p181 = scmp.ne.s32.totalorder %s173, %s176
      %p182 = scmp.eq.s32.totalorder %s22, 0
      %p183 = por %p181, %p182
      %p184 = scmp.ne.s32.totalorder %s173, %s176
      %p185 = scmp.eq.s32.totalorder %s27, 1
      %p186 = por %p184, %p185
      %p187 = scmp.ne.s32.totalorder %s176, %s177
      %p188 = scmp.eq.s32.totalorder %s27, 0
      %p189 = por %p187, %p188
      %p190 = scmp.ne.s32.totalorder %s176, %s177
      %p191 = scmp.eq.s32.totalorder %s28, 1
      %p192 = por %p190, %p191
      %p194 = scmp.ne.s32.totalorder %s177, %s193
      %p195 = scmp.eq.s32.totalorder %s28, 0
      %p196 = por %p194, %p195
      %p197 = scmp.le.s32.totalorder 1, %s22
      %p198 = scmp.lt.s32.totalorder %s22, 3
      %p199 = pnand %p197, %p198
      %p200 = pneg %p199
      // Predicated region
      $region9: #{tpu_custom_call.1} parent=5 // pred_check
        _
      $region10: #{tpu_custom_call.1} parent=5 // pred_check_branch
        %202 = sbr.rel (%p199) target = $region12
      $region11: #{tpu_custom_call.1} parent=5 // pred_region
        %s203 = ssub.s32 %s22, 1
        // Predicated region
        $region13: #{tpu_custom_call.1} parent=11 // pred_check
          %p204 = pneg %p121
        $region14: #{tpu_custom_call.1} parent=11 // pred_check_branch
          %206 = sbr.rel (%p204) target = $region16
        $region15: #{tpu_custom_call.1} parent=11 // pred_region
          %s208 = ssub.s32 1536, 1536
          %209 = vsyncadd [#allocation9], %s208
          %s210 = sshll.u32 [#allocation8], 4
          %s211 = int_to_ptr.vmem [resolvable:$true] %s210
          %216 = dma.hbm_to_vmem [thread:$0]  %s3, 1536, %s211, [#allocation9], 384, 384, 24
        $region16: #{tpu_custom_call.1} parent=11 // pred_fallthru
          _
        // Predicated region
        $region17: #{tpu_custom_call.1} parent=11 // pred_check
          %p217 = pneg %p142
        $region18: #{tpu_custom_call.1} parent=11 // pred_check_branch
          %219 = sbr.rel (%p217) target = $region20
        $region19: #{tpu_custom_call.1} parent=11 // pred_region
          _
        $region20: #{tpu_custom_call.1} parent=11 // pred_fallthru
          _
        // Predicated region
        $region21: #{tpu_custom_call.1} parent=11 // pred_check
          %p220 = pneg %p163
        $region22: #{tpu_custom_call.1} parent=11 // pred_check_branch
          %222 = sbr.rel (%p220) target = $region24
        $region23: #{tpu_custom_call.1} parent=11 // pred_region
          %s224 = ssub.s32 2048, 2048
          %225 = vsyncadd [#allocation9], %s224
          %s226 = sshll.u32 [#allocation10], 4
          %s227 = int_to_ptr.vmem [resolvable:$true] %s226
          %232 = dma.hbm_to_vmem [thread:$0]  %s5, 2048, %s227, [#allocation9], 256, 256, 16
        $region24: #{tpu_custom_call.1} parent=11 // pred_fallthru
          _
      $region12: #{tpu_custom_call.1} parent=5 // pred_fallthru
        _
      %p233 = scmp.lt.s32.totalorder %s22, 2
      // Predicated region
      $region25: #{tpu_custom_call.1} parent=5 // pred_check
        %p234 = pneg %p233
      $region26: #{tpu_custom_call.1} parent=5 // pred_check_branch
        %236 = sbr.rel (%p234) target = $region28
      $region27: #{tpu_custom_call.1} parent=5 // pred_region
        // Predicated region
        $region29: #{tpu_custom_call.1} parent=27 // pred_check
          %p237 = pneg %p42
        $region30: #{tpu_custom_call.1} parent=27 // pred_check_branch
          %239 = sbr.rel (%p237) target = $region32
        $region31: #{tpu_custom_call.1} parent=27 // pred_region
          %s240 = sand.u32 %s32, 1
          %s241 = scalar_lea.sflag [#allocation3], %s240
          %s242 = sand.u32 %s32, 1
          %s243 = smul.addr %s242, 576
          %s244 = scalar_lea.vmem [#allocation2], %s243
          %s246 = ssub.s32 9216, 9216
          %247 = vsyncadd %s241, %s246
          %s248 = smul.addr %s22, 72
          %s249 = smul.addr %s248, 128
          %s250 = scalar_lea.hbm %s0, %s249
          %s251 = sshll.u32 %s244, 4
          %s252 = int_to_ptr.vmem [resolvable:$true] %s251
          %257 = dma.hbm_to_vmem [thread:$0]  %s250, 9216, %s252, %s241, 256, 256, 16
        $region32: #{tpu_custom_call.1} parent=27 // pred_fallthru
          _
        // Predicated region
        $region33: #{tpu_custom_call.1} parent=27 // pred_check
          %p258 = pneg %p68
        $region34: #{tpu_custom_call.1} parent=27 // pred_check_branch
          %260 = sbr.rel (%p258) target = $region36
        $region35: #{tpu_custom_call.1} parent=27 // pred_region
          %s261 = sand.u32 %s22, 1
          %s262 = scalar_lea.sflag [#allocation6], %s261
          %s263 = sand.u32 %s58, 1
          %s264 = smul.addr %s263, 64
          %s265 = scalar_lea.vmem [#allocation5], %s264
          %s267 = ssub.s32 1024, 1024
          %268 = vsyncadd %s262, %s267
          %s269 = smul.addr %s22, 8
          %s270 = smul.addr %s269, 128
          %s271 = scalar_lea.hbm %s1, %s270
          %s272 = sshll.u32 %s265, 4
          %s273 = int_to_ptr.vmem [resolvable:$true] %s272
          %278 = dma.hbm_to_vmem [thread:$0]  %s271, 1024, %s273, %s262, 256, 256, 16
        $region36: #{tpu_custom_call.1} parent=27 // pred_fallthru
          _
        // Predicated region
        $region37: #{tpu_custom_call.1} parent=27 // pred_check
          %p279 = pneg %p94
        $region38: #{tpu_custom_call.1} parent=27 // pred_check_branch
          %281 = sbr.rel (%p279) target = $region40
        $region39: #{tpu_custom_call.1} parent=27 // pred_region
          %s282 = sand.u32 %s22, 1
          %s283 = scalar_lea.sflag [#allocation6], %s282
          %s284 = sand.u32 %s84, 1
          %s285 = smul.addr %s284, 32
          %s286 = scalar_lea.vmem [#allocation7], %s285
          %s288 = ssub.s32 512, 512
          %289 = vsyncadd %s283, %s288
          %s290 = smul.addr %s22, 4
          %s291 = smul.addr %s290, 128
          %s292 = scalar_lea.hbm %s2, %s291
          %s293 = sshll.u32 %s286, 4
          %s294 = int_to_ptr.vmem [resolvable:$true] %s293
          %299 = dma.hbm_to_vmem [thread:$0]  %s292, 512, %s294, %s283, 128, 128, 8
        $region40: #{tpu_custom_call.1} parent=27 // pred_fallthru
          _
      $region28: #{tpu_custom_call.1} parent=5 // pred_fallthru
        _
      %p300 = scmp.le.s32.totalorder 1, %s22
      %p301 = scmp.lt.s32.totalorder %s22, 3
      %p302 = pnand %p300, %p301
      %p303 = pneg %p302
      // Predicated region
      $region41: #{tpu_custom_call.1} parent=5 // pred_check
        _
      $region42: #{tpu_custom_call.1} parent=5 // pred_check_branch
        %305 = sbr.rel (%p302) target = $region44
      $region43: #{tpu_custom_call.1} parent=5 // pred_region
        %s306 = ssub.s32 %s22, 1
        %s307 = sand.u32 %s35, 1
        %s308 = scalar_lea.sflag [#allocation3], %s307
        %s309 = sand.u32 %s35, 1
        %s310 = smul.addr %s309, 576
        %s311 = scalar_lea.vmem [#allocation2], %s310
        // Predicated region
        $region45: #{tpu_custom_call.1} parent=43 // pred_check
          %p312 = pneg %p48
        $region46: #{tpu_custom_call.1} parent=43 // pred_check_branch
          %314 = sbr.rel (%p312) target = $region48
        $region47: #{tpu_custom_call.1} parent=43 // pred_region
          %315 = dma.done %s308, 9216
        $region48: #{tpu_custom_call.1} parent=43 // pred_fallthru
          _
        %s316 = sand.u32 %s27, 1
        %s317 = scalar_lea.sflag [#allocation6], %s316
        %s318 = sand.u32 %s61, 1
        %s319 = smul.addr %s318, 64
        %s320 = scalar_lea.vmem [#allocation5], %s319
        // Predicated region
        $region49: #{tpu_custom_call.1} parent=43 // pred_check
          %p321 = pneg %p74
        $region50: #{tpu_custom_call.1} parent=43 // pred_check_branch
          %323 = sbr.rel (%p321) target = $region52
        $region51: #{tpu_custom_call.1} parent=43 // pred_region
          %324 = dma.done %s317, 1024
        $region52: #{tpu_custom_call.1} parent=43 // pred_fallthru
          _
        %s325 = sand.u32 %s27, 1
        %s326 = scalar_lea.sflag [#allocation6], %s325
        %s327 = sand.u32 %s87, 1
        %s328 = smul.addr %s327, 32
        %s329 = scalar_lea.vmem [#allocation7], %s328
        // Predicated region
        $region53: #{tpu_custom_call.1} parent=43 // pred_check
          %p330 = pneg %p100
        $region54: #{tpu_custom_call.1} parent=43 // pred_check_branch
          %332 = sbr.rel (%p330) target = $region56
        $region55: #{tpu_custom_call.1} parent=43 // pred_region
          %333 = dma.done %s326, 512
        $region56: #{tpu_custom_call.1} parent=43 // pred_fallthru
          _
        // Predicated region
        $region57: #{tpu_custom_call.1} parent=43 // pred_check
          %p334 = pneg %p121
        $region58: #{tpu_custom_call.1} parent=43 // pred_check_branch
          %336 = sbr.rel (%p334) target = $region60
        $region59: #{tpu_custom_call.1} parent=43 // pred_region
          %337 = dma.done [#allocation9], 1536
        $region60: #{tpu_custom_call.1} parent=43 // pred_fallthru
          _
        // Predicated region
        $region61: #{tpu_custom_call.1} parent=43 // pred_check
          %p338 = pneg %p163
        $region62: #{tpu_custom_call.1} parent=43 // pred_check_branch
          %340 = sbr.rel (%p338) target = $region64
        $region63: #{tpu_custom_call.1} parent=43 // pred_region
          %341 = dma.done [#allocation9], 2048
        $region64: #{tpu_custom_call.1} parent=43 // pred_fallthru
          _
        %s342 = sand.u32 %s35, 1
        %s343 = scalar_lea.sflag [#allocation3], %s342
        %s344 = sand.u32 %s35, 1
        %s345 = smul.addr %s344, 576
        %s346 = scalar_lea.vmem [#allocation2], %s345
        %p347 = pneg %p48
        %p348 = pneg %p45
        %s349 = sand.u32 %s27, 1
        %s350 = scalar_lea.sflag [#allocation6], %s349
        %s351 = sand.u32 %s61, 1
        %s352 = smul.addr %s351, 64
        %s353 = scalar_lea.vmem [#allocation5], %s352
        %p354 = pneg %p74
        %p355 = pneg %p71
        %s356 = sand.u32 %s27, 1
        %s357 = scalar_lea.sflag [#allocation6], %s356
        %s358 = sand.u32 %s87, 1
        %s359 = smul.addr %s358, 32
        %s360 = scalar_lea.vmem [#allocation7], %s359
        %p361 = pneg %p100
        %p362 = pneg %p97
        %p363 = pneg %p121
        %p364 = pneg %p118
        %p365 = pneg %p142
        %p366 = pneg %p139
        %p367 = pneg %p163
        %p368 = pneg %p160
        %p369 = pneg %p189
        %p370 = pneg %p186
        %s371 = sand.u32 %s176, 1
        %s372 = scalar_lea.sflag [#allocation4], %s371
        %s373 = sand.u32 %s176, 1
        %s374 = smul.addr %s373, 192
        %s375 = scalar_lea.vmem [#allocation11], %s374
        %v376 = vld [vmem:[#allocation8] sm:$0xff]
        %v377 = vld [vmem:[#allocation8 + $0x8] sm:$0xff]
        %v378 = vld [vmem:[#allocation8 + $0x10] sm:$0xff]
        %v379 = vld [vmem:[#allocation8 + $0x18] sm:$0xff]
        %v380 = vld [vmem:[#allocation8 + $0x20] sm:$0xff]
        %v381 = vld [vmem:[#allocation8 + $0x28] sm:$0xff]
        %v382 = vld [vmem:[#allocation8 + $0x30] sm:$0xff]
        %v383 = vld [vmem:[#allocation8 + $0x38] sm:$0xff]
        %v384 = vld [vmem:[#allocation8 + $0x40] sm:$0xff]
        %v385 = vld [vmem:[#allocation8 + $0x48] sm:$0xff]
        %v386 = vld [vmem:[#allocation8 + $0x50] sm:$0xff]
        %v387 = vld [vmem:[#allocation8 + $0x58] sm:$0xff]
        %v388 = vld [vmem:[%s311] sm:$0xff]
        %v389 = vld [vmem:[%s311 + $0x8] sm:$0xff]
        %v390 = vld [vmem:[%s311 + $0x10] sm:$0xff]
        %v391 = vld [vmem:[%s311 + $0x18] sm:$0xff]
        %v392 = vld [vmem:[%s311 + $0x20] sm:$0xff]
        %v393 = vld [vmem:[%s311 + $0x28] sm:$0xff]
        %v394 = vld [vmem:[%s311 + $0x30] sm:$0xff]
        %v395 = vld [vmem:[%s311 + $0x38] sm:$0xff]
        %v396 = vld [vmem:[%s311 + $0x40] sm:$0xff]
        %v397 = vld [vmem:[%s311 + $0x48] sm:$0xff]
        %v398 = vld [vmem:[%s311 + $0x50] sm:$0xff]
        %v399 = vld [vmem:[%s311 + $0x58] sm:$0xff]
        %v400 = vld [vmem:[%s311 + $0x60] sm:$0xff]
        %v401 = vld [vmem:[%s311 + $0x68] sm:$0xff]
        %v402 = vld [vmem:[%s311 + $0x70] sm:$0xff]
        %v403 = vld [vmem:[%s311 + $0x78] sm:$0xff]
        %v404 = vld [vmem:[%s311 + $0x80] sm:$0xff]
        %v405 = vld [vmem:[%s311 + $0x88] sm:$0xff]
        %v406 = vld [vmem:[%s311 + $0x90] sm:$0xff]
        %v407 = vld [vmem:[%s311 + $0x98] sm:$0xff]
        %v408 = vld [vmem:[%s311 + $0xa0] sm:$0xff]
        %v409 = vld [vmem:[%s311 + $0xa8] sm:$0xff]
        %v410 = vld [vmem:[%s311 + $0xb0] sm:$0xff]
        %v411 = vld [vmem:[%s311 + $0xb8] sm:$0xff]
        %v412 = vld [vmem:[%s311 + $0xc0] sm:$0xff]
        %v413 = vld [vmem:[%s311 + $0xc8] sm:$0xff]
        %v414 = vld [vmem:[%s311 + $0xd0] sm:$0xff]
        %v415 = vld [vmem:[%s311 + $0xd8] sm:$0xff]
        %v416 = vld [vmem:[%s311 + $0xe0] sm:$0xff]
        %v417 = vld [vmem:[%s311 + $0xe8] sm:$0xff]
        %v418 = vld [vmem:[%s311 + $0xf0] sm:$0xff]
        %v419 = vld [vmem:[%s311 + $0xf8] sm:$0xff]
        %v420 = vld [vmem:[%s311 + $0x100] sm:$0xff]
        %v421 = vld [vmem:[%s311 + $0x108] sm:$0xff]
        %v422 = vld [vmem:[%s311 + $0x110] sm:$0xff]
        %v423 = vld [vmem:[%s311 + $0x118] sm:$0xff]
        %v424 = vld [vmem:[%s311 + $0x120] sm:$0xff]
        %v425 = vld [vmem:[%s311 + $0x128] sm:$0xff]
        %v426 = vld [vmem:[%s311 + $0x130] sm:$0xff]
        %v427 = vld [vmem:[%s311 + $0x138] sm:$0xff]
        %v428 = vld [vmem:[%s311 + $0x140] sm:$0xff]
        %v429 = vld [vmem:[%s311 + $0x148] sm:$0xff]
        %v430 = vld [vmem:[%s311 + $0x150] sm:$0xff]
        %v431 = vld [vmem:[%s311 + $0x158] sm:$0xff]
        %v432 = vld [vmem:[%s311 + $0x160] sm:$0xff]
        %v433 = vld [vmem:[%s311 + $0x168] sm:$0xff]
        %v434 = vld [vmem:[%s311 + $0x170] sm:$0xff]
        %v435 = vld [vmem:[%s311 + $0x178] sm:$0xff]
        %v436 = vld [vmem:[%s311 + $0x180] sm:$0xff]
        %v437 = vld [vmem:[%s311 + $0x188] sm:$0xff]
        %v438 = vld [vmem:[%s311 + $0x190] sm:$0xff]
        %v439 = vld [vmem:[%s311 + $0x198] sm:$0xff]
        %v440 = vld [vmem:[%s311 + $0x1a0] sm:$0xff]
        %v441 = vld [vmem:[%s311 + $0x1a8] sm:$0xff]
        %v442 = vld [vmem:[%s311 + $0x1b0] sm:$0xff]
        %v443 = vld [vmem:[%s311 + $0x1b8] sm:$0xff]
        %v444 = vld [vmem:[%s311 + $0x1c0] sm:$0xff]
        %v445 = vld [vmem:[%s311 + $0x1c8] sm:$0xff]
        %v446 = vld [vmem:[%s311 + $0x1d0] sm:$0xff]
        %v447 = vld [vmem:[%s311 + $0x1d8] sm:$0xff]
        %v448 = vld [vmem:[%s311 + $0x1e0] sm:$0xff]
        %v449 = vld [vmem:[%s311 + $0x1e8] sm:$0xff]
        %v450 = vld [vmem:[%s311 + $0x1f0] sm:$0xff]
        %v451 = vld [vmem:[%s311 + $0x1f8] sm:$0xff]
        %v452 = vld [vmem:[%s311 + $0x200] sm:$0xff]
        %v453 = vld [vmem:[%s311 + $0x208] sm:$0xff]
        %v454 = vld [vmem:[%s311 + $0x210] sm:$0xff]
        %v455 = vld [vmem:[%s311 + $0x218] sm:$0xff]
        %v456 = vld [vmem:[%s311 + $0x220] sm:$0xff]
        %v457 = vld [vmem:[%s311 + $0x228] sm:$0xff]
        %v458 = vld [vmem:[%s311 + $0x230] sm:$0xff]
        %v459 = vld [vmem:[%s311 + $0x238] sm:$0xff]
        %v460 = vld [vmem:[%s4] sm:$0xff]
        %v461 = vld [vmem:[%s4 + $0x8] sm:$0xff]
        %v462 = vld [vmem:[%s4 + $0x10] sm:$0xff]
        %v463 = vld [vmem:[%s4 + $0x18] sm:$0xff]
        %465 = vset.pattern.permute.xlu0 0
        %466 = vperm.xlu0 %465, %v460
        %v467 = vpop.permute.xlu0 %466
        %470 = vset.pattern.permute.xlu0 0
        %471 = vperm.xlu0 %470, %v461
        %v472 = vpop.permute.xlu0 %471
        %475 = vset.pattern.permute.xlu0 0
        %476 = vperm.xlu0 %475, %v462
        %v477 = vpop.permute.xlu0 %476
        %480 = vset.pattern.permute.xlu0 0
        %481 = vperm.xlu0 %480, %v463
        %v482 = vpop.permute.xlu0 %481
        %vm484 = vcmask 261120
        %v486 = vsel %vm484, %v378, 0
        %v489 = vsel %vm484, %v381, 0
        %v492 = vsel %vm484, %v384, 0
        %v495 = vsel %vm484, %v387, 0
        %v497 = vand.u32 %v419, 4294901760
        %498 = vmatprep.subr.mxu0 %v497
        %v499 = vand.u32 %v418, 4294901760
        %500 = vmatpush1.msra.mxu0 %v499
        %v501 = vand.u32 %v417, 4294901760
        %502 = vmatprep.subr.mxu0 %v501
        %v503 = vand.u32 %v416, 4294901760
        %504 = vmatpush1.msra.mxu0 %v503
        %v505 = vand.u32 %v415, 4294901760
        %506 = vmatprep.subr.mxu0 %v505
        %v507 = vand.u32 %v414, 4294901760
        %508 = vmatpush1.msra.mxu0 %v507
        %v509 = vand.u32 %v413, 4294901760
        %510 = vmatprep.subr.mxu0 %v509
        %v511 = vand.u32 %v412, 4294901760
        %512 = vmatpush1.msra.mxu0 %v511
        %v513 = vand.u32 %v411, 4294901760
        %514 = vmatprep.subr.mxu0 %v513
        %v515 = vand.u32 %v410, 4294901760
        %516 = vmatpush1.msra.mxu0 %v515
        %v517 = vand.u32 %v409, 4294901760
        %518 = vmatprep.subr.mxu0 %v517
        %v519 = vand.u32 %v408, 4294901760
        %520 = vmatpush1.msra.mxu0 %v519
        %v521 = vand.u32 %v407, 4294901760
        %522 = vmatprep.subr.mxu0 %v521
        %v523 = vand.u32 %v406, 4294901760
        %524 = vmatpush1.msra.mxu0 %v523
        %v525 = vand.u32 %v405, 4294901760
        %526 = vmatprep.subr.mxu0 %v525
        %v527 = vand.u32 %v404, 4294901760
        %528 = vmatpush1.msra.mxu0 %v527
        %v529 = vand.u32 %v403, 4294901760
        %530 = vmatprep.subr.mxu0 %v529
        %v531 = vand.u32 %v402, 4294901760
        %532 = vmatpush1.msra.mxu0 %v531
        %v533 = vand.u32 %v401, 4294901760
        %534 = vmatprep.subr.mxu0 %v533
        %v535 = vand.u32 %v400, 4294901760
        %536 = vmatpush1.msra.mxu0 %v535
        %v537 = vand.u32 %v399, 4294901760
        %538 = vmatprep.subr.mxu0 %v537
        %v539 = vand.u32 %v398, 4294901760
        %540 = vmatpush1.msra.mxu0 %v539
        %v541 = vand.u32 %v397, 4294901760
        %542 = vmatprep.subr.mxu0 %v541
        %v543 = vand.u32 %v396, 4294901760
        %544 = vmatpush1.msra.mxu0 %v543
        %v545 = vand.u32 %v395, 4294901760
        %546 = vmatprep.subr.mxu0 %v545
        %v547 = vand.u32 %v394, 4294901760
        %548 = vmatpush1.msra.mxu0 %v547
        %v549 = vand.u32 %v393, 4294901760
        %550 = vmatprep.subr.mxu0 %v549
        %v551 = vand.u32 %v392, 4294901760
        %552 = vmatpush1.msra.mxu0 %v551
        %v553 = vand.u32 %v391, 4294901760
        %554 = vmatprep.subr.mxu0 %v553
        %v555 = vand.u32 %v390, 4294901760
        %556 = vmatpush1.msra.mxu0 %v555
        %v557 = vand.u32 %v389, 4294901760
        %558 = vmatprep.subr.mxu0 %v557
        %v559 = vand.u32 %v388, 4294901760
        %560 = vmatpush1.msra.mxu0 %v559
        %v561 = vand.u32 %v451, 4294901760
        %562 = vmatprep.subr.mxu0 %v561
        %v563 = vand.u32 %v450, 4294901760
        %564 = vmatpush2.msra.mxu0 %v563
        %v565 = vand.u32 %v449, 4294901760
        %566 = vmatprep.subr.mxu0 %v565
        %v567 = vand.u32 %v448, 4294901760
        %568 = vmatpush2.msra.mxu0 %v567
        %v569 = vand.u32 %v447, 4294901760
        %570 = vmatprep.subr.mxu0 %v569
        %v571 = vand.u32 %v446, 4294901760
        %572 = vmatpush2.msra.mxu0 %v571
        %v573 = vand.u32 %v445, 4294901760
        %574 = vmatprep.subr.mxu0 %v573
        %v575 = vand.u32 %v444, 4294901760
        %576 = vmatpush2.msra.mxu0 %v575
        %v577 = vand.u32 %v443, 4294901760
        %578 = vmatprep.subr.mxu0 %v577
        %v579 = vand.u32 %v442, 4294901760
        %580 = vmatpush2.msra.mxu0 %v579
        %v581 = vand.u32 %v441, 4294901760
        %582 = vmatprep.subr.mxu0 %v581
        %v583 = vand.u32 %v440, 4294901760
        %584 = vmatpush2.msra.mxu0 %v583
        %v585 = vand.u32 %v439, 4294901760
        %586 = vmatprep.subr.mxu0 %v585
        %v587 = vand.u32 %v438, 4294901760
        %588 = vmatpush2.msra.mxu0 %v587
        %v589 = vand.u32 %v437, 4294901760
        %590 = vmatprep.subr.mxu0 %v589
        %v591 = vand.u32 %v436, 4294901760
        %592 = vmatpush2.msra.mxu0 %v591
        %v593 = vand.u32 %v435, 4294901760
        %594 = vmatprep.subr.mxu0 %v593
        %v595 = vand.u32 %v434, 4294901760
        %596 = vmatpush2.msra.mxu0 %v595
        %v597 = vand.u32 %v433, 4294901760
        %598 = vmatprep.subr.mxu0 %v597
        %v599 = vand.u32 %v432, 4294901760
        %600 = vmatpush2.msra.mxu0 %v599
        %v601 = vand.u32 %v431, 4294901760
        %602 = vmatprep.subr.mxu0 %v601
        %v603 = vand.u32 %v430, 4294901760
        %604 = vmatpush2.msra.mxu0 %v603
        %v605 = vand.u32 %v429, 4294901760
        %606 = vmatprep.subr.mxu0 %v605
        %v607 = vand.u32 %v428, 4294901760
        %608 = vmatpush2.msra.mxu0 %v607
        %v609 = vand.u32 %v427, 4294901760
        %610 = vmatprep.subr.mxu0 %v609
        %v611 = vand.u32 %v426, 4294901760
        %612 = vmatpush2.msra.mxu0 %v611
        %v613 = vand.u32 %v425, 4294901760
        %614 = vmatprep.subr.mxu0 %v613
        %v615 = vand.u32 %v424, 4294901760
        %616 = vmatpush2.msra.mxu0 %v615
        %v617 = vand.u32 %v423, 4294901760
        %618 = vmatprep.subr.mxu0 %v617
        %v619 = vand.u32 %v422, 4294901760
        %620 = vmatpush2.msra.mxu0 %v619
        %v621 = vand.u32 %v421, 4294901760
        %622 = vmatprep.subr.mxu0 %v621
        %v623 = vand.u32 %v420, 4294901760
        %624 = vmatpush2.msra.mxu0 %v623
        %v625 = vand.u32 %v377, 4294901760
        %v626 = vsub.f32 %v377, %v625
        %v627 = vand.u32 %v626, 4294901760
        %v628 = vsub.f32 %v626, %v627
        %v629 = vand.u32 %v628, 4294901760
        %630 = vmatprep.mubr.f32.mxu0 %v629
        %v631 = vand.u32 %v376, 4294901760
        %v632 = vsub.f32 %v376, %v631
        %v633 = vand.u32 %v632, 4294901760
        %v634 = vsub.f32 %v632, %v633
        %v635 = vand.u32 %v634, 4294901760
        %636 = vmatmul.mubr.f32.gmra.mxu0 %v635
        %v637 = vpop.f32.mrf.mxu0
        %v638 = vadd.f32 %v467, %v637
        %v639 = vpop.f32.mrf.mxu0
        %v640 = vadd.f32 %v467, %v639
        %v641 = vand.u32 %v380, 4294901760
        %v642 = vsub.f32 %v380, %v641
        %v643 = vand.u32 %v642, 4294901760
        %v644 = vsub.f32 %v642, %v643
        %v645 = vand.u32 %v644, 4294901760
        %646 = vmatprep.mubr.f32.mxu0 %v645
        %v647 = vand.u32 %v379, 4294901760
        %v648 = vsub.f32 %v379, %v647
        %v649 = vand.u32 %v648, 4294901760
        %v650 = vsub.f32 %v648, %v649
        %v651 = vand.u32 %v650, 4294901760
        %652 = vmatmul.mubr.f32.gmra.mxu0 %v651
        %v653 = vpop.f32.mrf.mxu0
        %v654 = vadd.f32 %v472, %v653
        %v655 = vpop.f32.mrf.mxu0
        %v656 = vadd.f32 %v472, %v655
        %v657 = vand.u32 %v383, 4294901760
        %v658 = vsub.f32 %v383, %v657
        %v659 = vand.u32 %v658, 4294901760
        %v660 = vsub.f32 %v658, %v659
        %v661 = vand.u32 %v660, 4294901760
        %662 = vmatprep.mubr.f32.mxu0 %v661
        %v663 = vand.u32 %v382, 4294901760
        %v664 = vsub.f32 %v382, %v663
        %v665 = vand.u32 %v664, 4294901760
        %v666 = vsub.f32 %v664, %v665
        %v667 = vand.u32 %v666, 4294901760
        %668 = vmatmul.mubr.f32.gmra.mxu0 %v667
        %v669 = vpop.f32.mrf.mxu0
        %v670 = vadd.f32 %v477, %v669
        %v671 = vpop.f32.mrf.mxu0
        %v672 = vadd.f32 %v477, %v671
        %v673 = vand.u32 %v386, 4294901760
        %v674 = vsub.f32 %v386, %v673
        %v675 = vand.u32 %v674, 4294901760
        %v676 = vsub.f32 %v674, %v675
        %v677 = vand.u32 %v676, 4294901760
        %678 = vmatprep.mubr.f32.mxu0 %v677
        %v679 = vand.u32 %v385, 4294901760
        %v680 = vsub.f32 %v385, %v679
        %v681 = vand.u32 %v680, 4294901760
        %v682 = vsub.f32 %v680, %v681
        %v683 = vand.u32 %v682, 4294901760
        %684 = vmatmul.mubr.f32.gmra.mxu0 %v683
        %v685 = vpop.f32.mrf.mxu0
        %v686 = vadd.f32 %v482, %v685
        %v687 = vpop.f32.mrf.mxu0
        %v688 = vadd.f32 %v482, %v687
        %689 = vdwg.mxu0
        %v690 = vand.u32 %v419, 4294901760
        %v691 = vsub.f32 %v419, %v690
        %v692 = vand.u32 %v691, 4294901760
        %v693 = vsub.f32 %v691, %v692
        %v694 = vand.u32 %v693, 4294901760
        %695 = vmatprep.subr.mxu0 %v694
        %v696 = vand.u32 %v418, 4294901760
        %v697 = vsub.f32 %v418, %v696
        %v698 = vand.u32 %v697, 4294901760
        %v699 = vsub.f32 %v697, %v698
        %v700 = vand.u32 %v699, 4294901760
        %701 = vmatpush1.msra.mxu0 %v700
        %v702 = vand.u32 %v417, 4294901760
        %v703 = vsub.f32 %v417, %v702
        %v704 = vand.u32 %v703, 4294901760
        %v705 = vsub.f32 %v703, %v704
        %v706 = vand.u32 %v705, 4294901760
        %707 = vmatprep.subr.mxu0 %v706
        %v708 = vand.u32 %v416, 4294901760
        %v709 = vsub.f32 %v416, %v708
        %v710 = vand.u32 %v709, 4294901760
        %v711 = vsub.f32 %v709, %v710
        %v712 = vand.u32 %v711, 4294901760
        %713 = vmatpush1.msra.mxu0 %v712
        %v714 = vand.u32 %v415, 4294901760
        %v715 = vsub.f32 %v415, %v714
        %v716 = vand.u32 %v715, 4294901760
        %v717 = vsub.f32 %v715, %v716
        %v718 = vand.u32 %v717, 4294901760
        %719 = vmatprep.subr.mxu0 %v718
        %v720 = vand.u32 %v414, 4294901760
        %v721 = vsub.f32 %v414, %v720
        %v722 = vand.u32 %v721, 4294901760
        %v723 = vsub.f32 %v721, %v722
        %v724 = vand.u32 %v723, 4294901760
        %725 = vmatpush1.msra.mxu0 %v724
        %v726 = vand.u32 %v413, 4294901760
        %v727 = vsub.f32 %v413, %v726
        %v728 = vand.u32 %v727, 4294901760
        %v729 = vsub.f32 %v727, %v728
        %v730 = vand.u32 %v729, 4294901760
        %731 = vmatprep.subr.mxu0 %v730
        %v732 = vand.u32 %v412, 4294901760
        %v733 = vsub.f32 %v412, %v732
        %v734 = vand.u32 %v733, 4294901760
        %v735 = vsub.f32 %v733, %v734
        %v736 = vand.u32 %v735, 4294901760
        %737 = vmatpush1.msra.mxu0 %v736
        %v738 = vand.u32 %v411, 4294901760
        %v739 = vsub.f32 %v411, %v738
        %v740 = vand.u32 %v739, 4294901760
        %v741 = vsub.f32 %v739, %v740
        %v742 = vand.u32 %v741, 4294901760
        %743 = vmatprep.subr.mxu0 %v742
        %v744 = vand.u32 %v410, 4294901760
        %v745 = vsub.f32 %v410, %v744
        %v746 = vand.u32 %v745, 4294901760
        %v747 = vsub.f32 %v745, %v746
        %v748 = vand.u32 %v747, 4294901760
        %749 = vmatpush1.msra.mxu0 %v748
        %v750 = vand.u32 %v409, 4294901760
        %v751 = vsub.f32 %v409, %v750
        %v752 = vand.u32 %v751, 4294901760
        %v753 = vsub.f32 %v751, %v752
        %v754 = vand.u32 %v753, 4294901760
        %755 = vmatprep.subr.mxu0 %v754
        %v756 = vand.u32 %v408, 4294901760
        %v757 = vsub.f32 %v408, %v756
        %v758 = vand.u32 %v757, 4294901760
        %v759 = vsub.f32 %v757, %v758
        %v760 = vand.u32 %v759, 4294901760
        %761 = vmatpush1.msra.mxu0 %v760
        %v762 = vand.u32 %v407, 4294901760
        %v763 = vsub.f32 %v407, %v762
        %v764 = vand.u32 %v763, 4294901760
        %v765 = vsub.f32 %v763, %v764
        %v766 = vand.u32 %v765, 4294901760
        %767 = vmatprep.subr.mxu0 %v766
        %v768 = vand.u32 %v406, 4294901760
        %v769 = vsub.f32 %v406, %v768
        %v770 = vand.u32 %v769, 4294901760
        %v771 = vsub.f32 %v769, %v770
        %v772 = vand.u32 %v771, 4294901760
        %773 = vmatpush1.msra.mxu0 %v772
        %v774 = vand.u32 %v405, 4294901760
        %v775 = vsub.f32 %v405, %v774
        %v776 = vand.u32 %v775, 4294901760
        %v777 = vsub.f32 %v775, %v776
        %v778 = vand.u32 %v777, 4294901760
        %779 = vmatprep.subr.mxu0 %v778
        %v780 = vand.u32 %v404, 4294901760
        %v781 = vsub.f32 %v404, %v780
        %v782 = vand.u32 %v781, 4294901760
        %v783 = vsub.f32 %v781, %v782
        %v784 = vand.u32 %v783, 4294901760
        %785 = vmatpush1.msra.mxu0 %v784
        %v786 = vand.u32 %v403, 4294901760
        %v787 = vsub.f32 %v403, %v786
        %v788 = vand.u32 %v787, 4294901760
        %v789 = vsub.f32 %v787, %v788
        %v790 = vand.u32 %v789, 4294901760
        %791 = vmatprep.subr.mxu0 %v790
        %v792 = vand.u32 %v402, 4294901760
        %v793 = vsub.f32 %v402, %v792
        %v794 = vand.u32 %v793, 4294901760
        %v795 = vsub.f32 %v793, %v794
        %v796 = vand.u32 %v795, 4294901760
        %797 = vmatpush1.msra.mxu0 %v796
        %v798 = vand.u32 %v401, 4294901760
        %v799 = vsub.f32 %v401, %v798
        %v800 = vand.u32 %v799, 4294901760
        %v801 = vsub.f32 %v799, %v800
        %v802 = vand.u32 %v801, 4294901760
        %803 = vmatprep.subr.mxu0 %v802
        %v804 = vand.u32 %v400, 4294901760
        %v805 = vsub.f32 %v400, %v804
        %v806 = vand.u32 %v805, 4294901760
        %v807 = vsub.f32 %v805, %v806
        %v808 = vand.u32 %v807, 4294901760
        %809 = vmatpush1.msra.mxu0 %v808
        %v810 = vand.u32 %v399, 4294901760
        %v811 = vsub.f32 %v399, %v810
        %v812 = vand.u32 %v811, 4294901760
        %v813 = vsub.f32 %v811, %v812
        %v814 = vand.u32 %v813, 4294901760
        %815 = vmatprep.subr.mxu0 %v814
        %v816 = vand.u32 %v398, 4294901760
        %v817 = vsub.f32 %v398, %v816
        %v818 = vand.u32 %v817, 4294901760
        %v819 = vsub.f32 %v817, %v818
        %v820 = vand.u32 %v819, 4294901760
        %821 = vmatpush1.msra.mxu0 %v820
        %v822 = vand.u32 %v397, 4294901760
        %v823 = vsub.f32 %v397, %v822
        %v824 = vand.u32 %v823, 4294901760
        %v825 = vsub.f32 %v823, %v824
        %v826 = vand.u32 %v825, 4294901760
        %827 = vmatprep.subr.mxu0 %v826
        %v828 = vand.u32 %v396, 4294901760
        %v829 = vsub.f32 %v396, %v828
        %v830 = vand.u32 %v829, 4294901760
        %v831 = vsub.f32 %v829, %v830
        %v832 = vand.u32 %v831, 4294901760
        %833 = vmatpush1.msra.mxu0 %v832
        %v834 = vand.u32 %v395, 4294901760
        %v835 = vsub.f32 %v395, %v834
        %v836 = vand.u32 %v835, 4294901760
        %v837 = vsub.f32 %v835, %v836
        %v838 = vand.u32 %v837, 4294901760
        %839 = vmatprep.subr.mxu0 %v838
        %v840 = vand.u32 %v394, 4294901760
        %v841 = vsub.f32 %v394, %v840
        %v842 = vand.u32 %v841, 4294901760
        %v843 = vsub.f32 %v841, %v842
        %v844 = vand.u32 %v843, 4294901760
        %845 = vmatpush1.msra.mxu0 %v844
        %v846 = vand.u32 %v393, 4294901760
        %v847 = vsub.f32 %v393, %v846
        %v848 = vand.u32 %v847, 4294901760
        %v849 = vsub.f32 %v847, %v848
        %v850 = vand.u32 %v849, 4294901760
        %851 = vmatprep.subr.mxu0 %v850
        %v852 = vand.u32 %v392, 4294901760
        %v853 = vsub.f32 %v392, %v852
        %v854 = vand.u32 %v853, 4294901760
        %v855 = vsub.f32 %v853, %v854
        %v856 = vand.u32 %v855, 4294901760
        %857 = vmatpush1.msra.mxu0 %v856
        %v858 = vand.u32 %v391, 4294901760
        %v859 = vsub.f32 %v391, %v858
        %v860 = vand.u32 %v859, 4294901760
        %v861 = vsub.f32 %v859, %v860
        %v862 = vand.u32 %v861, 4294901760
        %863 = vmatprep.subr.mxu0 %v862
        %v864 = vand.u32 %v390, 4294901760
        %v865 = vsub.f32 %v390, %v864
        %v866 = vand.u32 %v865, 4294901760
        %v867 = vsub.f32 %v865, %v866
        %v868 = vand.u32 %v867, 4294901760
        %869 = vmatpush1.msra.mxu0 %v868
        %v870 = vand.u32 %v389, 4294901760
        %v871 = vsub.f32 %v389, %v870
        %v872 = vand.u32 %v871, 4294901760
        %v873 = vsub.f32 %v871, %v872
        %v874 = vand.u32 %v873, 4294901760
        %875 = vmatprep.subr.mxu0 %v874
        %v876 = vand.u32 %v388, 4294901760
        %v877 = vsub.f32 %v388, %v876
        %v878 = vand.u32 %v877, 4294901760
        %v879 = vsub.f32 %v877, %v878
        %v880 = vand.u32 %v879, 4294901760
        %881 = vmatpush1.msra.mxu0 %v880
        %v882 = vand.u32 %v451, 4294901760
        %v883 = vsub.f32 %v451, %v882
        %v884 = vand.u32 %v883, 4294901760
        %v885 = vsub.f32 %v883, %v884
        %v886 = vand.u32 %v885, 4294901760
        %887 = vmatprep.subr.mxu0 %v886
        %v888 = vand.u32 %v450, 4294901760
        %v889 = vsub.f32 %v450, %v888
        %v890 = vand.u32 %v889, 4294901760
        %v891 = vsub.f32 %v889, %v890
        %v892 = vand.u32 %v891, 4294901760
        %893 = vmatpush2.msra.mxu0 %v892
        %v894 = vand.u32 %v449, 4294901760
        %v895 = vsub.f32 %v449, %v894
        %v896 = vand.u32 %v895, 4294901760
        %v897 = vsub.f32 %v895, %v896
        %v898 = vand.u32 %v897, 4294901760
        %899 = vmatprep.subr.mxu0 %v898
        %v900 = vand.u32 %v448, 4294901760
        %v901 = vsub.f32 %v448, %v900
        %v902 = vand.u32 %v901, 4294901760
        %v903 = vsub.f32 %v901, %v902
        %v904 = vand.u32 %v903, 4294901760
        %905 = vmatpush2.msra.mxu0 %v904
        %v906 = vand.u32 %v447, 4294901760
        %v907 = vsub.f32 %v447, %v906
        %v908 = vand.u32 %v907, 4294901760
        %v909 = vsub.f32 %v907, %v908
        %v910 = vand.u32 %v909, 4294901760
        %911 = vmatprep.subr.mxu0 %v910
        %v912 = vand.u32 %v446, 4294901760
        %v913 = vsub.f32 %v446, %v912
        %v914 = vand.u32 %v913, 4294901760
        %v915 = vsub.f32 %v913, %v914
        %v916 = vand.u32 %v915, 4294901760
        %917 = vmatpush2.msra.mxu0 %v916
        %v918 = vand.u32 %v445, 4294901760
        %v919 = vsub.f32 %v445, %v918
        %v920 = vand.u32 %v919, 4294901760
        %v921 = vsub.f32 %v919, %v920
        %v922 = vand.u32 %v921, 4294901760
        %923 = vmatprep.subr.mxu0 %v922
        %v924 = vand.u32 %v444, 4294901760
        %v925 = vsub.f32 %v444, %v924
        %v926 = vand.u32 %v925, 4294901760
        %v927 = vsub.f32 %v925, %v926
        %v928 = vand.u32 %v927, 4294901760
        %929 = vmatpush2.msra.mxu0 %v928
        %v930 = vand.u32 %v443, 4294901760
        %v931 = vsub.f32 %v443, %v930
        %v932 = vand.u32 %v931, 4294901760
        %v933 = vsub.f32 %v931, %v932
        %v934 = vand.u32 %v933, 4294901760
        %935 = vmatprep.subr.mxu0 %v934
        %v936 = vand.u32 %v442, 4294901760
        %v937 = vsub.f32 %v442, %v936
        %v938 = vand.u32 %v937, 4294901760
        %v939 = vsub.f32 %v937, %v938
        %v940 = vand.u32 %v939, 4294901760
        %941 = vmatpush2.msra.mxu0 %v940
        %v942 = vand.u32 %v441, 4294901760
        %v943 = vsub.f32 %v441, %v942
        %v944 = vand.u32 %v943, 4294901760
        %v945 = vsub.f32 %v943, %v944
        %v946 = vand.u32 %v945, 4294901760
        %947 = vmatprep.subr.mxu0 %v946
        %v948 = vand.u32 %v440, 4294901760
        %v949 = vsub.f32 %v440, %v948
        %v950 = vand.u32 %v949, 4294901760
        %v951 = vsub.f32 %v949, %v950
        %v952 = vand.u32 %v951, 4294901760
        %953 = vmatpush2.msra.mxu0 %v952
        %v954 = vand.u32 %v439, 4294901760
        %v955 = vsub.f32 %v439, %v954
        %v956 = vand.u32 %v955, 4294901760
        %v957 = vsub.f32 %v955, %v956
        %v958 = vand.u32 %v957, 4294901760
        %959 = vmatprep.subr.mxu0 %v958
        %v960 = vand.u32 %v438, 4294901760
        %v961 = vsub.f32 %v438, %v960
        %v962 = vand.u32 %v961, 4294901760
        %v963 = vsub.f32 %v961, %v962
        %v964 = vand.u32 %v963, 4294901760
        %965 = vmatpush2.msra.mxu0 %v964
        %v966 = vand.u32 %v437, 4294901760
        %v967 = vsub.f32 %v437, %v966
        %v968 = vand.u32 %v967, 4294901760
        %v969 = vsub.f32 %v967, %v968
        %v970 = vand.u32 %v969, 4294901760
        %971 = vmatprep.subr.mxu0 %v970
        %v972 = vand.u32 %v436, 4294901760
        %v973 = vsub.f32 %v436, %v972
        %v974 = vand.u32 %v973, 4294901760
        %v975 = vsub.f32 %v973, %v974
        %v976 = vand.u32 %v975, 4294901760
        %977 = vmatpush2.msra.mxu0 %v976
        %v978 = vand.u32 %v435, 4294901760
        %v979 = vsub.f32 %v435, %v978
        %v980 = vand.u32 %v979, 4294901760
        %v981 = vsub.f32 %v979, %v980
        %v982 = vand.u32 %v981, 4294901760
        %983 = vmatprep.subr.mxu0 %v982
        %v984 = vand.u32 %v434, 4294901760
        %v985 = vsub.f32 %v434, %v984
        %v986 = vand.u32 %v985, 4294901760
        %v987 = vsub.f32 %v985, %v986
        %v988 = vand.u32 %v987, 4294901760
        %989 = vmatpush2.msra.mxu0 %v988
        %v990 = vand.u32 %v433, 4294901760
        %v991 = vsub.f32 %v433, %v990
        %v992 = vand.u32 %v991, 4294901760
        %v993 = vsub.f32 %v991, %v992
        %v994 = vand.u32 %v993, 4294901760
        %995 = vmatprep.subr.mxu0 %v994
        %v996 = vand.u32 %v432, 4294901760
        %v997 = vsub.f32 %v432, %v996
        %v998 = vand.u32 %v997, 4294901760
        %v999 = vsub.f32 %v997, %v998
        %v1000 = vand.u32 %v999, 4294901760
        %1001 = vmatpush2.msra.mxu0 %v1000
        %v1002 = vand.u32 %v431, 4294901760
        %v1003 = vsub.f32 %v431, %v1002
        %v1004 = vand.u32 %v1003, 4294901760
        %v1005 = vsub.f32 %v1003, %v1004
        %v1006 = vand.u32 %v1005, 4294901760
        %1007 = vmatprep.subr.mxu0 %v1006
        %v1008 = vand.u32 %v430, 4294901760
        %v1009 = vsub.f32 %v430, %v1008
        %v1010 = vand.u32 %v1009, 4294901760
        %v1011 = vsub.f32 %v1009, %v1010
        %v1012 = vand.u32 %v1011, 4294901760
        %1013 = vmatpush2.msra.mxu0 %v1012
        %v1014 = vand.u32 %v429, 4294901760
        %v1015 = vsub.f32 %v429, %v1014
        %v1016 = vand.u32 %v1015, 4294901760
        %v1017 = vsub.f32 %v1015, %v1016
        %v1018 = vand.u32 %v1017, 4294901760
        %1019 = vmatprep.subr.mxu0 %v1018
        %v1020 = vand.u32 %v428, 4294901760
        %v1021 = vsub.f32 %v428, %v1020
        %v1022 = vand.u32 %v1021, 4294901760
        %v1023 = vsub.f32 %v1021, %v1022
        %v1024 = vand.u32 %v1023, 4294901760
        %1025 = vmatpush2.msra.mxu0 %v1024
        %v1026 = vand.u32 %v427, 4294901760
        %v1027 = vsub.f32 %v427, %v1026
        %v1028 = vand.u32 %v1027, 4294901760
        %v1029 = vsub.f32 %v1027, %v1028
        %v1030 = vand.u32 %v1029, 4294901760
        %1031 = vmatprep.subr.mxu0 %v1030
        %v1032 = vand.u32 %v426, 4294901760
        %v1033 = vsub.f32 %v426, %v1032
        %v1034 = vand.u32 %v1033, 4294901760
        %v1035 = vsub.f32 %v1033, %v1034
        %v1036 = vand.u32 %v1035, 4294901760
        %1037 = vmatpush2.msra.mxu0 %v1036
        %v1038 = vand.u32 %v425, 4294901760
        %v1039 = vsub.f32 %v425, %v1038
        %v1040 = vand.u32 %v1039, 4294901760
        %v1041 = vsub.f32 %v1039, %v1040
        %v1042 = vand.u32 %v1041, 4294901760
        %1043 = vmatprep.subr.mxu0 %v1042
        %v1044 = vand.u32 %v424, 4294901760
        %v1045 = vsub.f32 %v424, %v1044
        %v1046 = vand.u32 %v1045, 4294901760
        %v1047 = vsub.f32 %v1045, %v1046
        %v1048 = vand.u32 %v1047, 4294901760
        %1049 = vmatpush2.msra.mxu0 %v1048
        %v1050 = vand.u32 %v423, 4294901760
        %v1051 = vsub.f32 %v423, %v1050
        %v1052 = vand.u32 %v1051, 4294901760
        %v1053 = vsub.f32 %v1051, %v1052
        %v1054 = vand.u32 %v1053, 4294901760
        %1055 = vmatprep.subr.mxu0 %v1054
        %v1056 = vand.u32 %v422, 4294901760
        %v1057 = vsub.f32 %v422, %v1056
        %v1058 = vand.u32 %v1057, 4294901760
        %v1059 = vsub.f32 %v1057, %v1058
        %v1060 = vand.u32 %v1059, 4294901760
        %1061 = vmatpush2.msra.mxu0 %v1060
        %v1062 = vand.u32 %v421, 4294901760
        %v1063 = vsub.f32 %v421, %v1062
        %v1064 = vand.u32 %v1063, 4294901760
        %v1065 = vsub.f32 %v1063, %v1064
        %v1066 = vand.u32 %v1065, 4294901760
        %1067 = vmatprep.subr.mxu0 %v1066
        %v1068 = vand.u32 %v420, 4294901760
        %v1069 = vsub.f32 %v420, %v1068
        %v1070 = vand.u32 %v1069, 4294901760
        %v1071 = vsub.f32 %v1069, %v1070
        %v1072 = vand.u32 %v1071, 4294901760
        %1073 = vmatpush2.msra.mxu0 %v1072
        %v1074 = vand.u32 %v377, 4294901760
        %1075 = vmatprep.mubr.f32.mxu0 %v1074
        %v1076 = vand.u32 %v376, 4294901760
        %1077 = vmatmul.mubr.f32.gmra.mxu0 %v1076
        %v1078 = vpop.f32.mrf.mxu0
        %v1079 = vadd.f32 %v638, %v1078
        %v1080 = vpop.f32.mrf.mxu0
        %v1081 = vadd.f32 %v640, %v1080
        %v1082 = vand.u32 %v380, 4294901760
        %1083 = vmatprep.mubr.f32.mxu0 %v1082
        %v1084 = vand.u32 %v379, 4294901760
        %1085 = vmatmul.mubr.f32.gmra.mxu0 %v1084
        %v1086 = vpop.f32.mrf.mxu0
        %v1087 = vadd.f32 %v654, %v1086
        %v1088 = vpop.f32.mrf.mxu0
        %v1089 = vadd.f32 %v656, %v1088
        %v1090 = vand.u32 %v383, 4294901760
        %1091 = vmatprep.mubr.f32.mxu0 %v1090
        %v1092 = vand.u32 %v382, 4294901760
        %1093 = vmatmul.mubr.f32.gmra.mxu0 %v1092
        %v1094 = vpop.f32.mrf.mxu0
        %v1095 = vadd.f32 %v670, %v1094
        %v1096 = vpop.f32.mrf.mxu0
        %v1097 = vadd.f32 %v672, %v1096
        %v1098 = vand.u32 %v386, 4294901760
        %1099 = vmatprep.mubr.f32.mxu0 %v1098
        %v1100 = vand.u32 %v385, 4294901760
        %1101 = vmatmul.mubr.f32.gmra.mxu0 %v1100
        %v1102 = vpop.f32.mrf.mxu0
        %v1103 = vadd.f32 %v686, %v1102
        %v1104 = vpop.f32.mrf.mxu0
        %v1105 = vadd.f32 %v688, %v1104
        %1106 = vdwg.mxu0
        %v1107 = vand.u32 %v419, 4294901760
        %v1108 = vsub.f32 %v419, %v1107
        %1109 = vmatprep.subr.mxu0 %v1108
        %v1110 = vand.u32 %v418, 4294901760
        %v1111 = vsub.f32 %v418, %v1110
        %1112 = vmatpush1.msra.mxu0 %v1111
        %v1113 = vand.u32 %v417, 4294901760
        %v1114 = vsub.f32 %v417, %v1113
        %1115 = vmatprep.subr.mxu0 %v1114
        %v1116 = vand.u32 %v416, 4294901760
        %v1117 = vsub.f32 %v416, %v1116
        %1118 = vmatpush1.msra.mxu0 %v1117
        %v1119 = vand.u32 %v415, 4294901760
        %v1120 = vsub.f32 %v415, %v1119
        %1121 = vmatprep.subr.mxu0 %v1120
        %v1122 = vand.u32 %v414, 4294901760
        %v1123 = vsub.f32 %v414, %v1122
        %1124 = vmatpush1.msra.mxu0 %v1123
        %v1125 = vand.u32 %v413, 4294901760
        %v1126 = vsub.f32 %v413, %v1125
        %1127 = vmatprep.subr.mxu0 %v1126
        %v1128 = vand.u32 %v412, 4294901760
        %v1129 = vsub.f32 %v412, %v1128
        %1130 = vmatpush1.msra.mxu0 %v1129
        %v1131 = vand.u32 %v411, 4294901760
        %v1132 = vsub.f32 %v411, %v1131
        %1133 = vmatprep.subr.mxu0 %v1132
        %v1134 = vand.u32 %v410, 4294901760
        %v1135 = vsub.f32 %v410, %v1134
        %1136 = vmatpush1.msra.mxu0 %v1135
        %v1137 = vand.u32 %v409, 4294901760
        %v1138 = vsub.f32 %v409, %v1137
        %1139 = vmatprep.subr.mxu0 %v1138
        %v1140 = vand.u32 %v408, 4294901760
        %v1141 = vsub.f32 %v408, %v1140
        %1142 = vmatpush1.msra.mxu0 %v1141
        %v1143 = vand.u32 %v407, 4294901760
        %v1144 = vsub.f32 %v407, %v1143
        %1145 = vmatprep.subr.mxu0 %v1144
        %v1146 = vand.u32 %v406, 4294901760
        %v1147 = vsub.f32 %v406, %v1146
        %1148 = vmatpush1.msra.mxu0 %v1147
        %v1149 = vand.u32 %v405, 4294901760
        %v1150 = vsub.f32 %v405, %v1149
        %1151 = vmatprep.subr.mxu0 %v1150
        %v1152 = vand.u32 %v404, 4294901760
        %v1153 = vsub.f32 %v404, %v1152
        %1154 = vmatpush1.msra.mxu0 %v1153
        %v1155 = vand.u32 %v403, 4294901760
        %v1156 = vsub.f32 %v403, %v1155
        %1157 = vmatprep.subr.mxu0 %v1156
        %v1158 = vand.u32 %v402, 4294901760
        %v1159 = vsub.f32 %v402, %v1158
        %1160 = vmatpush1.msra.mxu0 %v1159
        %v1161 = vand.u32 %v401, 4294901760
        %v1162 = vsub.f32 %v401, %v1161
        %1163 = vmatprep.subr.mxu0 %v1162
        %v1164 = vand.u32 %v400, 4294901760
        %v1165 = vsub.f32 %v400, %v1164
        %1166 = vmatpush1.msra.mxu0 %v1165
        %v1167 = vand.u32 %v399, 4294901760
        %v1168 = vsub.f32 %v399, %v1167
        %1169 = vmatprep.subr.mxu0 %v1168
        %v1170 = vand.u32 %v398, 4294901760
        %v1171 = vsub.f32 %v398, %v1170
        %1172 = vmatpush1.msra.mxu0 %v1171
        %v1173 = vand.u32 %v397, 4294901760
        %v1174 = vsub.f32 %v397, %v1173
        %1175 = vmatprep.subr.mxu0 %v1174
        %v1176 = vand.u32 %v396, 4294901760
        %v1177 = vsub.f32 %v396, %v1176
        %1178 = vmatpush1.msra.mxu0 %v1177
        %v1179 = vand.u32 %v395, 4294901760
        %v1180 = vsub.f32 %v395, %v1179
        %1181 = vmatprep.subr.mxu0 %v1180
        %v1182 = vand.u32 %v394, 4294901760
        %v1183 = vsub.f32 %v394, %v1182
        %1184 = vmatpush1.msra.mxu0 %v1183
        %v1185 = vand.u32 %v393, 4294901760
        %v1186 = vsub.f32 %v393, %v1185
        %1187 = vmatprep.subr.mxu0 %v1186
        %v1188 = vand.u32 %v392, 4294901760
        %v1189 = vsub.f32 %v392, %v1188
        %1190 = vmatpush1.msra.mxu0 %v1189
        %v1191 = vand.u32 %v391, 4294901760
        %v1192 = vsub.f32 %v391, %v1191
        %1193 = vmatprep.subr.mxu0 %v1192
        %v1194 = vand.u32 %v390, 4294901760
        %v1195 = vsub.f32 %v390, %v1194
        %1196 = vmatpush1.msra.mxu0 %v1195
        %v1197 = vand.u32 %v389, 4294901760
        %v1198 = vsub.f32 %v389, %v1197
        %1199 = vmatprep.subr.mxu0 %v1198
        %v1200 = vand.u32 %v388, 4294901760
        %v1201 = vsub.f32 %v388, %v1200
        %1202 = vmatpush1.msra.mxu0 %v1201
        %v1203 = vand.u32 %v451, 4294901760
        %v1204 = vsub.f32 %v451, %v1203
        %1205 = vmatprep.subr.mxu0 %v1204
        %v1206 = vand.u32 %v450, 4294901760
        %v1207 = vsub.f32 %v450, %v1206
        %1208 = vmatpush2.msra.mxu0 %v1207
        %v1209 = vand.u32 %v449, 4294901760
        %v1210 = vsub.f32 %v449, %v1209
        %1211 = vmatprep.subr.mxu0 %v1210
        %v1212 = vand.u32 %v448, 4294901760
        %v1213 = vsub.f32 %v448, %v1212
        %1214 = vmatpush2.msra.mxu0 %v1213
        %v1215 = vand.u32 %v447, 4294901760
        %v1216 = vsub.f32 %v447, %v1215
        %1217 = vmatprep.subr.mxu0 %v1216
        %v1218 = vand.u32 %v446, 4294901760
        %v1219 = vsub.f32 %v446, %v1218
        %1220 = vmatpush2.msra.mxu0 %v1219
        %v1221 = vand.u32 %v445, 4294901760
        %v1222 = vsub.f32 %v445, %v1221
        %1223 = vmatprep.subr.mxu0 %v1222
        %v1224 = vand.u32 %v444, 4294901760
        %v1225 = vsub.f32 %v444, %v1224
        %1226 = vmatpush2.msra.mxu0 %v1225
        %v1227 = vand.u32 %v443, 4294901760
        %v1228 = vsub.f32 %v443, %v1227
        %1229 = vmatprep.subr.mxu0 %v1228
        %v1230 = vand.u32 %v442, 4294901760
        %v1231 = vsub.f32 %v442, %v1230
        %1232 = vmatpush2.msra.mxu0 %v1231
        %v1233 = vand.u32 %v441, 4294901760
        %v1234 = vsub.f32 %v441, %v1233
        %1235 = vmatprep.subr.mxu0 %v1234
        %v1236 = vand.u32 %v440, 4294901760
        %v1237 = vsub.f32 %v440, %v1236
        %1238 = vmatpush2.msra.mxu0 %v1237
        %v1239 = vand.u32 %v439, 4294901760
        %v1240 = vsub.f32 %v439, %v1239
        %1241 = vmatprep.subr.mxu0 %v1240
        %v1242 = vand.u32 %v438, 4294901760
        %v1243 = vsub.f32 %v438, %v1242
        %1244 = vmatpush2.msra.mxu0 %v1243
        %v1245 = vand.u32 %v437, 4294901760
        %v1246 = vsub.f32 %v437, %v1245
        %1247 = vmatprep.subr.mxu0 %v1246
        %v1248 = vand.u32 %v436, 4294901760
        %v1249 = vsub.f32 %v436, %v1248
        %1250 = vmatpush2.msra.mxu0 %v1249
        %v1251 = vand.u32 %v435, 4294901760
        %v1252 = vsub.f32 %v435, %v1251
        %1253 = vmatprep.subr.mxu0 %v1252
        %v1254 = vand.u32 %v434, 4294901760
        %v1255 = vsub.f32 %v434, %v1254
        %1256 = vmatpush2.msra.mxu0 %v1255
        %v1257 = vand.u32 %v433, 4294901760
        %v1258 = vsub.f32 %v433, %v1257
        %1259 = vmatprep.subr.mxu0 %v1258
        %v1260 = vand.u32 %v432, 4294901760
        %v1261 = vsub.f32 %v432, %v1260
        %1262 = vmatpush2.msra.mxu0 %v1261
        %v1263 = vand.u32 %v431, 4294901760
        %v1264 = vsub.f32 %v431, %v1263
        %1265 = vmatprep.subr.mxu0 %v1264
        %v1266 = vand.u32 %v430, 4294901760
        %v1267 = vsub.f32 %v430, %v1266
        %1268 = vmatpush2.msra.mxu0 %v1267
        %v1269 = vand.u32 %v429, 4294901760
        %v1270 = vsub.f32 %v429, %v1269
        %1271 = vmatprep.subr.mxu0 %v1270
        %v1272 = vand.u32 %v428, 4294901760
        %v1273 = vsub.f32 %v428, %v1272
        %1274 = vmatpush2.msra.mxu0 %v1273
        %v1275 = vand.u32 %v427, 4294901760
        %v1276 = vsub.f32 %v427, %v1275
        %1277 = vmatprep.subr.mxu0 %v1276
        %v1278 = vand.u32 %v426, 4294901760
        %v1279 = vsub.f32 %v426, %v1278
        %1280 = vmatpush2.msra.mxu0 %v1279
        %v1281 = vand.u32 %v425, 4294901760
        %v1282 = vsub.f32 %v425, %v1281
        %1283 = vmatprep.subr.mxu0 %v1282
        %v1284 = vand.u32 %v424, 4294901760
        %v1285 = vsub.f32 %v424, %v1284
        %1286 = vmatpush2.msra.mxu0 %v1285
        %v1287 = vand.u32 %v423, 4294901760
        %v1288 = vsub.f32 %v423, %v1287
        %1289 = vmatprep.subr.mxu0 %v1288
        %v1290 = vand.u32 %v422, 4294901760
        %v1291 = vsub.f32 %v422, %v1290
        %1292 = vmatpush2.msra.mxu0 %v1291
        %v1293 = vand.u32 %v421, 4294901760
        %v1294 = vsub.f32 %v421, %v1293
        %1295 = vmatprep.subr.mxu0 %v1294
        %v1296 = vand.u32 %v420, 4294901760
        %v1297 = vsub.f32 %v420, %v1296
        %1298 = vmatpush2.msra.mxu0 %v1297
        %v1299 = vand.u32 %v377, 4294901760
        %v1300 = vsub.f32 %v377, %v1299
        %1301 = vmatprep.mubr.f32.mxu0 %v1300
        %v1302 = vand.u32 %v376, 4294901760
        %v1303 = vsub.f32 %v376, %v1302
        %1304 = vmatmul.mubr.f32.gmra.mxu0 %v1303
        %v1305 = vpop.f32.mrf.mxu0
        %v1306 = vadd.f32 %v1079, %v1305
        %v1307 = vpop.f32.mrf.mxu0
        %v1308 = vadd.f32 %v1081, %v1307
        %v1309 = vand.u32 %v380, 4294901760
        %v1310 = vsub.f32 %v380, %v1309
        %1311 = vmatprep.mubr.f32.mxu0 %v1310
        %v1312 = vand.u32 %v379, 4294901760
        %v1313 = vsub.f32 %v379, %v1312
        %1314 = vmatmul.mubr.f32.gmra.mxu0 %v1313
        %v1315 = vpop.f32.mrf.mxu0
        %v1316 = vadd.f32 %v1087, %v1315
        %v1317 = vpop.f32.mrf.mxu0
        %v1318 = vadd.f32 %v1089, %v1317
        %v1319 = vand.u32 %v383, 4294901760
        %v1320 = vsub.f32 %v383, %v1319
        %1321 = vmatprep.mubr.f32.mxu0 %v1320
        %v1322 = vand.u32 %v382, 4294901760
        %v1323 = vsub.f32 %v382, %v1322
        %1324 = vmatmul.mubr.f32.gmra.mxu0 %v1323
        %v1325 = vpop.f32.mrf.mxu0
        %v1326 = vadd.f32 %v1095, %v1325
        %v1327 = vpop.f32.mrf.mxu0
        %v1328 = vadd.f32 %v1097, %v1327
        %v1329 = vand.u32 %v386, 4294901760
        %v1330 = vsub.f32 %v386, %v1329
        %1331 = vmatprep.mubr.f32.mxu0 %v1330
        %v1332 = vand.u32 %v385, 4294901760
        %v1333 = vsub.f32 %v385, %v1332
        %1334 = vmatmul.mubr.f32.gmra.mxu0 %v1333
        %v1335 = vpop.f32.mrf.mxu0
        %v1336 = vadd.f32 %v1103, %v1335
        %v1337 = vpop.f32.mrf.mxu0
        %v1338 = vadd.f32 %v1105, %v1337
        %1339 = vdwg.mxu0
        %v1340 = vand.u32 %v419, 4294901760
        %1341 = vmatprep.subr.mxu0 %v1340
        %v1342 = vand.u32 %v418, 4294901760
        %1343 = vmatpush1.msra.mxu0 %v1342
        %v1344 = vand.u32 %v417, 4294901760
        %1345 = vmatprep.subr.mxu0 %v1344
        %v1346 = vand.u32 %v416, 4294901760
        %1347 = vmatpush1.msra.mxu0 %v1346
        %v1348 = vand.u32 %v415, 4294901760
        %1349 = vmatprep.subr.mxu0 %v1348
        %v1350 = vand.u32 %v414, 4294901760
        %1351 = vmatpush1.msra.mxu0 %v1350
        %v1352 = vand.u32 %v413, 4294901760
        %1353 = vmatprep.subr.mxu0 %v1352
        %v1354 = vand.u32 %v412, 4294901760
        %1355 = vmatpush1.msra.mxu0 %v1354
        %v1356 = vand.u32 %v411, 4294901760
        %1357 = vmatprep.subr.mxu0 %v1356
        %v1358 = vand.u32 %v410, 4294901760
        %1359 = vmatpush1.msra.mxu0 %v1358
        %v1360 = vand.u32 %v409, 4294901760
        %1361 = vmatprep.subr.mxu0 %v1360
        %v1362 = vand.u32 %v408, 4294901760
        %1363 = vmatpush1.msra.mxu0 %v1362
        %v1364 = vand.u32 %v407, 4294901760
        %1365 = vmatprep.subr.mxu0 %v1364
        %v1366 = vand.u32 %v406, 4294901760
        %1367 = vmatpush1.msra.mxu0 %v1366
        %v1368 = vand.u32 %v405, 4294901760
        %1369 = vmatprep.subr.mxu0 %v1368
        %v1370 = vand.u32 %v404, 4294901760
        %1371 = vmatpush1.msra.mxu0 %v1370
        %v1372 = vand.u32 %v403, 4294901760
        %1373 = vmatprep.subr.mxu0 %v1372
        %v1374 = vand.u32 %v402, 4294901760
        %1375 = vmatpush1.msra.mxu0 %v1374
        %v1376 = vand.u32 %v401, 4294901760
        %1377 = vmatprep.subr.mxu0 %v1376
        %v1378 = vand.u32 %v400, 4294901760
        %1379 = vmatpush1.msra.mxu0 %v1378
        %v1380 = vand.u32 %v399, 4294901760
        %1381 = vmatprep.subr.mxu0 %v1380
        %v1382 = vand.u32 %v398, 4294901760
        %1383 = vmatpush1.msra.mxu0 %v1382
        %v1384 = vand.u32 %v397, 4294901760
        %1385 = vmatprep.subr.mxu0 %v1384
        %v1386 = vand.u32 %v396, 4294901760
        %1387 = vmatpush1.msra.mxu0 %v1386
        %v1388 = vand.u32 %v395, 4294901760
        %1389 = vmatprep.subr.mxu0 %v1388
        %v1390 = vand.u32 %v394, 4294901760
        %1391 = vmatpush1.msra.mxu0 %v1390
        %v1392 = vand.u32 %v393, 4294901760
        %1393 = vmatprep.subr.mxu0 %v1392
        %v1394 = vand.u32 %v392, 4294901760
        %1395 = vmatpush1.msra.mxu0 %v1394
        %v1396 = vand.u32 %v391, 4294901760
        %1397 = vmatprep.subr.mxu0 %v1396
        %v1398 = vand.u32 %v390, 4294901760
        %1399 = vmatpush1.msra.mxu0 %v1398
        %v1400 = vand.u32 %v389, 4294901760
        %1401 = vmatprep.subr.mxu0 %v1400
        %v1402 = vand.u32 %v388, 4294901760
        %1403 = vmatpush1.msra.mxu0 %v1402
        %v1404 = vand.u32 %v451, 4294901760
        %1405 = vmatprep.subr.mxu0 %v1404
        %v1406 = vand.u32 %v450, 4294901760
        %1407 = vmatpush2.msra.mxu0 %v1406
        %v1408 = vand.u32 %v449, 4294901760
        %1409 = vmatprep.subr.mxu0 %v1408
        %v1410 = vand.u32 %v448, 4294901760
        %1411 = vmatpush2.msra.mxu0 %v1410
        %v1412 = vand.u32 %v447, 4294901760
        %1413 = vmatprep.subr.mxu0 %v1412
        %v1414 = vand.u32 %v446, 4294901760
        %1415 = vmatpush2.msra.mxu0 %v1414
        %v1416 = vand.u32 %v445, 4294901760
        %1417 = vmatprep.subr.mxu0 %v1416
        %v1418 = vand.u32 %v444, 4294901760
        %1419 = vmatpush2.msra.mxu0 %v1418
        %v1420 = vand.u32 %v443, 4294901760
        %1421 = vmatprep.subr.mxu0 %v1420
        %v1422 = vand.u32 %v442, 4294901760
        %1423 = vmatpush2.msra.mxu0 %v1422
        %v1424 = vand.u32 %v441, 4294901760
        %1425 = vmatprep.subr.mxu0 %v1424
        %v1426 = vand.u32 %v440, 4294901760
        %1427 = vmatpush2.msra.mxu0 %v1426
        %v1428 = vand.u32 %v439, 4294901760
        %1429 = vmatprep.subr.mxu0 %v1428
        %v1430 = vand.u32 %v438, 4294901760
        %1431 = vmatpush2.msra.mxu0 %v1430
        %v1432 = vand.u32 %v437, 4294901760
        %1433 = vmatprep.subr.mxu0 %v1432
        %v1434 = vand.u32 %v436, 4294901760
        %1435 = vmatpush2.msra.mxu0 %v1434
        %v1436 = vand.u32 %v435, 4294901760
        %1437 = vmatprep.subr.mxu0 %v1436
        %v1438 = vand.u32 %v434, 4294901760
        %1439 = vmatpush2.msra.mxu0 %v1438
        %v1440 = vand.u32 %v433, 4294901760
        %1441 = vmatprep.subr.mxu0 %v1440
        %v1442 = vand.u32 %v432, 4294901760
        %1443 = vmatpush2.msra.mxu0 %v1442
        %v1444 = vand.u32 %v431, 4294901760
        %1445 = vmatprep.subr.mxu0 %v1444
        %v1446 = vand.u32 %v430, 4294901760
        %1447 = vmatpush2.msra.mxu0 %v1446
        %v1448 = vand.u32 %v429, 4294901760
        %1449 = vmatprep.subr.mxu0 %v1448
        %v1450 = vand.u32 %v428, 4294901760
        %1451 = vmatpush2.msra.mxu0 %v1450
        %v1452 = vand.u32 %v427, 4294901760
        %1453 = vmatprep.subr.mxu0 %v1452
        %v1454 = vand.u32 %v426, 4294901760
        %1455 = vmatpush2.msra.mxu0 %v1454
        %v1456 = vand.u32 %v425, 4294901760
        %1457 = vmatprep.subr.mxu0 %v1456
        %v1458 = vand.u32 %v424, 4294901760
        %1459 = vmatpush2.msra.mxu0 %v1458
        %v1460 = vand.u32 %v423, 4294901760
        %1461 = vmatprep.subr.mxu0 %v1460
        %v1462 = vand.u32 %v422, 4294901760
        %1463 = vmatpush2.msra.mxu0 %v1462
        %v1464 = vand.u32 %v421, 4294901760
        %1465 = vmatprep.subr.mxu0 %v1464
        %v1466 = vand.u32 %v420, 4294901760
        %1467 = vmatpush2.msra.mxu0 %v1466
        %v1468 = vand.u32 %v377, 4294901760
        %v1469 = vsub.f32 %v377, %v1468
        %v1470 = vand.u32 %v1469, 4294901760
        %1471 = vmatprep.mubr.f32.mxu0 %v1470
        %v1472 = vand.u32 %v376, 4294901760
        %v1473 = vsub.f32 %v376, %v1472
        %v1474 = vand.u32 %v1473, 4294901760
        %1475 = vmatmul.mubr.f32.gmra.mxu0 %v1474
        %v1476 = vpop.f32.mrf.mxu0
        %v1477 = vadd.f32 %v1306, %v1476
        %v1478 = vpop.f32.mrf.mxu0
        %v1479 = vadd.f32 %v1308, %v1478
        %v1480 = vand.u32 %v380, 4294901760
        %v1481 = vsub.f32 %v380, %v1480
        %v1482 = vand.u32 %v1481, 4294901760
        %1483 = vmatprep.mubr.f32.mxu0 %v1482
        %v1484 = vand.u32 %v379, 4294901760
        %v1485 = vsub.f32 %v379, %v1484
        %v1486 = vand.u32 %v1485, 4294901760
        %1487 = vmatmul.mubr.f32.gmra.mxu0 %v1486
        %v1488 = vpop.f32.mrf.mxu0
        %v1489 = vadd.f32 %v1316, %v1488
        %v1490 = vpop.f32.mrf.mxu0
        %v1491 = vadd.f32 %v1318, %v1490
        %v1492 = vand.u32 %v383, 4294901760
        %v1493 = vsub.f32 %v383, %v1492
        %v1494 = vand.u32 %v1493, 4294901760
        %1495 = vmatprep.mubr.f32.mxu0 %v1494
        %v1496 = vand.u32 %v382, 4294901760
        %v1497 = vsub.f32 %v382, %v1496
        %v1498 = vand.u32 %v1497, 4294901760
        %1499 = vmatmul.mubr.f32.gmra.mxu0 %v1498
        %v1500 = vpop.f32.mrf.mxu0
        %v1501 = vadd.f32 %v1326, %v1500
        %v1502 = vpop.f32.mrf.mxu0
        %v1503 = vadd.f32 %v1328, %v1502
        %v1504 = vand.u32 %v386, 4294901760
        %v1505 = vsub.f32 %v386, %v1504
        %v1506 = vand.u32 %v1505, 4294901760
        %1507 = vmatprep.mubr.f32.mxu0 %v1506
        %v1508 = vand.u32 %v385, 4294901760
        %v1509 = vsub.f32 %v385, %v1508
        %v1510 = vand.u32 %v1509, 4294901760
        %1511 = vmatmul.mubr.f32.gmra.mxu0 %v1510
        %v1512 = vpop.f32.mrf.mxu0
        %v1513 = vadd.f32 %v1336, %v1512
        %v1514 = vpop.f32.mrf.mxu0
        %v1515 = vadd.f32 %v1338, %v1514
        %1516 = vdwg.mxu0
        %v1517 = vand.u32 %v419, 4294901760
        %v1518 = vsub.f32 %v419, %v1517
        %v1519 = vand.u32 %v1518, 4294901760
        %1520 = vmatprep.subr.mxu0 %v1519
        %v1521 = vand.u32 %v418, 4294901760
        %v1522 = vsub.f32 %v418, %v1521
        %v1523 = vand.u32 %v1522, 4294901760
        %1524 = vmatpush1.msra.mxu0 %v1523
        %v1525 = vand.u32 %v417, 4294901760
        %v1526 = vsub.f32 %v417, %v1525
        %v1527 = vand.u32 %v1526, 4294901760
        %1528 = vmatprep.subr.mxu0 %v1527
        %v1529 = vand.u32 %v416, 4294901760
        %v1530 = vsub.f32 %v416, %v1529
        %v1531 = vand.u32 %v1530, 4294901760
        %1532 = vmatpush1.msra.mxu0 %v1531
        %v1533 = vand.u32 %v415, 4294901760
        %v1534 = vsub.f32 %v415, %v1533
        %v1535 = vand.u32 %v1534, 4294901760
        %1536 = vmatprep.subr.mxu0 %v1535
        %v1537 = vand.u32 %v414, 4294901760
        %v1538 = vsub.f32 %v414, %v1537
        %v1539 = vand.u32 %v1538, 4294901760
        %1540 = vmatpush1.msra.mxu0 %v1539
        %v1541 = vand.u32 %v413, 4294901760
        %v1542 = vsub.f32 %v413, %v1541
        %v1543 = vand.u32 %v1542, 4294901760
        %1544 = vmatprep.subr.mxu0 %v1543
        %v1545 = vand.u32 %v412, 4294901760
        %v1546 = vsub.f32 %v412, %v1545
        %v1547 = vand.u32 %v1546, 4294901760
        %1548 = vmatpush1.msra.mxu0 %v1547
        %v1549 = vand.u32 %v411, 4294901760
        %v1550 = vsub.f32 %v411, %v1549
        %v1551 = vand.u32 %v1550, 4294901760
        %1552 = vmatprep.subr.mxu0 %v1551
        %v1553 = vand.u32 %v410, 4294901760
        %v1554 = vsub.f32 %v410, %v1553
        %v1555 = vand.u32 %v1554, 4294901760
        %1556 = vmatpush1.msra.mxu0 %v1555
        %v1557 = vand.u32 %v409, 4294901760
        %v1558 = vsub.f32 %v409, %v1557
        %v1559 = vand.u32 %v1558, 4294901760
        %1560 = vmatprep.subr.mxu0 %v1559
        %v1561 = vand.u32 %v408, 4294901760
        %v1562 = vsub.f32 %v408, %v1561
        %v1563 = vand.u32 %v1562, 4294901760
        %1564 = vmatpush1.msra.mxu0 %v1563
        %v1565 = vand.u32 %v407, 4294901760
        %v1566 = vsub.f32 %v407, %v1565
        %v1567 = vand.u32 %v1566, 4294901760
        %1568 = vmatprep.subr.mxu0 %v1567
        %v1569 = vand.u32 %v406, 4294901760
        %v1570 = vsub.f32 %v406, %v1569
        %v1571 = vand.u32 %v1570, 4294901760
        %1572 = vmatpush1.msra.mxu0 %v1571
        %v1573 = vand.u32 %v405, 4294901760
        %v1574 = vsub.f32 %v405, %v1573
        %v1575 = vand.u32 %v1574, 4294901760
        %1576 = vmatprep.subr.mxu0 %v1575
        %v1577 = vand.u32 %v404, 4294901760
        %v1578 = vsub.f32 %v404, %v1577
        %v1579 = vand.u32 %v1578, 4294901760
        %1580 = vmatpush1.msra.mxu0 %v1579
        %v1581 = vand.u32 %v403, 4294901760
        %v1582 = vsub.f32 %v403, %v1581
        %v1583 = vand.u32 %v1582, 4294901760
        %1584 = vmatprep.subr.mxu0 %v1583
        %v1585 = vand.u32 %v402, 4294901760
        %v1586 = vsub.f32 %v402, %v1585
        %v1587 = vand.u32 %v1586, 4294901760
        %1588 = vmatpush1.msra.mxu0 %v1587
        %v1589 = vand.u32 %v401, 4294901760
        %v1590 = vsub.f32 %v401, %v1589
        %v1591 = vand.u32 %v1590, 4294901760
        %1592 = vmatprep.subr.mxu0 %v1591
        %v1593 = vand.u32 %v400, 4294901760
        %v1594 = vsub.f32 %v400, %v1593
        %v1595 = vand.u32 %v1594, 4294901760
        %1596 = vmatpush1.msra.mxu0 %v1595
        %v1597 = vand.u32 %v399, 4294901760
        %v1598 = vsub.f32 %v399, %v1597
        %v1599 = vand.u32 %v1598, 4294901760
        %1600 = vmatprep.subr.mxu0 %v1599
        %v1601 = vand.u32 %v398, 4294901760
        %v1602 = vsub.f32 %v398, %v1601
        %v1603 = vand.u32 %v1602, 4294901760
        %1604 = vmatpush1.msra.mxu0 %v1603
        %v1605 = vand.u32 %v397, 4294901760
        %v1606 = vsub.f32 %v397, %v1605
        %v1607 = vand.u32 %v1606, 4294901760
        %1608 = vmatprep.subr.mxu0 %v1607
        %v1609 = vand.u32 %v396, 4294901760
        %v1610 = vsub.f32 %v396, %v1609
        %v1611 = vand.u32 %v1610, 4294901760
        %1612 = vmatpush1.msra.mxu0 %v1611
        %v1613 = vand.u32 %v395, 4294901760
        %v1614 = vsub.f32 %v395, %v1613
        %v1615 = vand.u32 %v1614, 4294901760
        %1616 = vmatprep.subr.mxu0 %v1615
        %v1617 = vand.u32 %v394, 4294901760
        %v1618 = vsub.f32 %v394, %v1617
        %v1619 = vand.u32 %v1618, 4294901760
        %1620 = vmatpush1.msra.mxu0 %v1619
        %v1621 = vand.u32 %v393, 4294901760
        %v1622 = vsub.f32 %v393, %v1621
        %v1623 = vand.u32 %v1622, 4294901760
        %1624 = vmatprep.subr.mxu0 %v1623
        %v1625 = vand.u32 %v392, 4294901760
        %v1626 = vsub.f32 %v392, %v1625
        %v1627 = vand.u32 %v1626, 4294901760
        %1628 = vmatpush1.msra.mxu0 %v1627
        %v1629 = vand.u32 %v391, 4294901760
        %v1630 = vsub.f32 %v391, %v1629
        %v1631 = vand.u32 %v1630, 4294901760
        %1632 = vmatprep.subr.mxu0 %v1631
        %v1633 = vand.u32 %v390, 4294901760
        %v1634 = vsub.f32 %v390, %v1633
        %v1635 = vand.u32 %v1634, 4294901760
        %1636 = vmatpush1.msra.mxu0 %v1635
        %v1637 = vand.u32 %v389, 4294901760
        %v1638 = vsub.f32 %v389, %v1637
        %v1639 = vand.u32 %v1638, 4294901760
        %1640 = vmatprep.subr.mxu0 %v1639
        %v1641 = vand.u32 %v388, 4294901760
        %v1642 = vsub.f32 %v388, %v1641
        %v1643 = vand.u32 %v1642, 4294901760
        %1644 = vmatpush1.msra.mxu0 %v1643
        %v1645 = vand.u32 %v451, 4294901760
        %v1646 = vsub.f32 %v451, %v1645
        %v1647 = vand.u32 %v1646, 4294901760
        %1648 = vmatprep.subr.mxu0 %v1647
        %v1649 = vand.u32 %v450, 4294901760
        %v1650 = vsub.f32 %v450, %v1649
        %v1651 = vand.u32 %v1650, 4294901760
        %1652 = vmatpush2.msra.mxu0 %v1651
        %v1653 = vand.u32 %v449, 4294901760
        %v1654 = vsub.f32 %v449, %v1653
        %v1655 = vand.u32 %v1654, 4294901760
        %1656 = vmatprep.subr.mxu0 %v1655
        %v1657 = vand.u32 %v448, 4294901760
        %v1658 = vsub.f32 %v448, %v1657
        %v1659 = vand.u32 %v1658, 4294901760
        %1660 = vmatpush2.msra.mxu0 %v1659
        %v1661 = vand.u32 %v447, 4294901760
        %v1662 = vsub.f32 %v447, %v1661
        %v1663 = vand.u32 %v1662, 4294901760
        %1664 = vmatprep.subr.mxu0 %v1663
        %v1665 = vand.u32 %v446, 4294901760
        %v1666 = vsub.f32 %v446, %v1665
        %v1667 = vand.u32 %v1666, 4294901760
        %1668 = vmatpush2.msra.mxu0 %v1667
        %v1669 = vand.u32 %v445, 4294901760
        %v1670 = vsub.f32 %v445, %v1669
        %v1671 = vand.u32 %v1670, 4294901760
        %1672 = vmatprep.subr.mxu0 %v1671
        %v1673 = vand.u32 %v444, 4294901760
        %v1674 = vsub.f32 %v444, %v1673
        %v1675 = vand.u32 %v1674, 4294901760
        %1676 = vmatpush2.msra.mxu0 %v1675
        %v1677 = vand.u32 %v443, 4294901760
        %v1678 = vsub.f32 %v443, %v1677
        %v1679 = vand.u32 %v1678, 4294901760
        %1680 = vmatprep.subr.mxu0 %v1679
        %v1681 = vand.u32 %v442, 4294901760
        %v1682 = vsub.f32 %v442, %v1681
        %v1683 = vand.u32 %v1682, 4294901760
        %1684 = vmatpush2.msra.mxu0 %v1683
        %v1685 = vand.u32 %v441, 4294901760
        %v1686 = vsub.f32 %v441, %v1685
        %v1687 = vand.u32 %v1686, 4294901760
        %1688 = vmatprep.subr.mxu0 %v1687
        %v1689 = vand.u32 %v440, 4294901760
        %v1690 = vsub.f32 %v440, %v1689
        %v1691 = vand.u32 %v1690, 4294901760
        %1692 = vmatpush2.msra.mxu0 %v1691
        %v1693 = vand.u32 %v439, 4294901760
        %v1694 = vsub.f32 %v439, %v1693
        %v1695 = vand.u32 %v1694, 4294901760
        %1696 = vmatprep.subr.mxu0 %v1695
        %v1697 = vand.u32 %v438, 4294901760
        %v1698 = vsub.f32 %v438, %v1697
        %v1699 = vand.u32 %v1698, 4294901760
        %1700 = vmatpush2.msra.mxu0 %v1699
        %v1701 = vand.u32 %v437, 4294901760
        %v1702 = vsub.f32 %v437, %v1701
        %v1703 = vand.u32 %v1702, 4294901760
        %1704 = vmatprep.subr.mxu0 %v1703
        %v1705 = vand.u32 %v436, 4294901760
        %v1706 = vsub.f32 %v436, %v1705
        %v1707 = vand.u32 %v1706, 4294901760
        %1708 = vmatpush2.msra.mxu0 %v1707
        %v1709 = vand.u32 %v435, 4294901760
        %v1710 = vsub.f32 %v435, %v1709
        %v1711 = vand.u32 %v1710, 4294901760
        %1712 = vmatprep.subr.mxu0 %v1711
        %v1713 = vand.u32 %v434, 4294901760
        %v1714 = vsub.f32 %v434, %v1713
        %v1715 = vand.u32 %v1714, 4294901760
        %1716 = vmatpush2.msra.mxu0 %v1715
        %v1717 = vand.u32 %v433, 4294901760
        %v1718 = vsub.f32 %v433, %v1717
        %v1719 = vand.u32 %v1718, 4294901760
        %1720 = vmatprep.subr.mxu0 %v1719
        %v1721 = vand.u32 %v432, 4294901760
        %v1722 = vsub.f32 %v432, %v1721
        %v1723 = vand.u32 %v1722, 4294901760
        %1724 = vmatpush2.msra.mxu0 %v1723
        %v1725 = vand.u32 %v431, 4294901760
        %v1726 = vsub.f32 %v431, %v1725
        %v1727 = vand.u32 %v1726, 4294901760
        %1728 = vmatprep.subr.mxu0 %v1727
        %v1729 = vand.u32 %v430, 4294901760
        %v1730 = vsub.f32 %v430, %v1729
        %v1731 = vand.u32 %v1730, 4294901760
        %1732 = vmatpush2.msra.mxu0 %v1731
        %v1733 = vand.u32 %v429, 4294901760
        %v1734 = vsub.f32 %v429, %v1733
        %v1735 = vand.u32 %v1734, 4294901760
        %1736 = vmatprep.subr.mxu0 %v1735
        %v1737 = vand.u32 %v428, 4294901760
        %v1738 = vsub.f32 %v428, %v1737
        %v1739 = vand.u32 %v1738, 4294901760
        %1740 = vmatpush2.msra.mxu0 %v1739
        %v1741 = vand.u32 %v427, 4294901760
        %v1742 = vsub.f32 %v427, %v1741
        %v1743 = vand.u32 %v1742, 4294901760
        %1744 = vmatprep.subr.mxu0 %v1743
        %v1745 = vand.u32 %v426, 4294901760
        %v1746 = vsub.f32 %v426, %v1745
        %v1747 = vand.u32 %v1746, 4294901760
        %1748 = vmatpush2.msra.mxu0 %v1747
        %v1749 = vand.u32 %v425, 4294901760
        %v1750 = vsub.f32 %v425, %v1749
        %v1751 = vand.u32 %v1750, 4294901760
        %1752 = vmatprep.subr.mxu0 %v1751
        %v1753 = vand.u32 %v424, 4294901760
        %v1754 = vsub.f32 %v424, %v1753
        %v1755 = vand.u32 %v1754, 4294901760
        %1756 = vmatpush2.msra.mxu0 %v1755
        %v1757 = vand.u32 %v423, 4294901760
        %v1758 = vsub.f32 %v423, %v1757
        %v1759 = vand.u32 %v1758, 4294901760
        %1760 = vmatprep.subr.mxu0 %v1759
        %v1761 = vand.u32 %v422, 4294901760
        %v1762 = vsub.f32 %v422, %v1761
        %v1763 = vand.u32 %v1762, 4294901760
        %1764 = vmatpush2.msra.mxu0 %v1763
        %v1765 = vand.u32 %v421, 4294901760
        %v1766 = vsub.f32 %v421, %v1765
        %v1767 = vand.u32 %v1766, 4294901760
        %1768 = vmatprep.subr.mxu0 %v1767
        %v1769 = vand.u32 %v420, 4294901760
        %v1770 = vsub.f32 %v420, %v1769
        %v1771 = vand.u32 %v1770, 4294901760
        %1772 = vmatpush2.msra.mxu0 %v1771
        %v1773 = vand.u32 %v377, 4294901760
        %1774 = vmatprep.mubr.f32.mxu0 %v1773
        %v1775 = vand.u32 %v376, 4294901760
        %1776 = vmatmul.mubr.f32.gmra.mxu0 %v1775
        %v1777 = vpop.f32.mrf.mxu0
        %v1778 = vadd.f32 %v1477, %v1777
        %v1779 = vpop.f32.mrf.mxu0
        %v1780 = vadd.f32 %v1479, %v1779
        %v1781 = vand.u32 %v380, 4294901760
        %1782 = vmatprep.mubr.f32.mxu0 %v1781
        %v1783 = vand.u32 %v379, 4294901760
        %1784 = vmatmul.mubr.f32.gmra.mxu0 %v1783
        %v1785 = vpop.f32.mrf.mxu0
        %v1786 = vadd.f32 %v1489, %v1785
        %v1787 = vpop.f32.mrf.mxu0
        %v1788 = vadd.f32 %v1491, %v1787
        %v1789 = vand.u32 %v383, 4294901760
        %1790 = vmatprep.mubr.f32.mxu0 %v1789
        %v1791 = vand.u32 %v382, 4294901760
        %1792 = vmatmul.mubr.f32.gmra.mxu0 %v1791
        %v1793 = vpop.f32.mrf.mxu0
        %v1794 = vadd.f32 %v1501, %v1793
        %v1795 = vpop.f32.mrf.mxu0
        %v1796 = vadd.f32 %v1503, %v1795
        %v1797 = vand.u32 %v386, 4294901760
        %1798 = vmatprep.mubr.f32.mxu0 %v1797
        %v1799 = vand.u32 %v385, 4294901760
        %1800 = vmatmul.mubr.f32.gmra.mxu0 %v1799
        %v1801 = vpop.f32.mrf.mxu0
        %v1802 = vadd.f32 %v1513, %v1801
        %v1803 = vpop.f32.mrf.mxu0
        %v1804 = vadd.f32 %v1515, %v1803
        %1805 = vdwg.mxu0
        %v1806 = vand.u32 %v419, 4294901760
        %1807 = vmatprep.subr.mxu0 %v1806
        %v1808 = vand.u32 %v418, 4294901760
        %1809 = vmatpush1.msra.mxu0 %v1808
        %v1810 = vand.u32 %v417, 4294901760
        %1811 = vmatprep.subr.mxu0 %v1810
        %v1812 = vand.u32 %v416, 4294901760
        %1813 = vmatpush1.msra.mxu0 %v1812
        %v1814 = vand.u32 %v415, 4294901760
        %1815 = vmatprep.subr.mxu0 %v1814
        %v1816 = vand.u32 %v414, 4294901760
        %1817 = vmatpush1.msra.mxu0 %v1816
        %v1818 = vand.u32 %v413, 4294901760
        %1819 = vmatprep.subr.mxu0 %v1818
        %v1820 = vand.u32 %v412, 4294901760
        %1821 = vmatpush1.msra.mxu0 %v1820
        %v1822 = vand.u32 %v411, 4294901760
        %1823 = vmatprep.subr.mxu0 %v1822
        %v1824 = vand.u32 %v410, 4294901760
        %1825 = vmatpush1.msra.mxu0 %v1824
        %v1826 = vand.u32 %v409, 4294901760
        %1827 = vmatprep.subr.mxu0 %v1826
        %v1828 = vand.u32 %v408, 4294901760
        %1829 = vmatpush1.msra.mxu0 %v1828
        %v1830 = vand.u32 %v407, 4294901760
        %1831 = vmatprep.subr.mxu0 %v1830
        %v1832 = vand.u32 %v406, 4294901760
        %1833 = vmatpush1.msra.mxu0 %v1832
        %v1834 = vand.u32 %v405, 4294901760
        %1835 = vmatprep.subr.mxu0 %v1834
        %v1836 = vand.u32 %v404, 4294901760
        %1837 = vmatpush1.msra.mxu0 %v1836
        %v1838 = vand.u32 %v403, 4294901760
        %1839 = vmatprep.subr.mxu0 %v1838
        %v1840 = vand.u32 %v402, 4294901760
        %1841 = vmatpush1.msra.mxu0 %v1840
        %v1842 = vand.u32 %v401, 4294901760
        %1843 = vmatprep.subr.mxu0 %v1842
        %v1844 = vand.u32 %v400, 4294901760
        %1845 = vmatpush1.msra.mxu0 %v1844
        %v1846 = vand.u32 %v399, 4294901760
        %1847 = vmatprep.subr.mxu0 %v1846
        %v1848 = vand.u32 %v398, 4294901760
        %1849 = vmatpush1.msra.mxu0 %v1848
        %v1850 = vand.u32 %v397, 4294901760
        %1851 = vmatprep.subr.mxu0 %v1850
        %v1852 = vand.u32 %v396, 4294901760
        %1853 = vmatpush1.msra.mxu0 %v1852
        %v1854 = vand.u32 %v395, 4294901760
        %1855 = vmatprep.subr.mxu0 %v1854
        %v1856 = vand.u32 %v394, 4294901760
        %1857 = vmatpush1.msra.mxu0 %v1856
        %v1858 = vand.u32 %v393, 4294901760
        %1859 = vmatprep.subr.mxu0 %v1858
        %v1860 = vand.u32 %v392, 4294901760
        %1861 = vmatpush1.msra.mxu0 %v1860
        %v1862 = vand.u32 %v391, 4294901760
        %1863 = vmatprep.subr.mxu0 %v1862
        %v1864 = vand.u32 %v390, 4294901760
        %1865 = vmatpush1.msra.mxu0 %v1864
        %v1866 = vand.u32 %v389, 4294901760
        %1867 = vmatprep.subr.mxu0 %v1866
        %v1868 = vand.u32 %v388, 4294901760
        %1869 = vmatpush1.msra.mxu0 %v1868
        %v1870 = vand.u32 %v451, 4294901760
        %1871 = vmatprep.subr.mxu0 %v1870
        %v1872 = vand.u32 %v450, 4294901760
        %1873 = vmatpush2.msra.mxu0 %v1872
        %v1874 = vand.u32 %v449, 4294901760
        %1875 = vmatprep.subr.mxu0 %v1874
        %v1876 = vand.u32 %v448, 4294901760
        %1877 = vmatpush2.msra.mxu0 %v1876
        %v1878 = vand.u32 %v447, 4294901760
        %1879 = vmatprep.subr.mxu0 %v1878
        %v1880 = vand.u32 %v446, 4294901760
        %1881 = vmatpush2.msra.mxu0 %v1880
        %v1882 = vand.u32 %v445, 4294901760
        %1883 = vmatprep.subr.mxu0 %v1882
        %v1884 = vand.u32 %v444, 4294901760
        %1885 = vmatpush2.msra.mxu0 %v1884
        %v1886 = vand.u32 %v443, 4294901760
        %1887 = vmatprep.subr.mxu0 %v1886
        %v1888 = vand.u32 %v442, 4294901760
        %1889 = vmatpush2.msra.mxu0 %v1888
        %v1890 = vand.u32 %v441, 4294901760
        %1891 = vmatprep.subr.mxu0 %v1890
        %v1892 = vand.u32 %v440, 4294901760
        %1893 = vmatpush2.msra.mxu0 %v1892
        %v1894 = vand.u32 %v439, 4294901760
        %1895 = vmatprep.subr.mxu0 %v1894
        %v1896 = vand.u32 %v438, 4294901760
        %1897 = vmatpush2.msra.mxu0 %v1896
        %v1898 = vand.u32 %v437, 4294901760
        %1899 = vmatprep.subr.mxu0 %v1898
        %v1900 = vand.u32 %v436, 4294901760
        %1901 = vmatpush2.msra.mxu0 %v1900
        %v1902 = vand.u32 %v435, 4294901760
        %1903 = vmatprep.subr.mxu0 %v1902
        %v1904 = vand.u32 %v434, 4294901760
        %1905 = vmatpush2.msra.mxu0 %v1904
        %v1906 = vand.u32 %v433, 4294901760
        %1907 = vmatprep.subr.mxu0 %v1906
        %v1908 = vand.u32 %v432, 4294901760
        %1909 = vmatpush2.msra.mxu0 %v1908
        %v1910 = vand.u32 %v431, 4294901760
        %1911 = vmatprep.subr.mxu0 %v1910
        %v1912 = vand.u32 %v430, 4294901760
        %1913 = vmatpush2.msra.mxu0 %v1912
        %v1914 = vand.u32 %v429, 4294901760
        %1915 = vmatprep.subr.mxu0 %v1914
        %v1916 = vand.u32 %v428, 4294901760
        %1917 = vmatpush2.msra.mxu0 %v1916
        %v1918 = vand.u32 %v427, 4294901760
        %1919 = vmatprep.subr.mxu0 %v1918
        %v1920 = vand.u32 %v426, 4294901760
        %1921 = vmatpush2.msra.mxu0 %v1920
        %v1922 = vand.u32 %v425, 4294901760
        %1923 = vmatprep.subr.mxu0 %v1922
        %v1924 = vand.u32 %v424, 4294901760
        %1925 = vmatpush2.msra.mxu0 %v1924
        %v1926 = vand.u32 %v423, 4294901760
        %1927 = vmatprep.subr.mxu0 %v1926
        %v1928 = vand.u32 %v422, 4294901760
        %1929 = vmatpush2.msra.mxu0 %v1928
        %v1930 = vand.u32 %v421, 4294901760
        %1931 = vmatprep.subr.mxu0 %v1930
        %v1932 = vand.u32 %v420, 4294901760
        %1933 = vmatpush2.msra.mxu0 %v1932
        %v1934 = vand.u32 %v377, 4294901760
        %1935 = vmatprep.mubr.f32.mxu0 %v1934
        %v1936 = vand.u32 %v376, 4294901760
        %1937 = vmatmul.mubr.f32.gmra.mxu0 %v1936
        %v1938 = vpop.f32.mrf.mxu0
        %v1939 = vadd.f32 %v1778, %v1938
        %v1940 = vpop.f32.mrf.mxu0
        %v1941 = vadd.f32 %v1780, %v1940
        %v1942 = vand.u32 %v380, 4294901760
        %1943 = vmatprep.mubr.f32.mxu0 %v1942
        %v1944 = vand.u32 %v379, 4294901760
        %1945 = vmatmul.mubr.f32.gmra.mxu0 %v1944
        %v1946 = vpop.f32.mrf.mxu0
        %v1947 = vadd.f32 %v1786, %v1946
        %v1948 = vpop.f32.mrf.mxu0
        %v1949 = vadd.f32 %v1788, %v1948
        %v1950 = vand.u32 %v383, 4294901760
        %1951 = vmatprep.mubr.f32.mxu0 %v1950
        %v1952 = vand.u32 %v382, 4294901760
        %1953 = vmatmul.mubr.f32.gmra.mxu0 %v1952
        %v1954 = vpop.f32.mrf.mxu0
        %v1955 = vadd.f32 %v1794, %v1954
        %v1956 = vpop.f32.mrf.mxu0
        %v1957 = vadd.f32 %v1796, %v1956
        %v1958 = vand.u32 %v386, 4294901760
        %1959 = vmatprep.mubr.f32.mxu0 %v1958
        %v1960 = vand.u32 %v385, 4294901760
        %1961 = vmatmul.mubr.f32.gmra.mxu0 %v1960
        %v1962 = vpop.f32.mrf.mxu0
        %v1963 = vadd.f32 %v1802, %v1962
        %v1964 = vpop.f32.mrf.mxu0
        %v1965 = vadd.f32 %v1804, %v1964
        %1966 = vdwg.mxu0
        %1967 = vmatprep.subr.mxu0 0.0
        %1968 = vmatpush1.msra.mxu0 0.0
        %1969 = vmatprep.subr.mxu0 0.0
        %1970 = vmatpush1.msra.mxu0 0.0
        %1971 = vmatprep.subr.mxu0 0.0
        %1972 = vmatpush1.msra.mxu0 0.0
        %1973 = vmatprep.subr.mxu0 0.0
        %1974 = vmatpush1.msra.mxu0 0.0
        %1975 = vmatprep.subr.mxu0 0.0
        %1976 = vmatpush1.msra.mxu0 0.0
        %1977 = vmatprep.subr.mxu0 0.0
        %1978 = vmatpush1.msra.mxu0 0.0
        %1979 = vmatprep.subr.mxu0 0.0
        %1980 = vmatpush1.msra.mxu0 0.0
        %1981 = vmatprep.subr.mxu0 0.0
        %1982 = vmatpush1.msra.mxu0 0.0
        %1983 = vmatprep.subr.mxu0 0.0
        %1984 = vmatpush1.msra.mxu0 0.0
        %1985 = vmatprep.subr.mxu0 0.0
        %1986 = vmatpush1.msra.mxu0 0.0
        %1987 = vmatprep.subr.mxu0 0.0
        %1988 = vmatpush1.msra.mxu0 0.0
        %1989 = vmatprep.subr.mxu0 0.0
        %1990 = vmatpush1.msra.mxu0 0.0
        %v1991 = vand.u32 %v459, 4294901760
        %1992 = vmatprep.subr.mxu0 %v1991
        %v1993 = vand.u32 %v458, 4294901760
        %1994 = vmatpush1.msra.mxu0 %v1993
        %v1995 = vand.u32 %v457, 4294901760
        %1996 = vmatprep.subr.mxu0 %v1995
        %v1997 = vand.u32 %v456, 4294901760
        %1998 = vmatpush1.msra.mxu0 %v1997
        %v1999 = vand.u32 %v455, 4294901760
        %2000 = vmatprep.subr.mxu0 %v1999
        %v2001 = vand.u32 %v454, 4294901760
        %2002 = vmatpush1.msra.mxu0 %v2001
        %v2003 = vand.u32 %v453, 4294901760
        %2004 = vmatprep.subr.mxu0 %v2003
        %v2005 = vand.u32 %v452, 4294901760
        %2006 = vmatpush1.msra.mxu0 %v2005
        %2007 = vmatprep.subr.mxu0 0.0
        %2008 = vmatpush2.msra.mxu0 0.0
        %2009 = vmatprep.subr.mxu0 0.0
        %2010 = vmatpush2.msra.mxu0 0.0
        %2011 = vmatprep.subr.mxu0 0.0
        %2012 = vmatpush2.msra.mxu0 0.0
        %2013 = vmatprep.subr.mxu0 0.0
        %2014 = vmatpush2.msra.mxu0 0.0
        %2015 = vmatprep.subr.mxu0 0.0
        %2016 = vmatpush2.msra.mxu0 0.0
        %2017 = vmatprep.subr.mxu0 0.0
        %2018 = vmatpush2.msra.mxu0 0.0
        %2019 = vmatprep.subr.mxu0 0.0
        %2020 = vmatpush2.msra.mxu0 0.0
        %2021 = vmatprep.subr.mxu0 0.0
        %2022 = vmatpush2.msra.mxu0 0.0
        %2023 = vmatprep.subr.mxu0 0.0
        %2024 = vmatpush2.msra.mxu0 0.0
        %2025 = vmatprep.subr.mxu0 0.0
        %2026 = vmatpush2.msra.mxu0 0.0
        %2027 = vmatprep.subr.mxu0 0.0
        %2028 = vmatpush2.msra.mxu0 0.0
        %2029 = vmatprep.subr.mxu0 0.0
        %2030 = vmatpush2.msra.mxu0 0.0
        %2031 = vmatprep.subr.mxu0 0.0
        %2032 = vmatpush2.msra.mxu0 0.0
        %2033 = vmatprep.subr.mxu0 0.0
        %2034 = vmatpush2.msra.mxu0 0.0
        %2035 = vmatprep.subr.mxu0 0.0
        %2036 = vmatpush2.msra.mxu0 0.0
        %2037 = vmatprep.subr.mxu0 0.0
        %2038 = vmatpush2.msra.mxu0 0.0
        %2039 = vmatprep.mubr.f32.mxu0 0.0
        %v2040 = vand.u32 %v486, 4294901760
        %v2041 = vsub.f32 %v486, %v2040
        %v2042 = vand.u32 %v2041, 4294901760
        %v2043 = vsub.f32 %v2041, %v2042
        %v2044 = vand.u32 %v2043, 4294901760
        %2045 = vmatmul.mubr.f32.gmra.mxu0 %v2044
        %v2046 = vpop.f32.mrf.mxu0
        %v2047 = vadd.f32 %v1939, %v2046
        %v2048 = vpop.f32.mrf.mxu0
        %v2049 = vadd.f32 %v1941, %v2048
        %2050 = vmatprep.mubr.f32.mxu0 0.0
        %v2051 = vand.u32 %v489, 4294901760
        %v2052 = vsub.f32 %v489, %v2051
        %v2053 = vand.u32 %v2052, 4294901760
        %v2054 = vsub.f32 %v2052, %v2053
        %v2055 = vand.u32 %v2054, 4294901760
        %2056 = vmatmul.mubr.f32.gmra.mxu0 %v2055
        %v2057 = vpop.f32.mrf.mxu0
        %v2058 = vadd.f32 %v1947, %v2057
        %v2059 = vpop.f32.mrf.mxu0
        %v2060 = vadd.f32 %v1949, %v2059
        %2061 = vmatprep.mubr.f32.mxu0 0.0
        %v2062 = vand.u32 %v492, 4294901760
        %v2063 = vsub.f32 %v492, %v2062
        %v2064 = vand.u32 %v2063, 4294901760
        %v2065 = vsub.f32 %v2063, %v2064
        %v2066 = vand.u32 %v2065, 4294901760
        %2067 = vmatmul.mubr.f32.gmra.mxu0 %v2066
        %v2068 = vpop.f32.mrf.mxu0
        %v2069 = vadd.f32 %v1955, %v2068
        %v2070 = vpop.f32.mrf.mxu0
        %v2071 = vadd.f32 %v1957, %v2070
        %2072 = vmatprep.mubr.f32.mxu0 0.0
        %v2073 = vand.u32 %v495, 4294901760
        %v2074 = vsub.f32 %v495, %v2073
        %v2075 = vand.u32 %v2074, 4294901760
        %v2076 = vsub.f32 %v2074, %v2075
        %v2077 = vand.u32 %v2076, 4294901760
        %2078 = vmatmul.mubr.f32.gmra.mxu0 %v2077
        %v2079 = vpop.f32.mrf.mxu0
        %v2080 = vadd.f32 %v1963, %v2079
        %v2081 = vpop.f32.mrf.mxu0
        %v2082 = vadd.f32 %v1965, %v2081
        %2083 = vdwg.mxu0
        %2084 = vmatprep.subr.mxu0 0.0
        %2085 = vmatpush1.msra.mxu0 0.0
        %2086 = vmatprep.subr.mxu0 0.0
        %2087 = vmatpush1.msra.mxu0 0.0
        %2088 = vmatprep.subr.mxu0 0.0
        %2089 = vmatpush1.msra.mxu0 0.0
        %2090 = vmatprep.subr.mxu0 0.0
        %2091 = vmatpush1.msra.mxu0 0.0
        %2092 = vmatprep.subr.mxu0 0.0
        %2093 = vmatpush1.msra.mxu0 0.0
        %2094 = vmatprep.subr.mxu0 0.0
        %2095 = vmatpush1.msra.mxu0 0.0
        %2096 = vmatprep.subr.mxu0 0.0
        %2097 = vmatpush1.msra.mxu0 0.0
        %2098 = vmatprep.subr.mxu0 0.0
        %2099 = vmatpush1.msra.mxu0 0.0
        %2100 = vmatprep.subr.mxu0 0.0
        %2101 = vmatpush1.msra.mxu0 0.0
        %2102 = vmatprep.subr.mxu0 0.0
        %2103 = vmatpush1.msra.mxu0 0.0
        %2104 = vmatprep.subr.mxu0 0.0
        %2105 = vmatpush1.msra.mxu0 0.0
        %2106 = vmatprep.subr.mxu0 0.0
        %2107 = vmatpush1.msra.mxu0 0.0
        %v2108 = vand.u32 %v459, 4294901760
        %v2109 = vsub.f32 %v459, %v2108
        %v2110 = vand.u32 %v2109, 4294901760
        %v2111 = vsub.f32 %v2109, %v2110
        %v2112 = vand.u32 %v2111, 4294901760
        %2113 = vmatprep.subr.mxu0 %v2112
        %v2114 = vand.u32 %v458, 4294901760
        %v2115 = vsub.f32 %v458, %v2114
        %v2116 = vand.u32 %v2115, 4294901760
        %v2117 = vsub.f32 %v2115, %v2116
        %v2118 = vand.u32 %v2117, 4294901760
        %2119 = vmatpush1.msra.mxu0 %v2118
        %v2120 = vand.u32 %v457, 4294901760
        %v2121 = vsub.f32 %v457, %v2120
        %v2122 = vand.u32 %v2121, 4294901760
        %v2123 = vsub.f32 %v2121, %v2122
        %v2124 = vand.u32 %v2123, 4294901760
        %2125 = vmatprep.subr.mxu0 %v2124
        %v2126 = vand.u32 %v456, 4294901760
        %v2127 = vsub.f32 %v456, %v2126
        %v2128 = vand.u32 %v2127, 4294901760
        %v2129 = vsub.f32 %v2127, %v2128
        %v2130 = vand.u32 %v2129, 4294901760
        %2131 = vmatpush1.msra.mxu0 %v2130
        %v2132 = vand.u32 %v455, 4294901760
        %v2133 = vsub.f32 %v455, %v2132
        %v2134 = vand.u32 %v2133, 4294901760
        %v2135 = vsub.f32 %v2133, %v2134
        %v2136 = vand.u32 %v2135, 4294901760
        %2137 = vmatprep.subr.mxu0 %v2136
        %v2138 = vand.u32 %v454, 4294901760
        %v2139 = vsub.f32 %v454, %v2138
        %v2140 = vand.u32 %v2139, 4294901760
        %v2141 = vsub.f32 %v2139, %v2140
        %v2142 = vand.u32 %v2141, 4294901760
        %2143 = vmatpush1.msra.mxu0 %v2142
        %v2144 = vand.u32 %v453, 4294901760
        %v2145 = vsub.f32 %v453, %v2144
        %v2146 = vand.u32 %v2145, 4294901760
        %v2147 = vsub.f32 %v2145, %v2146
        %v2148 = vand.u32 %v2147, 4294901760
        %2149 = vmatprep.subr.mxu0 %v2148
        %v2150 = vand.u32 %v452, 4294901760
        %v2151 = vsub.f32 %v452, %v2150
        %v2152 = vand.u32 %v2151, 4294901760
        %v2153 = vsub.f32 %v2151, %v2152
        %v2154 = vand.u32 %v2153, 4294901760
        %2155 = vmatpush1.msra.mxu0 %v2154
        %2156 = vmatprep.subr.mxu0 0.0
        %2157 = vmatpush2.msra.mxu0 0.0
        %2158 = vmatprep.subr.mxu0 0.0
        %2159 = vmatpush2.msra.mxu0 0.0
        %2160 = vmatprep.subr.mxu0 0.0
        %2161 = vmatpush2.msra.mxu0 0.0
        %2162 = vmatprep.subr.mxu0 0.0
        %2163 = vmatpush2.msra.mxu0 0.0
        %2164 = vmatprep.subr.mxu0 0.0
        %2165 = vmatpush2.msra.mxu0 0.0
        %2166 = vmatprep.subr.mxu0 0.0
        %2167 = vmatpush2.msra.mxu0 0.0
        %2168 = vmatprep.subr.mxu0 0.0
        %2169 = vmatpush2.msra.mxu0 0.0
        %2170 = vmatprep.subr.mxu0 0.0
        %2171 = vmatpush2.msra.mxu0 0.0
        %2172 = vmatprep.subr.mxu0 0.0
        %2173 = vmatpush2.msra.mxu0 0.0
        %2174 = vmatprep.subr.mxu0 0.0
        %2175 = vmatpush2.msra.mxu0 0.0
        %2176 = vmatprep.subr.mxu0 0.0
        %2177 = vmatpush2.msra.mxu0 0.0
        %2178 = vmatprep.subr.mxu0 0.0
        %2179 = vmatpush2.msra.mxu0 0.0
        %2180 = vmatprep.subr.mxu0 0.0
        %2181 = vmatpush2.msra.mxu0 0.0
        %2182 = vmatprep.subr.mxu0 0.0
        %2183 = vmatpush2.msra.mxu0 0.0
        %2184 = vmatprep.subr.mxu0 0.0
        %2185 = vmatpush2.msra.mxu0 0.0
        %2186 = vmatprep.subr.mxu0 0.0
        %2187 = vmatpush2.msra.mxu0 0.0
        %2188 = vmatprep.mubr.f32.mxu0 0.0
        %v2189 = vand.u32 %v486, 4294901760
        %2190 = vmatmul.mubr.f32.gmra.mxu0 %v2189
        %v2191 = vpop.f32.mrf.mxu0
        %v2192 = vadd.f32 %v2047, %v2191
        %v2193 = vpop.f32.mrf.mxu0
        %v2194 = vadd.f32 %v2049, %v2193
        %2195 = vmatprep.mubr.f32.mxu0 0.0
        %v2196 = vand.u32 %v489, 4294901760
        %2197 = vmatmul.mubr.f32.gmra.mxu0 %v2196
        %v2198 = vpop.f32.mrf.mxu0
        %v2199 = vadd.f32 %v2058, %v2198
        %v2200 = vpop.f32.mrf.mxu0
        %v2201 = vadd.f32 %v2060, %v2200
        %2202 = vmatprep.mubr.f32.mxu0 0.0
        %v2203 = vand.u32 %v492, 4294901760
        %2204 = vmatmul.mubr.f32.gmra.mxu0 %v2203
        %v2205 = vpop.f32.mrf.mxu0
        %v2206 = vadd.f32 %v2069, %v2205
        %v2207 = vpop.f32.mrf.mxu0
        %v2208 = vadd.f32 %v2071, %v2207
        %2209 = vmatprep.mubr.f32.mxu0 0.0
        %v2210 = vand.u32 %v495, 4294901760
        %2211 = vmatmul.mubr.f32.gmra.mxu0 %v2210
        %v2212 = vpop.f32.mrf.mxu0
        %v2213 = vadd.f32 %v2080, %v2212
        %v2214 = vpop.f32.mrf.mxu0
        %v2215 = vadd.f32 %v2082, %v2214
        %2216 = vdwg.mxu0
        %2217 = vmatprep.subr.mxu0 0.0
        %2218 = vmatpush1.msra.mxu0 0.0
        %2219 = vmatprep.subr.mxu0 0.0
        %2220 = vmatpush1.msra.mxu0 0.0
        %2221 = vmatprep.subr.mxu0 0.0
        %2222 = vmatpush1.msra.mxu0 0.0
        %2223 = vmatprep.subr.mxu0 0.0
        %2224 = vmatpush1.msra.mxu0 0.0
        %2225 = vmatprep.subr.mxu0 0.0
        %2226 = vmatpush1.msra.mxu0 0.0
        %2227 = vmatprep.subr.mxu0 0.0
        %2228 = vmatpush1.msra.mxu0 0.0
        %2229 = vmatprep.subr.mxu0 0.0
        %2230 = vmatpush1.msra.mxu0 0.0
        %2231 = vmatprep.subr.mxu0 0.0
        %2232 = vmatpush1.msra.mxu0 0.0
        %2233 = vmatprep.subr.mxu0 0.0
        %2234 = vmatpush1.msra.mxu0 0.0
        %2235 = vmatprep.subr.mxu0 0.0
        %2236 = vmatpush1.msra.mxu0 0.0
        %2237 = vmatprep.subr.mxu0 0.0
        %2238 = vmatpush1.msra.mxu0 0.0
        %2239 = vmatprep.subr.mxu0 0.0
        %2240 = vmatpush1.msra.mxu0 0.0
        %v2241 = vand.u32 %v459, 4294901760
        %v2242 = vsub.f32 %v459, %v2241
        %2243 = vmatprep.subr.mxu0 %v2242
        %v2244 = vand.u32 %v458, 4294901760
        %v2245 = vsub.f32 %v458, %v2244
        %2246 = vmatpush1.msra.mxu0 %v2245
        %v2247 = vand.u32 %v457, 4294901760
        %v2248 = vsub.f32 %v457, %v2247
        %2249 = vmatprep.subr.mxu0 %v2248
        %v2250 = vand.u32 %v456, 4294901760
        %v2251 = vsub.f32 %v456, %v2250
        %2252 = vmatpush1.msra.mxu0 %v2251
        %v2253 = vand.u32 %v455, 4294901760
        %v2254 = vsub.f32 %v455, %v2253
        %2255 = vmatprep.subr.mxu0 %v2254
        %v2256 = vand.u32 %v454, 4294901760
        %v2257 = vsub.f32 %v454, %v2256
        %2258 = vmatpush1.msra.mxu0 %v2257
        %v2259 = vand.u32 %v453, 4294901760
        %v2260 = vsub.f32 %v453, %v2259
        %2261 = vmatprep.subr.mxu0 %v2260
        %v2262 = vand.u32 %v452, 4294901760
        %v2263 = vsub.f32 %v452, %v2262
        %2264 = vmatpush1.msra.mxu0 %v2263
        %2265 = vmatprep.subr.mxu0 0.0
        %2266 = vmatpush2.msra.mxu0 0.0
        %2267 = vmatprep.subr.mxu0 0.0
        %2268 = vmatpush2.msra.mxu0 0.0
        %2269 = vmatprep.subr.mxu0 0.0
        %2270 = vmatpush2.msra.mxu0 0.0
        %2271 = vmatprep.subr.mxu0 0.0
        %2272 = vmatpush2.msra.mxu0 0.0
        %2273 = vmatprep.subr.mxu0 0.0
        %2274 = vmatpush2.msra.mxu0 0.0
        %2275 = vmatprep.subr.mxu0 0.0
        %2276 = vmatpush2.msra.mxu0 0.0
        %2277 = vmatprep.subr.mxu0 0.0
        %2278 = vmatpush2.msra.mxu0 0.0
        %2279 = vmatprep.subr.mxu0 0.0
        %2280 = vmatpush2.msra.mxu0 0.0
        %2281 = vmatprep.subr.mxu0 0.0
        %2282 = vmatpush2.msra.mxu0 0.0
        %2283 = vmatprep.subr.mxu0 0.0
        %2284 = vmatpush2.msra.mxu0 0.0
        %2285 = vmatprep.subr.mxu0 0.0
        %2286 = vmatpush2.msra.mxu0 0.0
        %2287 = vmatprep.subr.mxu0 0.0
        %2288 = vmatpush2.msra.mxu0 0.0
        %2289 = vmatprep.subr.mxu0 0.0
        %2290 = vmatpush2.msra.mxu0 0.0
        %2291 = vmatprep.subr.mxu0 0.0
        %2292 = vmatpush2.msra.mxu0 0.0
        %2293 = vmatprep.subr.mxu0 0.0
        %2294 = vmatpush2.msra.mxu0 0.0
        %2295 = vmatprep.subr.mxu0 0.0
        %2296 = vmatpush2.msra.mxu0 0.0
        %2297 = vmatprep.mubr.f32.mxu0 0.0
        %v2298 = vand.u32 %v486, 4294901760
        %v2299 = vsub.f32 %v486, %v2298
        %2300 = vmatmul.mubr.f32.gmra.mxu0 %v2299
        %v2301 = vpop.f32.mrf.mxu0
        %v2302 = vadd.f32 %v2192, %v2301
        %v2303 = vpop.f32.mrf.mxu0
        %v2304 = vadd.f32 %v2194, %v2303
        %2305 = vmatprep.mubr.f32.mxu0 0.0
        %v2306 = vand.u32 %v489, 4294901760
        %v2307 = vsub.f32 %v489, %v2306
        %2308 = vmatmul.mubr.f32.gmra.mxu0 %v2307
        %v2309 = vpop.f32.mrf.mxu0
        %v2310 = vadd.f32 %v2199, %v2309
        %v2311 = vpop.f32.mrf.mxu0
        %v2312 = vadd.f32 %v2201, %v2311
        %2313 = vmatprep.mubr.f32.mxu0 0.0
        %v2314 = vand.u32 %v492, 4294901760
        %v2315 = vsub.f32 %v492, %v2314
        %2316 = vmatmul.mubr.f32.gmra.mxu0 %v2315
        %v2317 = vpop.f32.mrf.mxu0
        %v2318 = vadd.f32 %v2206, %v2317
        %v2319 = vpop.f32.mrf.mxu0
        %v2320 = vadd.f32 %v2208, %v2319
        %2321 = vmatprep.mubr.f32.mxu0 0.0
        %v2322 = vand.u32 %v495, 4294901760
        %v2323 = vsub.f32 %v495, %v2322
        %2324 = vmatmul.mubr.f32.gmra.mxu0 %v2323
        %v2325 = vpop.f32.mrf.mxu0
        %v2326 = vadd.f32 %v2213, %v2325
        %v2327 = vpop.f32.mrf.mxu0
        %v2328 = vadd.f32 %v2215, %v2327
        %2329 = vdwg.mxu0
        %2330 = vmatprep.subr.mxu0 0.0
        %2331 = vmatpush1.msra.mxu0 0.0
        %2332 = vmatprep.subr.mxu0 0.0
        %2333 = vmatpush1.msra.mxu0 0.0
        %2334 = vmatprep.subr.mxu0 0.0
        %2335 = vmatpush1.msra.mxu0 0.0
        %2336 = vmatprep.subr.mxu0 0.0
        %2337 = vmatpush1.msra.mxu0 0.0
        %2338 = vmatprep.subr.mxu0 0.0
        %2339 = vmatpush1.msra.mxu0 0.0
        %2340 = vmatprep.subr.mxu0 0.0
        %2341 = vmatpush1.msra.mxu0 0.0
        %2342 = vmatprep.subr.mxu0 0.0
        %2343 = vmatpush1.msra.mxu0 0.0
        %2344 = vmatprep.subr.mxu0 0.0
        %2345 = vmatpush1.msra.mxu0 0.0
        %2346 = vmatprep.subr.mxu0 0.0
        %2347 = vmatpush1.msra.mxu0 0.0
        %2348 = vmatprep.subr.mxu0 0.0
        %2349 = vmatpush1.msra.mxu0 0.0
        %2350 = vmatprep.subr.mxu0 0.0
        %2351 = vmatpush1.msra.mxu0 0.0
        %2352 = vmatprep.subr.mxu0 0.0
        %2353 = vmatpush1.msra.mxu0 0.0
        %v2354 = vand.u32 %v459, 4294901760
        %2355 = vmatprep.subr.mxu0 %v2354
        %v2356 = vand.u32 %v458, 4294901760
        %2357 = vmatpush1.msra.mxu0 %v2356
        %v2358 = vand.u32 %v457, 4294901760
        %2359 = vmatprep.subr.mxu0 %v2358
        %v2360 = vand.u32 %v456, 4294901760
        %2361 = vmatpush1.msra.mxu0 %v2360
        %v2362 = vand.u32 %v455, 4294901760
        %2363 = vmatprep.subr.mxu0 %v2362
        %v2364 = vand.u32 %v454, 4294901760
        %2365 = vmatpush1.msra.mxu0 %v2364
        %v2366 = vand.u32 %v453, 4294901760
        %2367 = vmatprep.subr.mxu0 %v2366
        %v2368 = vand.u32 %v452, 4294901760
        %2369 = vmatpush1.msra.mxu0 %v2368
        %2370 = vmatprep.subr.mxu0 0.0
        %2371 = vmatpush2.msra.mxu0 0.0
        %2372 = vmatprep.subr.mxu0 0.0
        %2373 = vmatpush2.msra.mxu0 0.0
        %2374 = vmatprep.subr.mxu0 0.0
        %2375 = vmatpush2.msra.mxu0 0.0
        %2376 = vmatprep.subr.mxu0 0.0
        %2377 = vmatpush2.msra.mxu0 0.0
        %2378 = vmatprep.subr.mxu0 0.0
        %2379 = vmatpush2.msra.mxu0 0.0
        %2380 = vmatprep.subr.mxu0 0.0
        %2381 = vmatpush2.msra.mxu0 0.0
        %2382 = vmatprep.subr.mxu0 0.0
        %2383 = vmatpush2.msra.mxu0 0.0
        %2384 = vmatprep.subr.mxu0 0.0
        %2385 = vmatpush2.msra.mxu0 0.0
        %2386 = vmatprep.subr.mxu0 0.0
        %2387 = vmatpush2.msra.mxu0 0.0
        %2388 = vmatprep.subr.mxu0 0.0
        %2389 = vmatpush2.msra.mxu0 0.0
        %2390 = vmatprep.subr.mxu0 0.0
        %2391 = vmatpush2.msra.mxu0 0.0
        %2392 = vmatprep.subr.mxu0 0.0
        %2393 = vmatpush2.msra.mxu0 0.0
        %2394 = vmatprep.subr.mxu0 0.0
        %2395 = vmatpush2.msra.mxu0 0.0
        %2396 = vmatprep.subr.mxu0 0.0
        %2397 = vmatpush2.msra.mxu0 0.0
        %2398 = vmatprep.subr.mxu0 0.0
        %2399 = vmatpush2.msra.mxu0 0.0
        %2400 = vmatprep.subr.mxu0 0.0
        %2401 = vmatpush2.msra.mxu0 0.0
        %2402 = vmatprep.mubr.f32.mxu0 0.0
        %v2403 = vand.u32 %v486, 4294901760
        %v2404 = vsub.f32 %v486, %v2403
        %v2405 = vand.u32 %v2404, 4294901760
        %2406 = vmatmul.mubr.f32.gmra.mxu0 %v2405
        %v2407 = vpop.f32.mrf.mxu0
        %v2408 = vadd.f32 %v2302, %v2407
        %v2409 = vpop.f32.mrf.mxu0
        %v2410 = vadd.f32 %v2304, %v2409
        %2411 = vmatprep.mubr.f32.mxu0 0.0
        %v2412 = vand.u32 %v489, 4294901760
        %v2413 = vsub.f32 %v489, %v2412
        %v2414 = vand.u32 %v2413, 4294901760
        %2415 = vmatmul.mubr.f32.gmra.mxu0 %v2414
        %v2416 = vpop.f32.mrf.mxu0
        %v2417 = vadd.f32 %v2310, %v2416
        %v2418 = vpop.f32.mrf.mxu0
        %v2419 = vadd.f32 %v2312, %v2418
        %2420 = vmatprep.mubr.f32.mxu0 0.0
        %v2421 = vand.u32 %v492, 4294901760
        %v2422 = vsub.f32 %v492, %v2421
        %v2423 = vand.u32 %v2422, 4294901760
        %2424 = vmatmul.mubr.f32.gmra.mxu0 %v2423
        %v2425 = vpop.f32.mrf.mxu0
        %v2426 = vadd.f32 %v2318, %v2425
        %v2427 = vpop.f32.mrf.mxu0
        %v2428 = vadd.f32 %v2320, %v2427
        %2429 = vmatprep.mubr.f32.mxu0 0.0
        %v2430 = vand.u32 %v495, 4294901760
        %v2431 = vsub.f32 %v495, %v2430
        %v2432 = vand.u32 %v2431, 4294901760
        %2433 = vmatmul.mubr.f32.gmra.mxu0 %v2432
        %v2434 = vpop.f32.mrf.mxu0
        %v2435 = vadd.f32 %v2326, %v2434
        %v2436 = vpop.f32.mrf.mxu0
        %v2437 = vadd.f32 %v2328, %v2436
        %2438 = vdwg.mxu0
        %2439 = vmatprep.subr.mxu0 0.0
        %2440 = vmatpush1.msra.mxu0 0.0
        %2441 = vmatprep.subr.mxu0 0.0
        %2442 = vmatpush1.msra.mxu0 0.0
        %2443 = vmatprep.subr.mxu0 0.0
        %2444 = vmatpush1.msra.mxu0 0.0
        %2445 = vmatprep.subr.mxu0 0.0
        %2446 = vmatpush1.msra.mxu0 0.0
        %2447 = vmatprep.subr.mxu0 0.0
        %2448 = vmatpush1.msra.mxu0 0.0
        %2449 = vmatprep.subr.mxu0 0.0
        %2450 = vmatpush1.msra.mxu0 0.0
        %2451 = vmatprep.subr.mxu0 0.0
        %2452 = vmatpush1.msra.mxu0 0.0
        %2453 = vmatprep.subr.mxu0 0.0
        %2454 = vmatpush1.msra.mxu0 0.0
        %2455 = vmatprep.subr.mxu0 0.0
        %2456 = vmatpush1.msra.mxu0 0.0
        %2457 = vmatprep.subr.mxu0 0.0
        %2458 = vmatpush1.msra.mxu0 0.0
        %2459 = vmatprep.subr.mxu0 0.0
        %2460 = vmatpush1.msra.mxu0 0.0
        %2461 = vmatprep.subr.mxu0 0.0
        %2462 = vmatpush1.msra.mxu0 0.0
        %v2463 = vand.u32 %v459, 4294901760
        %v2464 = vsub.f32 %v459, %v2463
        %v2465 = vand.u32 %v2464, 4294901760
        %2466 = vmatprep.subr.mxu0 %v2465
        %v2467 = vand.u32 %v458, 4294901760
        %v2468 = vsub.f32 %v458, %v2467
        %v2469 = vand.u32 %v2468, 4294901760
        %2470 = vmatpush1.msra.mxu0 %v2469
        %v2471 = vand.u32 %v457, 4294901760
        %v2472 = vsub.f32 %v457, %v2471
        %v2473 = vand.u32 %v2472, 4294901760
        %2474 = vmatprep.subr.mxu0 %v2473
        %v2475 = vand.u32 %v456, 4294901760
        %v2476 = vsub.f32 %v456, %v2475
        %v2477 = vand.u32 %v2476, 4294901760
        %2478 = vmatpush1.msra.mxu0 %v2477
        %v2479 = vand.u32 %v455, 4294901760
        %v2480 = vsub.f32 %v455, %v2479
        %v2481 = vand.u32 %v2480, 4294901760
        %2482 = vmatprep.subr.mxu0 %v2481
        %v2483 = vand.u32 %v454, 4294901760
        %v2484 = vsub.f32 %v454, %v2483
        %v2485 = vand.u32 %v2484, 4294901760
        %2486 = vmatpush1.msra.mxu0 %v2485
        %v2487 = vand.u32 %v453, 4294901760
        %v2488 = vsub.f32 %v453, %v2487
        %v2489 = vand.u32 %v2488, 4294901760
        %2490 = vmatprep.subr.mxu0 %v2489
        %v2491 = vand.u32 %v452, 4294901760
        %v2492 = vsub.f32 %v452, %v2491
        %v2493 = vand.u32 %v2492, 4294901760
        %2494 = vmatpush1.msra.mxu0 %v2493
        %2495 = vmatprep.subr.mxu0 0.0
        %2496 = vmatpush2.msra.mxu0 0.0
        %2497 = vmatprep.subr.mxu0 0.0
        %2498 = vmatpush2.msra.mxu0 0.0
        %2499 = vmatprep.subr.mxu0 0.0
        %2500 = vmatpush2.msra.mxu0 0.0
        %2501 = vmatprep.subr.mxu0 0.0
        %2502 = vmatpush2.msra.mxu0 0.0
        %2503 = vmatprep.subr.mxu0 0.0
        %2504 = vmatpush2.msra.mxu0 0.0
        %2505 = vmatprep.subr.mxu0 0.0
        %2506 = vmatpush2.msra.mxu0 0.0
        %2507 = vmatprep.subr.mxu0 0.0
        %2508 = vmatpush2.msra.mxu0 0.0
        %2509 = vmatprep.subr.mxu0 0.0
        %2510 = vmatpush2.msra.mxu0 0.0
        %2511 = vmatprep.subr.mxu0 0.0
        %2512 = vmatpush2.msra.mxu0 0.0
        %2513 = vmatprep.subr.mxu0 0.0
        %2514 = vmatpush2.msra.mxu0 0.0
        %2515 = vmatprep.subr.mxu0 0.0
        %2516 = vmatpush2.msra.mxu0 0.0
        %2517 = vmatprep.subr.mxu0 0.0
        %2518 = vmatpush2.msra.mxu0 0.0
        %2519 = vmatprep.subr.mxu0 0.0
        %2520 = vmatpush2.msra.mxu0 0.0
        %2521 = vmatprep.subr.mxu0 0.0
        %2522 = vmatpush2.msra.mxu0 0.0
        %2523 = vmatprep.subr.mxu0 0.0
        %2524 = vmatpush2.msra.mxu0 0.0
        %2525 = vmatprep.subr.mxu0 0.0
        %2526 = vmatpush2.msra.mxu0 0.0
        %2527 = vmatprep.mubr.f32.mxu0 0.0
        %v2528 = vand.u32 %v486, 4294901760
        %2529 = vmatmul.mubr.f32.gmra.mxu0 %v2528
        %v2530 = vpop.f32.mrf.mxu0
        %v2531 = vadd.f32 %v2408, %v2530
        %v2532 = vpop.f32.mrf.mxu0
        %v2533 = vadd.f32 %v2410, %v2532
        %2534 = vmatprep.mubr.f32.mxu0 0.0
        %v2535 = vand.u32 %v489, 4294901760
        %2536 = vmatmul.mubr.f32.gmra.mxu0 %v2535
        %v2537 = vpop.f32.mrf.mxu0
        %v2538 = vadd.f32 %v2417, %v2537
        %v2539 = vpop.f32.mrf.mxu0
        %v2540 = vadd.f32 %v2419, %v2539
        %2541 = vmatprep.mubr.f32.mxu0 0.0
        %v2542 = vand.u32 %v492, 4294901760
        %2543 = vmatmul.mubr.f32.gmra.mxu0 %v2542
        %v2544 = vpop.f32.mrf.mxu0
        %v2545 = vadd.f32 %v2426, %v2544
        %v2546 = vpop.f32.mrf.mxu0
        %v2547 = vadd.f32 %v2428, %v2546
        %2548 = vmatprep.mubr.f32.mxu0 0.0
        %v2549 = vand.u32 %v495, 4294901760
        %2550 = vmatmul.mubr.f32.gmra.mxu0 %v2549
        %v2551 = vpop.f32.mrf.mxu0
        %v2552 = vadd.f32 %v2435, %v2551
        %v2553 = vpop.f32.mrf.mxu0
        %v2554 = vadd.f32 %v2437, %v2553
        %2555 = vdwg.mxu0
        %2556 = vmatprep.subr.mxu0 0.0
        %2557 = vmatpush1.msra.mxu0 0.0
        %2558 = vmatprep.subr.mxu0 0.0
        %2559 = vmatpush1.msra.mxu0 0.0
        %2560 = vmatprep.subr.mxu0 0.0
        %2561 = vmatpush1.msra.mxu0 0.0
        %2562 = vmatprep.subr.mxu0 0.0
        %2563 = vmatpush1.msra.mxu0 0.0
        %2564 = vmatprep.subr.mxu0 0.0
        %2565 = vmatpush1.msra.mxu0 0.0
        %2566 = vmatprep.subr.mxu0 0.0
        %2567 = vmatpush1.msra.mxu0 0.0
        %2568 = vmatprep.subr.mxu0 0.0
        %2569 = vmatpush1.msra.mxu0 0.0
        %2570 = vmatprep.subr.mxu0 0.0
        %2571 = vmatpush1.msra.mxu0 0.0
        %2572 = vmatprep.subr.mxu0 0.0
        %2573 = vmatpush1.msra.mxu0 0.0
        %2574 = vmatprep.subr.mxu0 0.0
        %2575 = vmatpush1.msra.mxu0 0.0
        %2576 = vmatprep.subr.mxu0 0.0
        %2577 = vmatpush1.msra.mxu0 0.0
        %2578 = vmatprep.subr.mxu0 0.0
        %2579 = vmatpush1.msra.mxu0 0.0
        %v2580 = vand.u32 %v459, 4294901760
        %2581 = vmatprep.subr.mxu0 %v2580
        %v2582 = vand.u32 %v458, 4294901760
        %2583 = vmatpush1.msra.mxu0 %v2582
        %v2584 = vand.u32 %v457, 4294901760
        %2585 = vmatprep.subr.mxu0 %v2584
        %v2586 = vand.u32 %v456, 4294901760
        %2587 = vmatpush1.msra.mxu0 %v2586
        %v2588 = vand.u32 %v455, 4294901760
        %2589 = vmatprep.subr.mxu0 %v2588
        %v2590 = vand.u32 %v454, 4294901760
        %2591 = vmatpush1.msra.mxu0 %v2590
        %v2592 = vand.u32 %v453, 4294901760
        %2593 = vmatprep.subr.mxu0 %v2592
        %v2594 = vand.u32 %v452, 4294901760
        %2595 = vmatpush1.msra.mxu0 %v2594
        %2596 = vmatprep.subr.mxu0 0.0
        %2597 = vmatpush2.msra.mxu0 0.0
        %2598 = vmatprep.subr.mxu0 0.0
        %2599 = vmatpush2.msra.mxu0 0.0
        %2600 = vmatprep.subr.mxu0 0.0
        %2601 = vmatpush2.msra.mxu0 0.0
        %2602 = vmatprep.subr.mxu0 0.0
        %2603 = vmatpush2.msra.mxu0 0.0
        %2604 = vmatprep.subr.mxu0 0.0
        %2605 = vmatpush2.msra.mxu0 0.0
        %2606 = vmatprep.subr.mxu0 0.0
        %2607 = vmatpush2.msra.mxu0 0.0
        %2608 = vmatprep.subr.mxu0 0.0
        %2609 = vmatpush2.msra.mxu0 0.0
        %2610 = vmatprep.subr.mxu0 0.0
        %2611 = vmatpush2.msra.mxu0 0.0
        %2612 = vmatprep.subr.mxu0 0.0
        %2613 = vmatpush2.msra.mxu0 0.0
        %2614 = vmatprep.subr.mxu0 0.0
        %2615 = vmatpush2.msra.mxu0 0.0
        %2616 = vmatprep.subr.mxu0 0.0
        %2617 = vmatpush2.msra.mxu0 0.0
        %2618 = vmatprep.subr.mxu0 0.0
        %2619 = vmatpush2.msra.mxu0 0.0
        %2620 = vmatprep.subr.mxu0 0.0
        %2621 = vmatpush2.msra.mxu0 0.0
        %2622 = vmatprep.subr.mxu0 0.0
        %2623 = vmatpush2.msra.mxu0 0.0
        %2624 = vmatprep.subr.mxu0 0.0
        %2625 = vmatpush2.msra.mxu0 0.0
        %2626 = vmatprep.subr.mxu0 0.0
        %2627 = vmatpush2.msra.mxu0 0.0
        %2628 = vmatprep.mubr.f32.mxu0 0.0
        %v2629 = vand.u32 %v486, 4294901760
        %2630 = vmatmul.mubr.f32.gmra.mxu0 %v2629
        %v2631 = vpop.f32.mrf.mxu0
        %v2632 = vadd.f32 %v2531, %v2631
        %v2633 = vpop.f32.mrf.mxu0
        %v2634 = vadd.f32 %v2533, %v2633
        %2635 = vmatprep.mubr.f32.mxu0 0.0
        %v2636 = vand.u32 %v489, 4294901760
        %2637 = vmatmul.mubr.f32.gmra.mxu0 %v2636
        %v2638 = vpop.f32.mrf.mxu0
        %v2639 = vadd.f32 %v2538, %v2638
        %v2640 = vpop.f32.mrf.mxu0
        %v2641 = vadd.f32 %v2540, %v2640
        %2642 = vmatprep.mubr.f32.mxu0 0.0
        %v2643 = vand.u32 %v492, 4294901760
        %2644 = vmatmul.mubr.f32.gmra.mxu0 %v2643
        %v2645 = vpop.f32.mrf.mxu0
        %v2646 = vadd.f32 %v2545, %v2645
        %v2647 = vpop.f32.mrf.mxu0
        %v2648 = vadd.f32 %v2547, %v2647
        %2649 = vmatprep.mubr.f32.mxu0 0.0
        %v2650 = vand.u32 %v495, 4294901760
        %2651 = vmatmul.mubr.f32.gmra.mxu0 %v2650
        %v2652 = vpop.f32.mrf.mxu0
        %v2653 = vadd.f32 %v2552, %v2652
        %v2654 = vpop.f32.mrf.mxu0
        %v2655 = vadd.f32 %v2554, %v2654
        %2656 = vdwg.mxu0
        %v2657 = vmax.f32 %v2632, 0.0
        %v2658 = vmax.f32 %v2634, 0.0
        %v2659 = vmax.f32 %v2639, 0.0
        %v2660 = vmax.f32 %v2641, 0.0
        %v2661 = vmax.f32 %v2646, 0.0
        %v2662 = vmax.f32 %v2648, 0.0
        %v2663 = vmax.f32 %v2653, 0.0
        %v2664 = vmax.f32 %v2655, 0.0
        %v2665 = vand.u32 2147483647, %v2632
        %v2666 = vand.u32 2147483647, %v2634
        %v2667 = vand.u32 2147483647, %v2639
        %v2668 = vand.u32 2147483647, %v2641
        %v2669 = vand.u32 2147483647, %v2646
        %v2670 = vand.u32 2147483647, %v2648
        %v2671 = vand.u32 2147483647, %v2653
        %v2672 = vand.u32 2147483647, %v2655
        %v2673 = vsub.f32 0.0, %v2665
        %v2674 = vsub.f32 0.0, %v2666
        %v2675 = vsub.f32 0.0, %v2667
        %v2676 = vsub.f32 0.0, %v2668
        %v2677 = vsub.f32 0.0, %v2669
        %v2678 = vsub.f32 0.0, %v2670
        %v2679 = vsub.f32 0.0, %v2671
        %v2680 = vsub.f32 0.0, %v2672
        %v2681 = vmul.f32 %v2673, 1.442695
        %v2682 = vpow.pop %v2681
        %v2683 = vmul.f32 %v2674, 1.442695
        %v2684 = vpow.pop %v2683
        %v2685 = vmul.f32 %v2675, 1.442695
        %v2686 = vpow.pop %v2685
        %v2687 = vmul.f32 %v2676, 1.442695
        %v2688 = vpow.pop %v2687
        %v2689 = vmul.f32 %v2677, 1.442695
        %v2690 = vpow.pop %v2689
        %v2691 = vmul.f32 %v2678, 1.442695
        %v2692 = vpow.pop %v2691
        %v2693 = vmul.f32 %v2679, 1.442695
        %v2694 = vpow.pop %v2693
        %v2695 = vmul.f32 %v2680, 1.442695
        %v2696 = vpow.pop %v2695
        %v2697 = vadd.f32 %v2682, 1.0
        %v2698 = vlog2.pop %v2697
        %v2699 = vmul.f32 %v2698, 0.6931472
        %v2700 = vmul.f32 -0.5, %v2682
        %v2701 = vadd.f32 %v2700, 1.0
        %v2702 = vmul.f32 %v2701, %v2682
        %v2703 = vand.u32 2147483647, %v2682
        %vm2704 = vcmp.lt.f32.partialorder %v2703, 0.0004427343
        %v2705 = vsel %vm2704, %v2702, %v2699
        %v2706 = vadd.f32 %v2684, 1.0
        %v2707 = vlog2.pop %v2706
        %v2708 = vmul.f32 %v2707, 0.6931472
        %v2709 = vmul.f32 -0.5, %v2684
        %v2710 = vadd.f32 %v2709, 1.0
        %v2711 = vmul.f32 %v2710, %v2684
        %v2712 = vand.u32 2147483647, %v2684
        %vm2713 = vcmp.lt.f32.partialorder %v2712, 0.0004427343
        %v2714 = vsel %vm2713, %v2711, %v2708
        %v2715 = vadd.f32 %v2686, 1.0
        %v2716 = vlog2.pop %v2715
        %v2717 = vmul.f32 %v2716, 0.6931472
        %v2718 = vmul.f32 -0.5, %v2686
        %v2719 = vadd.f32 %v2718, 1.0
        %v2720 = vmul.f32 %v2719, %v2686
        %v2721 = vand.u32 2147483647, %v2686
        %vm2722 = vcmp.lt.f32.partialorder %v2721, 0.0004427343
        %v2723 = vsel %vm2722, %v2720, %v2717
        %v2724 = vadd.f32 %v2688, 1.0
        %v2725 = vlog2.pop %v2724
        %v2726 = vmul.f32 %v2725, 0.6931472
        %v2727 = vmul.f32 -0.5, %v2688
        %v2728 = vadd.f32 %v2727, 1.0
        %v2729 = vmul.f32 %v2728, %v2688
        %v2730 = vand.u32 2147483647, %v2688
        %vm2731 = vcmp.lt.f32.partialorder %v2730, 0.0004427343
        %v2732 = vsel %vm2731, %v2729, %v2726
        %v2733 = vadd.f32 %v2690, 1.0
        %v2734 = vlog2.pop %v2733
        %v2735 = vmul.f32 %v2734, 0.6931472
        %v2736 = vmul.f32 -0.5, %v2690
        %v2737 = vadd.f32 %v2736, 1.0
        %v2738 = vmul.f32 %v2737, %v2690
        %v2739 = vand.u32 2147483647, %v2690
        %vm2740 = vcmp.lt.f32.partialorder %v2739, 0.0004427343
        %v2741 = vsel %vm2740, %v2738, %v2735
        %v2742 = vadd.f32 %v2692, 1.0
        %v2743 = vlog2.pop %v2742
        %v2744 = vmul.f32 %v2743, 0.6931472
        %v2745 = vmul.f32 -0.5, %v2692
        %v2746 = vadd.f32 %v2745, 1.0
        %v2747 = vmul.f32 %v2746, %v2692
        %v2748 = vand.u32 2147483647, %v2692
        %vm2749 = vcmp.lt.f32.partialorder %v2748, 0.0004427343
        %v2750 = vsel %vm2749, %v2747, %v2744
        %v2751 = vadd.f32 %v2694, 1.0
        %v2752 = vlog2.pop %v2751
        %v2753 = vmul.f32 %v2752, 0.6931472
        %v2754 = vmul.f32 -0.5, %v2694
        %v2755 = vadd.f32 %v2754, 1.0
        %v2756 = vmul.f32 %v2755, %v2694
        %v2757 = vand.u32 2147483647, %v2694
        %vm2758 = vcmp.lt.f32.partialorder %v2757, 0.0004427343
        %v2759 = vsel %vm2758, %v2756, %v2753
        %v2760 = vadd.f32 %v2696, 1.0
        %v2761 = vlog2.pop %v2760
        %v2762 = vmul.f32 %v2761, 0.6931472
        %v2763 = vmul.f32 -0.5, %v2696
        %v2764 = vadd.f32 %v2763, 1.0
        %v2765 = vmul.f32 %v2764, %v2696
        %v2766 = vand.u32 2147483647, %v2696
        %vm2767 = vcmp.lt.f32.partialorder %v2766, 0.0004427343
        %v2768 = vsel %vm2767, %v2765, %v2762
        %v2769 = vadd.f32 %v2657, %v2705
        %v2770 = vadd.f32 %v2658, %v2714
        %v2771 = vadd.f32 %v2659, %v2723
        %v2772 = vadd.f32 %v2660, %v2732
        %v2773 = vadd.f32 %v2661, %v2741
        %v2774 = vadd.f32 %v2662, %v2750
        %v2775 = vadd.f32 %v2663, %v2759
        %v2776 = vadd.f32 %v2664, %v2768
        %v2777 = vtanh.pop %v2769
        %v2778 = vtanh.pop %v2770
        %v2779 = vtanh.pop %v2771
        %v2780 = vtanh.pop %v2772
        %v2781 = vtanh.pop %v2773
        %v2782 = vtanh.pop %v2774
        %v2783 = vtanh.pop %v2775
        %v2784 = vtanh.pop %v2776
        %v2785 = vmul.f32 %v2632, %v2777
        %v2786 = vmul.f32 %v2634, %v2778
        %v2787 = vmul.f32 %v2639, %v2779
        %v2788 = vmul.f32 %v2641, %v2780
        %v2789 = vmul.f32 %v2646, %v2781
        %v2790 = vmul.f32 %v2648, %v2782
        %v2791 = vmul.f32 %v2653, %v2783
        %v2792 = vmul.f32 %v2655, %v2784
        %2793 = vst [vmem:[%s375] sm:$0xff] %v2785
        %2794 = vst [vmem:[%s375 + $0x8] sm:$0xff] %v2786
        %2795 = vst [vmem:[%s375 + $0x10] sm:$0xff] %v2787
        %2796 = vst [vmem:[%s375 + $0x18] sm:$0xff] %v2788
        %2797 = vst [vmem:[%s375 + $0x20] sm:$0xff] %v2789
        %2798 = vst [vmem:[%s375 + $0x28] sm:$0xff] %v2790
        %2799 = vst [vmem:[%s375 + $0x30] sm:$0xff] %v2791
        %2800 = vst [vmem:[%s375 + $0x38] sm:$0xff] %v2792
        %v2801 = vld [vmem:[%s320] sm:$0xff]
        %v2802 = vld [vmem:[%s320 + $0x8] sm:$0xff]
        %v2803 = vld [vmem:[%s320 + $0x10] sm:$0xff]
        %v2804 = vld [vmem:[%s320 + $0x18] sm:$0xff]
        %v2805 = vld [vmem:[%s320 + $0x20] sm:$0xff]
        %v2806 = vld [vmem:[%s320 + $0x28] sm:$0xff]
        %v2807 = vld [vmem:[%s320 + $0x30] sm:$0xff]
        %v2808 = vld [vmem:[%s320 + $0x38] sm:$0xff]
        %2809 = vst [vmem:[%s375 + $0x40] sm:$0xff] %v2801
        %2810 = vst [vmem:[%s375 + $0x48] sm:$0xff] %v2802
        %2811 = vst [vmem:[%s375 + $0x50] sm:$0xff] %v2803
        %2812 = vst [vmem:[%s375 + $0x58] sm:$0xff] %v2804
        %2813 = vst [vmem:[%s375 + $0x60] sm:$0xff] %v2805
        %2814 = vst [vmem:[%s375 + $0x68] sm:$0xff] %v2806
        %2815 = vst [vmem:[%s375 + $0x70] sm:$0xff] %v2807
        %2816 = vst [vmem:[%s375 + $0x78] sm:$0xff] %v2808
        %v2817 = vld [vmem:[%s329] sm:$0xff]
        %v2818 = vld [vmem:[%s329 + $0x8] sm:$0xff]
        %v2819 = vld [vmem:[%s329 + $0x10] sm:$0xff]
        %v2820 = vld [vmem:[%s329 + $0x18] sm:$0xff]
        %v2821 = vld [vmem:[#allocation10] sm:$0xff]
        %v2822 = vld [vmem:[#allocation10 + $0x8] sm:$0xff]
        %v2823 = vld [vmem:[#allocation10 + $0x10] sm:$0xff]
        %v2824 = vld [vmem:[#allocation10 + $0x18] sm:$0xff]
        %v2825 = vld [vmem:[#allocation10 + $0x20] sm:$0xff]
        %v2826 = vld [vmem:[#allocation10 + $0x28] sm:$0xff]
        %v2827 = vld [vmem:[#allocation10 + $0x30] sm:$0xff]
        %v2828 = vld [vmem:[#allocation10 + $0x38] sm:$0xff]
        %v2829 = vld [vmem:[#allocation10 + $0x40] sm:$0xff]
        %v2830 = vld [vmem:[#allocation10 + $0x48] sm:$0xff]
        %v2831 = vld [vmem:[#allocation10 + $0x50] sm:$0xff]
        %v2832 = vld [vmem:[#allocation10 + $0x58] sm:$0xff]
        %v2833 = vld [vmem:[#allocation10 + $0x60] sm:$0xff]
        %v2834 = vld [vmem:[#allocation10 + $0x68] sm:$0xff]
        %v2835 = vld [vmem:[#allocation10 + $0x70] sm:$0xff]
        %v2836 = vld [vmem:[#allocation10 + $0x78] sm:$0xff]
        %vm2837 = vcmask 523264
        %v2839 = vsel %vm2837, %v2817, 0
        %v2842 = vsel %vm2837, %v2818, 0
        %v2845 = vsel %vm2837, %v2819, 0
        %v2848 = vsel %vm2837, %v2820, 0
        %2850 = vmatprep.subr.mxu0 0.0
        %2851 = vmatpush1.msra.mxu0 0.0
        %2852 = vmatprep.subr.mxu0 0.0
        %2853 = vmatpush1.msra.mxu0 0.0
        %2854 = vmatprep.subr.mxu0 0.0
        %2855 = vmatpush1.msra.mxu0 0.0
        %2856 = vmatprep.subr.mxu0 0.0
        %2857 = vmatpush1.msra.mxu0 0.0
        %2858 = vmatprep.subr.mxu0 0.0
        %2859 = vmatpush1.msra.mxu0 0.0
        %2860 = vmatprep.subr.mxu0 0.0
        %2861 = vmatpush1.msra.mxu0 0.0
        %2862 = vmatprep.subr.mxu0 0.0
        %2863 = vmatpush1.msra.mxu0 0.0
        %2864 = vmatprep.subr.mxu0 0.0
        %2865 = vmatpush1.msra.mxu0 0.0
        %v2866 = vand.u32 %v2836, 4294901760
        %2867 = vmatprep.subr.mxu0 %v2866
        %v2868 = vand.u32 %v2835, 4294901760
        %2869 = vmatpush1.msra.mxu0 %v2868
        %v2870 = vand.u32 %v2834, 4294901760
        %2871 = vmatprep.subr.mxu0 %v2870
        %v2872 = vand.u32 %v2833, 4294901760
        %2873 = vmatpush1.msra.mxu0 %v2872
        %v2874 = vand.u32 %v2832, 4294901760
        %2875 = vmatprep.subr.mxu0 %v2874
        %v2876 = vand.u32 %v2831, 4294901760
        %2877 = vmatpush1.msra.mxu0 %v2876
        %v2878 = vand.u32 %v2830, 4294901760
        %2879 = vmatprep.subr.mxu0 %v2878
        %v2880 = vand.u32 %v2829, 4294901760
        %2881 = vmatpush1.msra.mxu0 %v2880
        %v2882 = vand.u32 %v2828, 4294901760
        %2883 = vmatprep.subr.mxu0 %v2882
        %v2884 = vand.u32 %v2827, 4294901760
        %2885 = vmatpush1.msra.mxu0 %v2884
        %v2886 = vand.u32 %v2826, 4294901760
        %2887 = vmatprep.subr.mxu0 %v2886
        %v2888 = vand.u32 %v2825, 4294901760
        %2889 = vmatpush1.msra.mxu0 %v2888
        %v2890 = vand.u32 %v2824, 4294901760
        %2891 = vmatprep.subr.mxu0 %v2890
        %v2892 = vand.u32 %v2823, 4294901760
        %2893 = vmatpush1.msra.mxu0 %v2892
        %v2894 = vand.u32 %v2822, 4294901760
        %2895 = vmatprep.subr.mxu0 %v2894
        %v2896 = vand.u32 %v2821, 4294901760
        %2897 = vmatpush1.msra.mxu0 %v2896
        %2898 = vmatprep.subr.mxu0 0.0
        %2899 = vmatpush2.msra.mxu0 0.0
        %2900 = vmatprep.subr.mxu0 0.0
        %2901 = vmatpush2.msra.mxu0 0.0
        %2902 = vmatprep.subr.mxu0 0.0
        %2903 = vmatpush2.msra.mxu0 0.0
        %2904 = vmatprep.subr.mxu0 0.0
        %2905 = vmatpush2.msra.mxu0 0.0
        %2906 = vmatprep.subr.mxu0 0.0
        %2907 = vmatpush2.msra.mxu0 0.0
        %2908 = vmatprep.subr.mxu0 0.0
        %2909 = vmatpush2.msra.mxu0 0.0
        %2910 = vmatprep.subr.mxu0 0.0
        %2911 = vmatpush2.msra.mxu0 0.0
        %2912 = vmatprep.subr.mxu0 0.0
        %2913 = vmatpush2.msra.mxu0 0.0
        %2914 = vmatprep.subr.mxu0 0.0
        %2915 = vmatpush2.msra.mxu0 0.0
        %2916 = vmatprep.subr.mxu0 0.0
        %2917 = vmatpush2.msra.mxu0 0.0
        %2918 = vmatprep.subr.mxu0 0.0
        %2919 = vmatpush2.msra.mxu0 0.0
        %2920 = vmatprep.subr.mxu0 0.0
        %2921 = vmatpush2.msra.mxu0 0.0
        %2922 = vmatprep.subr.mxu0 0.0
        %2923 = vmatpush2.msra.mxu0 0.0
        %2924 = vmatprep.subr.mxu0 0.0
        %2925 = vmatpush2.msra.mxu0 0.0
        %2926 = vmatprep.subr.mxu0 0.0
        %2927 = vmatpush2.msra.mxu0 0.0
        %2928 = vmatprep.subr.mxu0 0.0
        %2929 = vmatpush2.msra.mxu0 0.0
        %2930 = vmatprep.mubr.f32.mxu0 0.0
        %v2931 = vand.u32 %v2839, 4294901760
        %v2932 = vsub.f32 %v2839, %v2931
        %v2933 = vand.u32 %v2932, 4294901760
        %v2934 = vsub.f32 %v2932, %v2933
        %v2935 = vand.u32 %v2934, 4294901760
        %2936 = vmatmul.mubr.f32.gmra.mxu0 %v2935
        %v2937 = vpop.f32.mrf.mxu0
        %v2938 = vadd.f32 0.0, %v2937
        %v2939 = vpop.f32.mrf.mxu0
        %v2940 = vadd.f32 0.0, %v2939
        %2941 = vmatprep.mubr.f32.mxu0 0.0
        %v2942 = vand.u32 %v2842, 4294901760
        %v2943 = vsub.f32 %v2842, %v2942
        %v2944 = vand.u32 %v2943, 4294901760
        %v2945 = vsub.f32 %v2943, %v2944
        %v2946 = vand.u32 %v2945, 4294901760
        %2947 = vmatmul.mubr.f32.gmra.mxu0 %v2946
        %v2948 = vpop.f32.mrf.mxu0
        %v2949 = vadd.f32 0.0, %v2948
        %v2950 = vpop.f32.mrf.mxu0
        %v2951 = vadd.f32 0.0, %v2950
        %2952 = vmatprep.mubr.f32.mxu0 0.0
        %v2953 = vand.u32 %v2845, 4294901760
        %v2954 = vsub.f32 %v2845, %v2953
        %v2955 = vand.u32 %v2954, 4294901760
        %v2956 = vsub.f32 %v2954, %v2955
        %v2957 = vand.u32 %v2956, 4294901760
        %2958 = vmatmul.mubr.f32.gmra.mxu0 %v2957
        %v2959 = vpop.f32.mrf.mxu0
        %v2960 = vadd.f32 0.0, %v2959
        %v2961 = vpop.f32.mrf.mxu0
        %v2962 = vadd.f32 0.0, %v2961
        %2963 = vmatprep.mubr.f32.mxu0 0.0
        %v2964 = vand.u32 %v2848, 4294901760
        %v2965 = vsub.f32 %v2848, %v2964
        %v2966 = vand.u32 %v2965, 4294901760
        %v2967 = vsub.f32 %v2965, %v2966
        %v2968 = vand.u32 %v2967, 4294901760
        %2969 = vmatmul.mubr.f32.gmra.mxu0 %v2968
        %v2970 = vpop.f32.mrf.mxu0
        %v2971 = vadd.f32 0.0, %v2970
        %v2972 = vpop.f32.mrf.mxu0
        %v2973 = vadd.f32 0.0, %v2972
        %2974 = vdwg.mxu0
        %2975 = vmatprep.subr.mxu0 0.0
        %2976 = vmatpush1.msra.mxu0 0.0
        %2977 = vmatprep.subr.mxu0 0.0
        %2978 = vmatpush1.msra.mxu0 0.0
        %2979 = vmatprep.subr.mxu0 0.0
        %2980 = vmatpush1.msra.mxu0 0.0
        %2981 = vmatprep.subr.mxu0 0.0
        %2982 = vmatpush1.msra.mxu0 0.0
        %2983 = vmatprep.subr.mxu0 0.0
        %2984 = vmatpush1.msra.mxu0 0.0
        %2985 = vmatprep.subr.mxu0 0.0
        %2986 = vmatpush1.msra.mxu0 0.0
        %2987 = vmatprep.subr.mxu0 0.0
        %2988 = vmatpush1.msra.mxu0 0.0
        %2989 = vmatprep.subr.mxu0 0.0
        %2990 = vmatpush1.msra.mxu0 0.0
        %v2991 = vand.u32 %v2836, 4294901760
        %v2992 = vsub.f32 %v2836, %v2991
        %v2993 = vand.u32 %v2992, 4294901760
        %v2994 = vsub.f32 %v2992, %v2993
        %v2995 = vand.u32 %v2994, 4294901760
        %2996 = vmatprep.subr.mxu0 %v2995
        %v2997 = vand.u32 %v2835, 4294901760
        %v2998 = vsub.f32 %v2835, %v2997
        %v2999 = vand.u32 %v2998, 4294901760
        %v3000 = vsub.f32 %v2998, %v2999
        %v3001 = vand.u32 %v3000, 4294901760
        %3002 = vmatpush1.msra.mxu0 %v3001
        %v3003 = vand.u32 %v2834, 4294901760
        %v3004 = vsub.f32 %v2834, %v3003
        %v3005 = vand.u32 %v3004, 4294901760
        %v3006 = vsub.f32 %v3004, %v3005
        %v3007 = vand.u32 %v3006, 4294901760
        %3008 = vmatprep.subr.mxu0 %v3007
        %v3009 = vand.u32 %v2833, 4294901760
        %v3010 = vsub.f32 %v2833, %v3009
        %v3011 = vand.u32 %v3010, 4294901760
        %v3012 = vsub.f32 %v3010, %v3011
        %v3013 = vand.u32 %v3012, 4294901760
        %3014 = vmatpush1.msra.mxu0 %v3013
        %v3015 = vand.u32 %v2832, 4294901760
        %v3016 = vsub.f32 %v2832, %v3015
        %v3017 = vand.u32 %v3016, 4294901760
        %v3018 = vsub.f32 %v3016, %v3017
        %v3019 = vand.u32 %v3018, 4294901760
        %3020 = vmatprep.subr.mxu0 %v3019
        %v3021 = vand.u32 %v2831, 4294901760
        %v3022 = vsub.f32 %v2831, %v3021
        %v3023 = vand.u32 %v3022, 4294901760
        %v3024 = vsub.f32 %v3022, %v3023
        %v3025 = vand.u32 %v3024, 4294901760
        %3026 = vmatpush1.msra.mxu0 %v3025
        %v3027 = vand.u32 %v2830, 4294901760
        %v3028 = vsub.f32 %v2830, %v3027
        %v3029 = vand.u32 %v3028, 4294901760
        %v3030 = vsub.f32 %v3028, %v3029
        %v3031 = vand.u32 %v3030, 4294901760
        %3032 = vmatprep.subr.mxu0 %v3031
        %v3033 = vand.u32 %v2829, 4294901760
        %v3034 = vsub.f32 %v2829, %v3033
        %v3035 = vand.u32 %v3034, 4294901760
        %v3036 = vsub.f32 %v3034, %v3035
        %v3037 = vand.u32 %v3036, 4294901760
        %3038 = vmatpush1.msra.mxu0 %v3037
        %v3039 = vand.u32 %v2828, 4294901760
        %v3040 = vsub.f32 %v2828, %v3039
        %v3041 = vand.u32 %v3040, 4294901760
        %v3042 = vsub.f32 %v3040, %v3041
        %v3043 = vand.u32 %v3042, 4294901760
        %3044 = vmatprep.subr.mxu0 %v3043
        %v3045 = vand.u32 %v2827, 4294901760
        %v3046 = vsub.f32 %v2827, %v3045
        %v3047 = vand.u32 %v3046, 4294901760
        %v3048 = vsub.f32 %v3046, %v3047
        %v3049 = vand.u32 %v3048, 4294901760
        %3050 = vmatpush1.msra.mxu0 %v3049
        %v3051 = vand.u32 %v2826, 4294901760
        %v3052 = vsub.f32 %v2826, %v3051
        %v3053 = vand.u32 %v3052, 4294901760
        %v3054 = vsub.f32 %v3052, %v3053
        %v3055 = vand.u32 %v3054, 4294901760
        %3056 = vmatprep.subr.mxu0 %v3055
        %v3057 = vand.u32 %v2825, 4294901760
        %v3058 = vsub.f32 %v2825, %v3057
        %v3059 = vand.u32 %v3058, 4294901760
        %v3060 = vsub.f32 %v3058, %v3059
        %v3061 = vand.u32 %v3060, 4294901760
        %3062 = vmatpush1.msra.mxu0 %v3061
        %v3063 = vand.u32 %v2824, 4294901760
        %v3064 = vsub.f32 %v2824, %v3063
        %v3065 = vand.u32 %v3064, 4294901760
        %v3066 = vsub.f32 %v3064, %v3065
        %v3067 = vand.u32 %v3066, 4294901760
        %3068 = vmatprep.subr.mxu0 %v3067
        %v3069 = vand.u32 %v2823, 4294901760
        %v3070 = vsub.f32 %v2823, %v3069
        %v3071 = vand.u32 %v3070, 4294901760
        %v3072 = vsub.f32 %v3070, %v3071
        %v3073 = vand.u32 %v3072, 4294901760
        %3074 = vmatpush1.msra.mxu0 %v3073
        %v3075 = vand.u32 %v2822, 4294901760
        %v3076 = vsub.f32 %v2822, %v3075
        %v3077 = vand.u32 %v3076, 4294901760
        %v3078 = vsub.f32 %v3076, %v3077
        %v3079 = vand.u32 %v3078, 4294901760
        %3080 = vmatprep.subr.mxu0 %v3079
        %v3081 = vand.u32 %v2821, 4294901760
        %v3082 = vsub.f32 %v2821, %v3081
        %v3083 = vand.u32 %v3082, 4294901760
        %v3084 = vsub.f32 %v3082, %v3083
        %v3085 = vand.u32 %v3084, 4294901760
        %3086 = vmatpush1.msra.mxu0 %v3085
        %3087 = vmatprep.subr.mxu0 0.0
        %3088 = vmatpush2.msra.mxu0 0.0
        %3089 = vmatprep.subr.mxu0 0.0
        %3090 = vmatpush2.msra.mxu0 0.0
        %3091 = vmatprep.subr.mxu0 0.0
        %3092 = vmatpush2.msra.mxu0 0.0
        %3093 = vmatprep.subr.mxu0 0.0
        %3094 = vmatpush2.msra.mxu0 0.0
        %3095 = vmatprep.subr.mxu0 0.0
        %3096 = vmatpush2.msra.mxu0 0.0
        %3097 = vmatprep.subr.mxu0 0.0
        %3098 = vmatpush2.msra.mxu0 0.0
        %3099 = vmatprep.subr.mxu0 0.0
        %3100 = vmatpush2.msra.mxu0 0.0
        %3101 = vmatprep.subr.mxu0 0.0
        %3102 = vmatpush2.msra.mxu0 0.0
        %3103 = vmatprep.subr.mxu0 0.0
        %3104 = vmatpush2.msra.mxu0 0.0
        %3105 = vmatprep.subr.mxu0 0.0
        %3106 = vmatpush2.msra.mxu0 0.0
        %3107 = vmatprep.subr.mxu0 0.0
        %3108 = vmatpush2.msra.mxu0 0.0
        %3109 = vmatprep.subr.mxu0 0.0
        %3110 = vmatpush2.msra.mxu0 0.0
        %3111 = vmatprep.subr.mxu0 0.0
        %3112 = vmatpush2.msra.mxu0 0.0
        %3113 = vmatprep.subr.mxu0 0.0
        %3114 = vmatpush2.msra.mxu0 0.0
        %3115 = vmatprep.subr.mxu0 0.0
        %3116 = vmatpush2.msra.mxu0 0.0
        %3117 = vmatprep.subr.mxu0 0.0
        %3118 = vmatpush2.msra.mxu0 0.0
        %3119 = vmatprep.mubr.f32.mxu0 0.0
        %v3120 = vand.u32 %v2839, 4294901760
        %3121 = vmatmul.mubr.f32.gmra.mxu0 %v3120
        %v3122 = vpop.f32.mrf.mxu0
        %v3123 = vadd.f32 %v2938, %v3122
        %v3124 = vpop.f32.mrf.mxu0
        %v3125 = vadd.f32 %v2940, %v3124
        %3126 = vmatprep.mubr.f32.mxu0 0.0
        %v3127 = vand.u32 %v2842, 4294901760
        %3128 = vmatmul.mubr.f32.gmra.mxu0 %v3127
        %v3129 = vpop.f32.mrf.mxu0
        %v3130 = vadd.f32 %v2949, %v3129
        %v3131 = vpop.f32.mrf.mxu0
        %v3132 = vadd.f32 %v2951, %v3131
        %3133 = vmatprep.mubr.f32.mxu0 0.0
        %v3134 = vand.u32 %v2845, 4294901760
        %3135 = vmatmul.mubr.f32.gmra.mxu0 %v3134
        %v3136 = vpop.f32.mrf.mxu0
        %v3137 = vadd.f32 %v2960, %v3136
        %v3138 = vpop.f32.mrf.mxu0
        %v3139 = vadd.f32 %v2962, %v3138
        %3140 = vmatprep.mubr.f32.mxu0 0.0
        %v3141 = vand.u32 %v2848, 4294901760
        %3142 = vmatmul.mubr.f32.gmra.mxu0 %v3141
        %v3143 = vpop.f32.mrf.mxu0
        %v3144 = vadd.f32 %v2971, %v3143
        %v3145 = vpop.f32.mrf.mxu0
        %v3146 = vadd.f32 %v2973, %v3145
        %3147 = vdwg.mxu0
        %3148 = vmatprep.subr.mxu0 0.0
        %3149 = vmatpush1.msra.mxu0 0.0
        %3150 = vmatprep.subr.mxu0 0.0
        %3151 = vmatpush1.msra.mxu0 0.0
        %3152 = vmatprep.subr.mxu0 0.0
        %3153 = vmatpush1.msra.mxu0 0.0
        %3154 = vmatprep.subr.mxu0 0.0
        %3155 = vmatpush1.msra.mxu0 0.0
        %3156 = vmatprep.subr.mxu0 0.0
        %3157 = vmatpush1.msra.mxu0 0.0
        %3158 = vmatprep.subr.mxu0 0.0
        %3159 = vmatpush1.msra.mxu0 0.0
        %3160 = vmatprep.subr.mxu0 0.0
        %3161 = vmatpush1.msra.mxu0 0.0
        %3162 = vmatprep.subr.mxu0 0.0
        %3163 = vmatpush1.msra.mxu0 0.0
        %v3164 = vand.u32 %v2836, 4294901760
        %v3165 = vsub.f32 %v2836, %v3164
        %3166 = vmatprep.subr.mxu0 %v3165
        %v3167 = vand.u32 %v2835, 4294901760
        %v3168 = vsub.f32 %v2835, %v3167
        %3169 = vmatpush1.msra.mxu0 %v3168
        %v3170 = vand.u32 %v2834, 4294901760
        %v3171 = vsub.f32 %v2834, %v3170
        %3172 = vmatprep.subr.mxu0 %v3171
        %v3173 = vand.u32 %v2833, 4294901760
        %v3174 = vsub.f32 %v2833, %v3173
        %3175 = vmatpush1.msra.mxu0 %v3174
        %v3176 = vand.u32 %v2832, 4294901760
        %v3177 = vsub.f32 %v2832, %v3176
        %3178 = vmatprep.subr.mxu0 %v3177
        %v3179 = vand.u32 %v2831, 4294901760
        %v3180 = vsub.f32 %v2831, %v3179
        %3181 = vmatpush1.msra.mxu0 %v3180
        %v3182 = vand.u32 %v2830, 4294901760
        %v3183 = vsub.f32 %v2830, %v3182
        %3184 = vmatprep.subr.mxu0 %v3183
        %v3185 = vand.u32 %v2829, 4294901760
        %v3186 = vsub.f32 %v2829, %v3185
        %3187 = vmatpush1.msra.mxu0 %v3186
        %v3188 = vand.u32 %v2828, 4294901760
        %v3189 = vsub.f32 %v2828, %v3188
        %3190 = vmatprep.subr.mxu0 %v3189
        %v3191 = vand.u32 %v2827, 4294901760
        %v3192 = vsub.f32 %v2827, %v3191
        %3193 = vmatpush1.msra.mxu0 %v3192
        %v3194 = vand.u32 %v2826, 4294901760
        %v3195 = vsub.f32 %v2826, %v3194
        %3196 = vmatprep.subr.mxu0 %v3195
        %v3197 = vand.u32 %v2825, 4294901760
        %v3198 = vsub.f32 %v2825, %v3197
        %3199 = vmatpush1.msra.mxu0 %v3198
        %v3200 = vand.u32 %v2824, 4294901760
        %v3201 = vsub.f32 %v2824, %v3200
        %3202 = vmatprep.subr.mxu0 %v3201
        %v3203 = vand.u32 %v2823, 4294901760
        %v3204 = vsub.f32 %v2823, %v3203
        %3205 = vmatpush1.msra.mxu0 %v3204
        %v3206 = vand.u32 %v2822, 4294901760
        %v3207 = vsub.f32 %v2822, %v3206
        %3208 = vmatprep.subr.mxu0 %v3207
        %v3209 = vand.u32 %v2821, 4294901760
        %v3210 = vsub.f32 %v2821, %v3209
        %3211 = vmatpush1.msra.mxu0 %v3210
        %3212 = vmatprep.subr.mxu0 0.0
        %3213 = vmatpush2.msra.mxu0 0.0
        %3214 = vmatprep.subr.mxu0 0.0
        %3215 = vmatpush2.msra.mxu0 0.0
        %3216 = vmatprep.subr.mxu0 0.0
        %3217 = vmatpush2.msra.mxu0 0.0
        %3218 = vmatprep.subr.mxu0 0.0
        %3219 = vmatpush2.msra.mxu0 0.0
        %3220 = vmatprep.subr.mxu0 0.0
        %3221 = vmatpush2.msra.mxu0 0.0
        %3222 = vmatprep.subr.mxu0 0.0
        %3223 = vmatpush2.msra.mxu0 0.0
        %3224 = vmatprep.subr.mxu0 0.0
        %3225 = vmatpush2.msra.mxu0 0.0
        %3226 = vmatprep.subr.mxu0 0.0
        %3227 = vmatpush2.msra.mxu0 0.0
        %3228 = vmatprep.subr.mxu0 0.0
        %3229 = vmatpush2.msra.mxu0 0.0
        %3230 = vmatprep.subr.mxu0 0.0
        %3231 = vmatpush2.msra.mxu0 0.0
        %3232 = vmatprep.subr.mxu0 0.0
        %3233 = vmatpush2.msra.mxu0 0.0
        %3234 = vmatprep.subr.mxu0 0.0
        %3235 = vmatpush2.msra.mxu0 0.0
        %3236 = vmatprep.subr.mxu0 0.0
        %3237 = vmatpush2.msra.mxu0 0.0
        %3238 = vmatprep.subr.mxu0 0.0
        %3239 = vmatpush2.msra.mxu0 0.0
        %3240 = vmatprep.subr.mxu0 0.0
        %3241 = vmatpush2.msra.mxu0 0.0
        %3242 = vmatprep.subr.mxu0 0.0
        %3243 = vmatpush2.msra.mxu0 0.0
        %3244 = vmatprep.mubr.f32.mxu0 0.0
        %v3245 = vand.u32 %v2839, 4294901760
        %v3246 = vsub.f32 %v2839, %v3245
        %3247 = vmatmul.mubr.f32.gmra.mxu0 %v3246
        %v3248 = vpop.f32.mrf.mxu0
        %v3249 = vadd.f32 %v3123, %v3248
        %v3250 = vpop.f32.mrf.mxu0
        %v3251 = vadd.f32 %v3125, %v3250
        %3252 = vmatprep.mubr.f32.mxu0 0.0
        %v3253 = vand.u32 %v2842, 4294901760
        %v3254 = vsub.f32 %v2842, %v3253
        %3255 = vmatmul.mubr.f32.gmra.mxu0 %v3254
        %v3256 = vpop.f32.mrf.mxu0
        %v3257 = vadd.f32 %v3130, %v3256
        %v3258 = vpop.f32.mrf.mxu0
        %v3259 = vadd.f32 %v3132, %v3258
        %3260 = vmatprep.mubr.f32.mxu0 0.0
        %v3261 = vand.u32 %v2845, 4294901760
        %v3262 = vsub.f32 %v2845, %v3261
        %3263 = vmatmul.mubr.f32.gmra.mxu0 %v3262
        %v3264 = vpop.f32.mrf.mxu0
        %v3265 = vadd.f32 %v3137, %v3264
        %v3266 = vpop.f32.mrf.mxu0
        %v3267 = vadd.f32 %v3139, %v3266
        %3268 = vmatprep.mubr.f32.mxu0 0.0
        %v3269 = vand.u32 %v2848, 4294901760
        %v3270 = vsub.f32 %v2848, %v3269
        %3271 = vmatmul.mubr.f32.gmra.mxu0 %v3270
        %v3272 = vpop.f32.mrf.mxu0
        %v3273 = vadd.f32 %v3144, %v3272
        %v3274 = vpop.f32.mrf.mxu0
        %v3275 = vadd.f32 %v3146, %v3274
        %3276 = vdwg.mxu0
        %3277 = vmatprep.subr.mxu0 0.0
        %3278 = vmatpush1.msra.mxu0 0.0
        %3279 = vmatprep.subr.mxu0 0.0
        %3280 = vmatpush1.msra.mxu0 0.0
        %3281 = vmatprep.subr.mxu0 0.0
        %3282 = vmatpush1.msra.mxu0 0.0
        %3283 = vmatprep.subr.mxu0 0.0
        %3284 = vmatpush1.msra.mxu0 0.0
        %3285 = vmatprep.subr.mxu0 0.0
        %3286 = vmatpush1.msra.mxu0 0.0
        %3287 = vmatprep.subr.mxu0 0.0
        %3288 = vmatpush1.msra.mxu0 0.0
        %3289 = vmatprep.subr.mxu0 0.0
        %3290 = vmatpush1.msra.mxu0 0.0
        %3291 = vmatprep.subr.mxu0 0.0
        %3292 = vmatpush1.msra.mxu0 0.0
        %v3293 = vand.u32 %v2836, 4294901760
        %3294 = vmatprep.subr.mxu0 %v3293
        %v3295 = vand.u32 %v2835, 4294901760
        %3296 = vmatpush1.msra.mxu0 %v3295
        %v3297 = vand.u32 %v2834, 4294901760
        %3298 = vmatprep.subr.mxu0 %v3297
        %v3299 = vand.u32 %v2833, 4294901760
        %3300 = vmatpush1.msra.mxu0 %v3299
        %v3301 = vand.u32 %v2832, 4294901760
        %3302 = vmatprep.subr.mxu0 %v3301
        %v3303 = vand.u32 %v2831, 4294901760
        %3304 = vmatpush1.msra.mxu0 %v3303
        %v3305 = vand.u32 %v2830, 4294901760
        %3306 = vmatprep.subr.mxu0 %v3305
        %v3307 = vand.u32 %v2829, 4294901760
        %3308 = vmatpush1.msra.mxu0 %v3307
        %v3309 = vand.u32 %v2828, 4294901760
        %3310 = vmatprep.subr.mxu0 %v3309
        %v3311 = vand.u32 %v2827, 4294901760
        %3312 = vmatpush1.msra.mxu0 %v3311
        %v3313 = vand.u32 %v2826, 4294901760
        %3314 = vmatprep.subr.mxu0 %v3313
        %v3315 = vand.u32 %v2825, 4294901760
        %3316 = vmatpush1.msra.mxu0 %v3315
        %v3317 = vand.u32 %v2824, 4294901760
        %3318 = vmatprep.subr.mxu0 %v3317
        %v3319 = vand.u32 %v2823, 4294901760
        %3320 = vmatpush1.msra.mxu0 %v3319
        %v3321 = vand.u32 %v2822, 4294901760
        %3322 = vmatprep.subr.mxu0 %v3321
        %v3323 = vand.u32 %v2821, 4294901760
        %3324 = vmatpush1.msra.mxu0 %v3323
        %3325 = vmatprep.subr.mxu0 0.0
        %3326 = vmatpush2.msra.mxu0 0.0
        %3327 = vmatprep.subr.mxu0 0.0
        %3328 = vmatpush2.msra.mxu0 0.0
        %3329 = vmatprep.subr.mxu0 0.0
        %3330 = vmatpush2.msra.mxu0 0.0
        %3331 = vmatprep.subr.mxu0 0.0
        %3332 = vmatpush2.msra.mxu0 0.0
        %3333 = vmatprep.subr.mxu0 0.0
        %3334 = vmatpush2.msra.mxu0 0.0
        %3335 = vmatprep.subr.mxu0 0.0
        %3336 = vmatpush2.msra.mxu0 0.0
        %3337 = vmatprep.subr.mxu0 0.0
        %3338 = vmatpush2.msra.mxu0 0.0
        %3339 = vmatprep.subr.mxu0 0.0
        %3340 = vmatpush2.msra.mxu0 0.0
        %3341 = vmatprep.subr.mxu0 0.0
        %3342 = vmatpush2.msra.mxu0 0.0
        %3343 = vmatprep.subr.mxu0 0.0
        %3344 = vmatpush2.msra.mxu0 0.0
        %3345 = vmatprep.subr.mxu0 0.0
        %3346 = vmatpush2.msra.mxu0 0.0
        %3347 = vmatprep.subr.mxu0 0.0
        %3348 = vmatpush2.msra.mxu0 0.0
        %3349 = vmatprep.subr.mxu0 0.0
        %3350 = vmatpush2.msra.mxu0 0.0
        %3351 = vmatprep.subr.mxu0 0.0
        %3352 = vmatpush2.msra.mxu0 0.0
        %3353 = vmatprep.subr.mxu0 0.0
        %3354 = vmatpush2.msra.mxu0 0.0
        %3355 = vmatprep.subr.mxu0 0.0
        %3356 = vmatpush2.msra.mxu0 0.0
        %3357 = vmatprep.mubr.f32.mxu0 0.0
        %v3358 = vand.u32 %v2839, 4294901760
        %v3359 = vsub.f32 %v2839, %v3358
        %v3360 = vand.u32 %v3359, 4294901760
        %3361 = vmatmul.mubr.f32.gmra.mxu0 %v3360
        %v3362 = vpop.f32.mrf.mxu0
        %v3363 = vadd.f32 %v3249, %v3362
        %v3364 = vpop.f32.mrf.mxu0
        %v3365 = vadd.f32 %v3251, %v3364
        %3366 = vmatprep.mubr.f32.mxu0 0.0
        %v3367 = vand.u32 %v2842, 4294901760
        %v3368 = vsub.f32 %v2842, %v3367
        %v3369 = vand.u32 %v3368, 4294901760
        %3370 = vmatmul.mubr.f32.gmra.mxu0 %v3369
        %v3371 = vpop.f32.mrf.mxu0
        %v3372 = vadd.f32 %v3257, %v3371
        %v3373 = vpop.f32.mrf.mxu0
        %v3374 = vadd.f32 %v3259, %v3373
        %3375 = vmatprep.mubr.f32.mxu0 0.0
        %v3376 = vand.u32 %v2845, 4294901760
        %v3377 = vsub.f32 %v2845, %v3376
        %v3378 = vand.u32 %v3377, 4294901760
        %3379 = vmatmul.mubr.f32.gmra.mxu0 %v3378
        %v3380 = vpop.f32.mrf.mxu0
        %v3381 = vadd.f32 %v3265, %v3380
        %v3382 = vpop.f32.mrf.mxu0
        %v3383 = vadd.f32 %v3267, %v3382
        %3384 = vmatprep.mubr.f32.mxu0 0.0
        %v3385 = vand.u32 %v2848, 4294901760
        %v3386 = vsub.f32 %v2848, %v3385
        %v3387 = vand.u32 %v3386, 4294901760
        %3388 = vmatmul.mubr.f32.gmra.mxu0 %v3387
        %v3389 = vpop.f32.mrf.mxu0
        %v3390 = vadd.f32 %v3273, %v3389
        %v3391 = vpop.f32.mrf.mxu0
        %v3392 = vadd.f32 %v3275, %v3391
        %3393 = vdwg.mxu0
        %3394 = vmatprep.subr.mxu0 0.0
        %3395 = vmatpush1.msra.mxu0 0.0
        %3396 = vmatprep.subr.mxu0 0.0
        %3397 = vmatpush1.msra.mxu0 0.0
        %3398 = vmatprep.subr.mxu0 0.0
        %3399 = vmatpush1.msra.mxu0 0.0
        %3400 = vmatprep.subr.mxu0 0.0
        %3401 = vmatpush1.msra.mxu0 0.0
        %3402 = vmatprep.subr.mxu0 0.0
        %3403 = vmatpush1.msra.mxu0 0.0
        %3404 = vmatprep.subr.mxu0 0.0
        %3405 = vmatpush1.msra.mxu0 0.0
        %3406 = vmatprep.subr.mxu0 0.0
        %3407 = vmatpush1.msra.mxu0 0.0
        %3408 = vmatprep.subr.mxu0 0.0
        %3409 = vmatpush1.msra.mxu0 0.0
        %v3410 = vand.u32 %v2836, 4294901760
        %v3411 = vsub.f32 %v2836, %v3410
        %v3412 = vand.u32 %v3411, 4294901760
        %3413 = vmatprep.subr.mxu0 %v3412
        %v3414 = vand.u32 %v2835, 4294901760
        %v3415 = vsub.f32 %v2835, %v3414
        %v3416 = vand.u32 %v3415, 4294901760
        %3417 = vmatpush1.msra.mxu0 %v3416
        %v3418 = vand.u32 %v2834, 4294901760
        %v3419 = vsub.f32 %v2834, %v3418
        %v3420 = vand.u32 %v3419, 4294901760
        %3421 = vmatprep.subr.mxu0 %v3420
        %v3422 = vand.u32 %v2833, 4294901760
        %v3423 = vsub.f32 %v2833, %v3422
        %v3424 = vand.u32 %v3423, 4294901760
        %3425 = vmatpush1.msra.mxu0 %v3424
        %v3426 = vand.u32 %v2832, 4294901760
        %v3427 = vsub.f32 %v2832, %v3426
        %v3428 = vand.u32 %v3427, 4294901760
        %3429 = vmatprep.subr.mxu0 %v3428
        %v3430 = vand.u32 %v2831, 4294901760
        %v3431 = vsub.f32 %v2831, %v3430
        %v3432 = vand.u32 %v3431, 4294901760
        %3433 = vmatpush1.msra.mxu0 %v3432
        %v3434 = vand.u32 %v2830, 4294901760
        %v3435 = vsub.f32 %v2830, %v3434
        %v3436 = vand.u32 %v3435, 4294901760
        %3437 = vmatprep.subr.mxu0 %v3436
        %v3438 = vand.u32 %v2829, 4294901760
        %v3439 = vsub.f32 %v2829, %v3438
        %v3440 = vand.u32 %v3439, 4294901760
        %3441 = vmatpush1.msra.mxu0 %v3440
        %v3442 = vand.u32 %v2828, 4294901760
        %v3443 = vsub.f32 %v2828, %v3442
        %v3444 = vand.u32 %v3443, 4294901760
        %3445 = vmatprep.subr.mxu0 %v3444
        %v3446 = vand.u32 %v2827, 4294901760
        %v3447 = vsub.f32 %v2827, %v3446
        %v3448 = vand.u32 %v3447, 4294901760
        %3449 = vmatpush1.msra.mxu0 %v3448
        %v3450 = vand.u32 %v2826, 4294901760
        %v3451 = vsub.f32 %v2826, %v3450
        %v3452 = vand.u32 %v3451, 4294901760
        %3453 = vmatprep.subr.mxu0 %v3452
        %v3454 = vand.u32 %v2825, 4294901760
        %v3455 = vsub.f32 %v2825, %v3454
        %v3456 = vand.u32 %v3455, 4294901760
        %3457 = vmatpush1.msra.mxu0 %v3456
        %v3458 = vand.u32 %v2824, 4294901760
        %v3459 = vsub.f32 %v2824, %v3458
        %v3460 = vand.u32 %v3459, 4294901760
        %3461 = vmatprep.subr.mxu0 %v3460
        %v3462 = vand.u32 %v2823, 4294901760
        %v3463 = vsub.f32 %v2823, %v3462
        %v3464 = vand.u32 %v3463, 4294901760
        %3465 = vmatpush1.msra.mxu0 %v3464
        %v3466 = vand.u32 %v2822, 4294901760
        %v3467 = vsub.f32 %v2822, %v3466
        %v3468 = vand.u32 %v3467, 4294901760
        %3469 = vmatprep.subr.mxu0 %v3468
        %v3470 = vand.u32 %v2821, 4294901760
        %v3471 = vsub.f32 %v2821, %v3470
        %v3472 = vand.u32 %v3471, 4294901760
        %3473 = vmatpush1.msra.mxu0 %v3472
        %3474 = vmatprep.subr.mxu0 0.0
        %3475 = vmatpush2.msra.mxu0 0.0
        %3476 = vmatprep.subr.mxu0 0.0
        %3477 = vmatpush2.msra.mxu0 0.0
        %3478 = vmatprep.subr.mxu0 0.0
        %3479 = vmatpush2.msra.mxu0 0.0
        %3480 = vmatprep.subr.mxu0 0.0
        %3481 = vmatpush2.msra.mxu0 0.0
        %3482 = vmatprep.subr.mxu0 0.0
        %3483 = vmatpush2.msra.mxu0 0.0
        %3484 = vmatprep.subr.mxu0 0.0
        %3485 = vmatpush2.msra.mxu0 0.0
        %3486 = vmatprep.subr.mxu0 0.0
        %3487 = vmatpush2.msra.mxu0 0.0
        %3488 = vmatprep.subr.mxu0 0.0
        %3489 = vmatpush2.msra.mxu0 0.0
        %3490 = vmatprep.subr.mxu0 0.0
        %3491 = vmatpush2.msra.mxu0 0.0
        %3492 = vmatprep.subr.mxu0 0.0
        %3493 = vmatpush2.msra.mxu0 0.0
        %3494 = vmatprep.subr.mxu0 0.0
        %3495 = vmatpush2.msra.mxu0 0.0
        %3496 = vmatprep.subr.mxu0 0.0
        %3497 = vmatpush2.msra.mxu0 0.0
        %3498 = vmatprep.subr.mxu0 0.0
        %3499 = vmatpush2.msra.mxu0 0.0
        %3500 = vmatprep.subr.mxu0 0.0
        %3501 = vmatpush2.msra.mxu0 0.0
        %3502 = vmatprep.subr.mxu0 0.0
        %3503 = vmatpush2.msra.mxu0 0.0
        %3504 = vmatprep.subr.mxu0 0.0
        %3505 = vmatpush2.msra.mxu0 0.0
        %3506 = vmatprep.mubr.f32.mxu0 0.0
        %v3507 = vand.u32 %v2839, 4294901760
        %3508 = vmatmul.mubr.f32.gmra.mxu0 %v3507
        %v3509 = vpop.f32.mrf.mxu0
        %v3510 = vadd.f32 %v3363, %v3509
        %v3511 = vpop.f32.mrf.mxu0
        %v3512 = vadd.f32 %v3365, %v3511
        %3513 = vmatprep.mubr.f32.mxu0 0.0
        %v3514 = vand.u32 %v2842, 4294901760
        %3515 = vmatmul.mubr.f32.gmra.mxu0 %v3514
        %v3516 = vpop.f32.mrf.mxu0
        %v3517 = vadd.f32 %v3372, %v3516
        %v3518 = vpop.f32.mrf.mxu0
        %v3519 = vadd.f32 %v3374, %v3518
        %3520 = vmatprep.mubr.f32.mxu0 0.0
        %v3521 = vand.u32 %v2845, 4294901760
        %3522 = vmatmul.mubr.f32.gmra.mxu0 %v3521
        %v3523 = vpop.f32.mrf.mxu0
        %v3524 = vadd.f32 %v3381, %v3523
        %v3525 = vpop.f32.mrf.mxu0
        %v3526 = vadd.f32 %v3383, %v3525
        %3527 = vmatprep.mubr.f32.mxu0 0.0
        %v3528 = vand.u32 %v2848, 4294901760
        %3529 = vmatmul.mubr.f32.gmra.mxu0 %v3528
        %v3530 = vpop.f32.mrf.mxu0
        %v3531 = vadd.f32 %v3390, %v3530
        %v3532 = vpop.f32.mrf.mxu0
        %v3533 = vadd.f32 %v3392, %v3532
        %3534 = vdwg.mxu0
        %3535 = vmatprep.subr.mxu0 0.0
        %3536 = vmatpush1.msra.mxu0 0.0
        %3537 = vmatprep.subr.mxu0 0.0
        %3538 = vmatpush1.msra.mxu0 0.0
        %3539 = vmatprep.subr.mxu0 0.0
        %3540 = vmatpush1.msra.mxu0 0.0
        %3541 = vmatprep.subr.mxu0 0.0
        %3542 = vmatpush1.msra.mxu0 0.0
        %3543 = vmatprep.subr.mxu0 0.0
        %3544 = vmatpush1.msra.mxu0 0.0
        %3545 = vmatprep.subr.mxu0 0.0
        %3546 = vmatpush1.msra.mxu0 0.0
        %3547 = vmatprep.subr.mxu0 0.0
        %3548 = vmatpush1.msra.mxu0 0.0
        %3549 = vmatprep.subr.mxu0 0.0
        %3550 = vmatpush1.msra.mxu0 0.0
        %v3551 = vand.u32 %v2836, 4294901760
        %3552 = vmatprep.subr.mxu0 %v3551
        %v3553 = vand.u32 %v2835, 4294901760
        %3554 = vmatpush1.msra.mxu0 %v3553
        %v3555 = vand.u32 %v2834, 4294901760
        %3556 = vmatprep.subr.mxu0 %v3555
        %v3557 = vand.u32 %v2833, 4294901760
        %3558 = vmatpush1.msra.mxu0 %v3557
        %v3559 = vand.u32 %v2832, 4294901760
        %3560 = vmatprep.subr.mxu0 %v3559
        %v3561 = vand.u32 %v2831, 4294901760
        %3562 = vmatpush1.msra.mxu0 %v3561
        %v3563 = vand.u32 %v2830, 4294901760
        %3564 = vmatprep.subr.mxu0 %v3563
        %v3565 = vand.u32 %v2829, 4294901760
        %3566 = vmatpush1.msra.mxu0 %v3565
        %v3567 = vand.u32 %v2828, 4294901760
        %3568 = vmatprep.subr.mxu0 %v3567
        %v3569 = vand.u32 %v2827, 4294901760
        %3570 = vmatpush1.msra.mxu0 %v3569
        %v3571 = vand.u32 %v2826, 4294901760
        %3572 = vmatprep.subr.mxu0 %v3571
        %v3573 = vand.u32 %v2825, 4294901760
        %3574 = vmatpush1.msra.mxu0 %v3573
        %v3575 = vand.u32 %v2824, 4294901760
        %3576 = vmatprep.subr.mxu0 %v3575
        %v3577 = vand.u32 %v2823, 4294901760
        %3578 = vmatpush1.msra.mxu0 %v3577
        %v3579 = vand.u32 %v2822, 4294901760
        %3580 = vmatprep.subr.mxu0 %v3579
        %v3581 = vand.u32 %v2821, 4294901760
        %3582 = vmatpush1.msra.mxu0 %v3581
        %3583 = vmatprep.subr.mxu0 0.0
        %3584 = vmatpush2.msra.mxu0 0.0
        %3585 = vmatprep.subr.mxu0 0.0
        %3586 = vmatpush2.msra.mxu0 0.0
        %3587 = vmatprep.subr.mxu0 0.0
        %3588 = vmatpush2.msra.mxu0 0.0
        %3589 = vmatprep.subr.mxu0 0.0
        %3590 = vmatpush2.msra.mxu0 0.0
        %3591 = vmatprep.subr.mxu0 0.0
        %3592 = vmatpush2.msra.mxu0 0.0
        %3593 = vmatprep.subr.mxu0 0.0
        %3594 = vmatpush2.msra.mxu0 0.0
        %3595 = vmatprep.subr.mxu0 0.0
        %3596 = vmatpush2.msra.mxu0 0.0
        %3597 = vmatprep.subr.mxu0 0.0
        %3598 = vmatpush2.msra.mxu0 0.0
        %3599 = vmatprep.subr.mxu0 0.0
        %3600 = vmatpush2.msra.mxu0 0.0
        %3601 = vmatprep.subr.mxu0 0.0
        %3602 = vmatpush2.msra.mxu0 0.0
        %3603 = vmatprep.subr.mxu0 0.0
        %3604 = vmatpush2.msra.mxu0 0.0
        %3605 = vmatprep.subr.mxu0 0.0
        %3606 = vmatpush2.msra.mxu0 0.0
        %3607 = vmatprep.subr.mxu0 0.0
        %3608 = vmatpush2.msra.mxu0 0.0
        %3609 = vmatprep.subr.mxu0 0.0
        %3610 = vmatpush2.msra.mxu0 0.0
        %3611 = vmatprep.subr.mxu0 0.0
        %3612 = vmatpush2.msra.mxu0 0.0
        %3613 = vmatprep.subr.mxu0 0.0
        %3614 = vmatpush2.msra.mxu0 0.0
        %3615 = vmatprep.mubr.f32.mxu0 0.0
        %v3616 = vand.u32 %v2839, 4294901760
        %3617 = vmatmul.mubr.f32.gmra.mxu0 %v3616
        %v3618 = vpop.f32.mrf.mxu0
        %v3619 = vadd.f32 %v3510, %v3618
        %v3620 = vpop.f32.mrf.mxu0
        %v3621 = vadd.f32 %v3512, %v3620
        %3622 = vmatprep.mubr.f32.mxu0 0.0
        %v3623 = vand.u32 %v2842, 4294901760
        %3624 = vmatmul.mubr.f32.gmra.mxu0 %v3623
        %v3625 = vpop.f32.mrf.mxu0
        %v3626 = vadd.f32 %v3517, %v3625
        %v3627 = vpop.f32.mrf.mxu0
        %v3628 = vadd.f32 %v3519, %v3627
        %3629 = vmatprep.mubr.f32.mxu0 0.0
        %v3630 = vand.u32 %v2845, 4294901760
        %3631 = vmatmul.mubr.f32.gmra.mxu0 %v3630
        %v3632 = vpop.f32.mrf.mxu0
        %v3633 = vadd.f32 %v3524, %v3632
        %v3634 = vpop.f32.mrf.mxu0
        %v3635 = vadd.f32 %v3526, %v3634
        %3636 = vmatprep.mubr.f32.mxu0 0.0
        %v3637 = vand.u32 %v2848, 4294901760
        %3638 = vmatmul.mubr.f32.gmra.mxu0 %v3637
        %v3639 = vpop.f32.mrf.mxu0
        %v3640 = vadd.f32 %v3531, %v3639
        %v3641 = vpop.f32.mrf.mxu0
        %v3642 = vadd.f32 %v3533, %v3641
        %3643 = vdwg.mxu0
        %3644 = vst [vmem:[%s375 + $0x80] sm:$0xff] %v3619
        %3645 = vst [vmem:[%s375 + $0x88] sm:$0xff] %v3621
        %3646 = vst [vmem:[%s375 + $0x90] sm:$0xff] %v3626
        %3647 = vst [vmem:[%s375 + $0x98] sm:$0xff] %v3628
        %3648 = vst [vmem:[%s375 + $0xa0] sm:$0xff] %v3633
        %3649 = vst [vmem:[%s375 + $0xa8] sm:$0xff] %v3635
        %3650 = vst [vmem:[%s375 + $0xb0] sm:$0xff] %v3640
        %3651 = vst [vmem:[%s375 + $0xb8] sm:$0xff] %v3642
        %s3652 = sand.u32 %s176, 1
        %s3653 = scalar_lea.sflag [#allocation4], %s3652
        %s3654 = sand.u32 %s176, 1
        %s3655 = smul.addr %s3654, 192
        %s3656 = scalar_lea.vmem [#allocation11], %s3655
        // Predicated region
        $region65: #{tpu_custom_call.1} parent=43 // pred_check
          %p3657 = pneg %p186
        $region66: #{tpu_custom_call.1} parent=43 // pred_check_branch
          %3659 = sbr.rel (%p3657) target = $region68
        $region67: #{tpu_custom_call.1} parent=43 // pred_region
          %s3661 = ssub.s32 3072, 3072
          %3662 = vsyncadd %s3653, %s3661
          %s3663 = smul.addr %s27, 24
          %s3664 = smul.addr %s3663, 128
          %s3665 = scalar_lea.hbm %s6, %s3664
          %s3666 = sshll.u32 %s3656, 4
          %s3667 = int_to_ptr.vmem [resolvable:$true] %s3666
          %3672 = dma.vmem_to_hbm [thread:$0]  %s3667, 3072, %s3665, %s3653, 256, 256, 16
        $region68: #{tpu_custom_call.1} parent=43 // pred_fallthru
          _
      $region44: #{tpu_custom_call.1} parent=5 // pred_fallthru
        _
      %p3673 = scmp.le.s32.totalorder 2, %s22
      // Predicated region
      $region69: #{tpu_custom_call.1} parent=5 // pred_check
        %p3674 = pneg %p3673
      $region70: #{tpu_custom_call.1} parent=5 // pred_check_branch
        %3676 = sbr.rel (%p3674) target = $region72
      $region71: #{tpu_custom_call.1} parent=5 // pred_region
        %s3677 = ssub.s32 %s22, 2
        // Predicated region
        $region73: #{tpu_custom_call.1} parent=71 // pred_check
          %p3678 = pneg %p192
        $region74: #{tpu_custom_call.1} parent=71 // pred_check_branch
          %3680 = sbr.rel (%p3678) target = $region76
        $region75: #{tpu_custom_call.1} parent=71 // pred_region
          %s3681 = sand.u32 %s177, 1
          %s3682 = scalar_lea.sflag [#allocation4], %s3681
          %s3683 = sand.u32 %s177, 1
          %s3684 = smul.addr %s3683, 192
          %s3685 = scalar_lea.vmem [#allocation11], %s3684
          %3686 = dma.done %s3682, 3072
        $region76: #{tpu_custom_call.1} parent=71 // pred_fallthru
          _
      $region72: #{tpu_custom_call.1} parent=5 // pred_fallthru
        _
    $region6: #{tpu_custom_call.1} parent=1 // loop_footer
      %s26 = sadd.s32 1, %s22
    $region7: #{tpu_custom_call.1} parent=1 // loop_footer_branch
      %21 = sbr.rel target = $region3
    $region8: #{tpu_custom_call.1} parent=1 // loop_exit
      _
    %3687 = vsyncpa [#allocation3], 1
    %s3688 = scalar_lea.sflag [#allocation3], 1
    %3689 = vsyncpa %s3688, 1
    %3690 = vsyncpa [#allocation6], 1
    %s3691 = scalar_lea.sflag [#allocation6], 1
    %3692 = vsyncpa %s3691, 1
    %3693 = vsyncpa [#allocation9], 1
    %3694 = vsyncpa [#allocation4], 1
    %s3695 = scalar_lea.sflag [#allocation4], 1
    %3696 = vsyncpa %s3695, 1

</llo_original>
